<compile_context>
chip_gen: v6e
topology: v6e:2x2x1
jax: 0.10.0
libtpu: 0.0.40
codegen_flags: <defaults>
</compile_context>

<pallas_src>
import functools

import jax
import jax.numpy as jnp
from jax import lax
from jax.experimental import pallas as pl
from jax.experimental.pallas import tpu as pltpu

# Storage dtype for inter-kernel activations and MXU matmul weights.
ACT_DTYPE = jnp.bfloat16
W_DTYPE = jnp.bfloat16
_LN_EPS = 1e-5


def _vmem_limit_bytes():
    # Explicit per-generation scoped-VMEM limit (~3/4 of physical):
    #   v5e / v6e : 128 MiB physical -> 96 MiB (scoped defaults are 16/32 MiB)
    #   v7x       :  64 MiB physical -> 48 MiB
    try:
        info = pltpu.get_tpu_info()
        phys = int(getattr(info, "vmem_capacity_bytes", 0) or 0)
    except Exception:
        phys = 0
    if phys <= 0:
        phys = 128 << 20
    return int(min(phys * 3 // 4, 96 << 20))


_VMEM_LIMIT = _vmem_limit_bytes()


def _compiler_params(n_parallel_axes=1):
    return pltpu.CompilerParams(
        dimension_semantics=("parallel",) * n_parallel_axes,
        vmem_limit_bytes=_VMEM_LIMIT)


def _tile_rows(m, per_row_bytes, weight_bytes, cap=1024):
    """Row-tile size from the actual per-step VMEM footprint (double-buffered
    activations + f32 intermediates + resident weights) against the explicit
    vmem limit, instead of a fixed heuristic."""
    budget = _VMEM_LIMIT - weight_bytes - (4 << 20)     # DMA / spill headroom
    tm = budget // max(per_row_bytes, 1)
    tm = int(max(8, min(cap, tm)))
    tm -= tm % 8
    return max(8, min(m, tm))


# ----------------------------------------------------------------------------
# Pallas kernels
# ----------------------------------------------------------------------------
def _linear_kernel(x_ref, w_ref, b_ref, o_ref, *, activation):
    acc = jnp.dot(x_ref[...].astype(w_ref.dtype), w_ref[...],
                  preferred_element_type=jnp.float32) + b_ref[...]
    if activation == "relu":
        acc = jnp.maximum(acc, 0.0)
    elif activation == "swish":
        acc = acc * jax.nn.sigmoid(acc)
    o_ref[...] = acc.astype(o_ref.dtype)


def pallas_linear(x2d, w, b, activation=None):
    m, kdim = x2d.shape
    n = w.shape[1]
    per_row_bytes = 4 * kdim + 8 * n                   # bf16 in/out (x2) + f32 acc
    weight_bytes = 2 * 2 * kdim * n                    # bf16, double-buffered
    tm = _tile_rows(m, per_row_bytes, weight_bytes)
    row_in = pl.BlockSpec((tm, kdim), lambda i: (i, 0))
    row_out = pl.BlockSpec((tm, n), lambda i: (i, 0))
    return pl.pallas_call(
        functools.partial(_linear_kernel, activation=activation),
        out_shape=jax.ShapeDtypeStruct((m, n), x2d.dtype),
        grid=(pl.cdiv(m, tm),),
        in_specs=[row_in,
                  pl.BlockSpec((kdim, n), lambda i: (0, 0)),
                  pl.BlockSpec((1, n), lambda i: (0, 0))],
        out_specs=row_out,
        compiler_params=_compiler_params(1),
    )(x2d, w, b.reshape(1, n))


def _ffn_kernel(*refs, module_factor, has_final_ln):
    if has_final_ln:
        (x_ref, g_ref, bg_ref, w1_ref, b1_ref, w2_ref, b2_ref,
         gf_ref, bf_ref, o_ref) = refs
    else:
        (x_ref, g_ref, bg_ref, w1_ref, b1_ref, w2_ref, b2_ref, o_ref) = refs
    x = x_ref[...]                               # bf16 tile, kept for residual
    xf = x.astype(jnp.float32)
    mu = jnp.mean(xf, axis=-1, keepdims=True)
    var = jnp.mean(jnp.square(xf - mu), axis=-1, keepdims=True)
    h = (xf - mu) * lax.rsqrt(var + _LN_EPS) * g_ref[...] + bg_ref[...]
    h = jnp.dot(h.astype(w1_ref.dtype), w1_ref[...],
                preferred_element_type=jnp.float32) + b1_ref[...]
    h = h * jax.nn.sigmoid(h)                                       # Swish
    h = jnp.dot(h.astype(w2_ref.dtype), w2_ref[...],
                preferred_element_type=jnp.float32) + b2_ref[...]
    # Residual added in f32, but only the bf16 x stays live across the matmuls.
    y = x.astype(jnp.float32) + module_factor * h
    if has_final_ln:
        mu2 = jnp.mean(y, axis=-1, keepdims=True)
        var2 = jnp.mean(jnp.square(y - mu2), axis=-1, keepdims=True)
        y = (y - mu2) * lax.rsqrt(var2 + _LN_EPS) * gf_ref[...] + bf_ref[...]
    o_ref[...] = y.astype(o_ref.dtype)


def pallas_ffn(x2d, p, module_factor, final_ln=None):
    m, d = x2d.shape
    fdim = p["w1"].shape[1]
    args = [x2d,
            p["ln_g"].reshape(1, d), p["ln_b"].reshape(1, d),
            p["w1"], p["b1"].reshape(1, fdim),
            p["w2"], p["b2"].reshape(1, d)]
    if final_ln is not None:
        gf, bf = final_ln
        args += [gf.reshape(1, d), bf.reshape(1, d)]
    # Footprint per row: bf16 x in/out (double-buffered) + f32 LN / hidden /
    # residual intermediates.
    per_row_bytes = 16 * d + 4 * fdim
    weight_bytes = 2 * 2 * 2 * d * fdim                # w1+w2, bf16, dbl-buffered
    tm = _tile_rows(m, per_row_bytes, weight_bytes)
    row_spec = pl.BlockSpec((tm, d), lambda i: (i, 0))
    in_specs = [row_spec] + [pl.BlockSpec(a.shape, lambda i: (0, 0))
                             for a in args[1:]]
    kern = functools.partial(_ffn_kernel, module_factor=module_factor,
                             has_final_ln=final_ln is not None)
    return pl.pallas_call(
        kern,
        out_shape=jax.ShapeDtypeStruct((m, d), x2d.dtype),
        grid=(pl.cdiv(m, tm),),
        in_specs=in_specs,
        out_specs=row_spec,
        input_output_aliases={0: 0},
        compiler_params=_compiler_params(1),
    )(*args)


def _mhsa_kernel(x_ref, g_ref, bg_ref, wqkv_ref, bqkv_ref, wo_ref, bo_ref,
                 o_ref, qkv_ref, ctx_ref, *, n_heads):
    _, t, d = x_ref.shape
    dh = d // n_heads
    scale = 1.0 / float(dh) ** 0.5
    x = x_ref[0]                                       # (T, D) bf16
    xf = x.astype(jnp.float32)
    mu = jnp.mean(xf, axis=-1, keepdims=True)
    var = jnp.mean(jnp.square(xf - mu), axis=-1, keepdims=True)
    xn = (xf - mu) * lax.rsqrt(var + _LN_EPS) * g_ref[...] + bg_ref[...]
    # Fused QKV projection: one (T, D) @ (D, 3D) MXU matmul, staged in VMEM so
    # per-head access is a plain strided load rather than a value relayout.
    qkv = jnp.dot(xn.astype(wqkv_ref.dtype), wqkv_ref[...],
                  preferred_element_type=jnp.float32) + bqkv_ref[...]
    qkv_ref[...] = qkv.astype(qkv_ref.dtype)
    for h in range(n_heads):
        qh = qkv_ref[:, h * dh:(h + 1) * dh]
        kh = qkv_ref[:, d + h * dh:d + (h + 1) * dh]
        vh = qkv_ref[:, 2 * d + h * dh:2 * d + (h + 1) * dh]
        s = lax.dot_general(qh, kh, (((1,), (1,)), ((), ())),
                            preferred_element_type=jnp.float32) * scale
        s = s - jnp.max(s, axis=-1, keepdims=True)
        p = jnp.exp(s)
        p = p * pl.reciprocal(jnp.sum(p, axis=-1, keepdims=True), approx=True)
        # Head context written at its static column offset -> the concatenated
        # (T, D) context exists only in VMEM scratch, never as a value.
        ctx_ref[:, h * dh:(h + 1) * dh] = jnp.dot(
            p.astype(vh.dtype), vh,
            preferred_element_type=jnp.float32).astype(ctx_ref.dtype)
    out = jnp.dot(ctx_ref[...], wo_ref[...],
                  preferred_element_type=jnp.float32) + bo_ref[...]
    o_ref[0] = (x.astype(jnp.float32) + out).astype(o_ref.dtype)    # residual


def pallas_mhsa(x3d, p, n_heads):
    b, t, d = x3d.shape
    args = [x3d,
            p["ln_g"].reshape(1, d), p["ln_b"].reshape(1, d),
            p["wqkv"], p["bqkv"].reshape(1, 3 * d),
            p["wo"], p["bo"].reshape(1, d)]
    x_spec = pl.BlockSpec((1, t, d), lambda i: (i, 0, 0))
    in_specs = [x_spec] + [pl.BlockSpec(a.shape, lambda i: (0, 0))
                           for a in args[1:]]
    return pl.pallas_call(
        functools.partial(_mhsa_kernel, n_heads=n_heads),
        out_shape=jax.ShapeDtypeStruct((b, t, d), x3d.dtype),
        grid=(b,),
        in_specs=in_specs,
        out_specs=x_spec,
        scratch_shapes=[pltpu.VMEM((t, 3 * d), jnp.bfloat16),   # staged QKV
                        pltpu.VMEM((t, d), jnp.bfloat16)],      # head contexts
        input_output_aliases={0: 0},
        compiler_params=_compiler_params(1),
    )(*args)


def _conv_module_kernel(x_ref, g_ref, bg_ref, w1_ref, b1_ref, dw_w_ref,
                        dw_b_ref, bn_s_ref, bn_b_ref, w2_ref, b2_ref,
                        o_ref, ypad_ref, *, ksize):
    _, t, d = x_ref.shape
    pad = (ksize - 1) // 2
    x = x_ref[0]                                       # bf16, kept for residual
    xf = x.astype(jnp.float32)
    mu = jnp.mean(xf, axis=-1, keepdims=True)
    var = jnp.mean(jnp.square(xf - mu), axis=-1, keepdims=True)
    xn = (xf - mu) * lax.rsqrt(var + _LN_EPS) * g_ref[...] + bg_ref[...]
    h = jnp.dot(xn.astype(w1_ref.dtype), w1_ref[...],
                preferred_element_type=jnp.float32) + b1_ref[...]
    y = h[:, :d] * jax.nn.sigmoid(h[:, d:])                         # GLU
    # Depthwise conv ("same"): zero ONLY the 2*pad halo rows (interior is fully
    # overwritten), read the padded slab back once and take per-tap
    # sublane-shifted views of the value (XLU shifts, no repeated slab vld).
    ypad_ref[0:pad, :] = jnp.zeros((pad, d), jnp.float32)
    ypad_ref[pad + t:pad + t + pad, :] = jnp.zeros((pad, d), jnp.float32)
    ypad_ref[pad:pad + t, :] = y
    ypad = ypad_ref[...]
    dw_w = dw_w_ref[...]
    acc = jnp.zeros((t, d), jnp.float32)
    for k_ in range(ksize):
        acc = acc + ypad[k_:k_ + t, :] * dw_w[k_:k_ + 1, :]
    acc = (acc + dw_b_ref[...]) * bn_s_ref[...] + bn_b_ref[...]     # BN (eval)
    acc = acc * jax.nn.sigmoid(acc)                                 # Swish
    out = jnp.dot(acc.astype(w2_ref.dtype), w2_ref[...],
                  preferred_element_type=jnp.float32) + b2_ref[...]
    o_ref[0] = (x.astype(jnp.float32) + out).astype(o_ref.dtype)    # residual


def pallas_conv_module(x3d, p, ksize):
    b, t, d = x3d.shape
    args = [x3d,
            p["ln_g"].reshape(1, d), p["ln_b"].reshape(1, d),
            p["pw1_w"], p["pw1_b"].reshape(1, 2 * d),
            p["dw_w"], p["dw_b"].reshape(1, d),
            p["bn_s"].reshape(1, d), p["bn_b"].reshape(1, d),
            p["pw2_w"], p["pw2_b"].reshape(1, d)]
    x_spec = pl.BlockSpec((1, t, d), lambda i: (i, 0, 0))
    in_specs = [x_spec] + [pl.BlockSpec(a.shape, lambda i: (0, 0))
                           for a in args[1:]]
    return pl.pallas_call(
        functools.partial(_conv_module_kernel, ksize=ksize),
        out_shape=jax.ShapeDtypeStruct((b, t, d), x3d.dtype),
        grid=(b,),
        in_specs=in_specs,
        out_specs=x_spec,
        scratch_shapes=[pltpu.VMEM((t + ksize - 1, d), jnp.float32)],
        input_output_aliases={0: 0},
        compiler_params=_compiler_params(1),
    )(*args)


# ----------------------------------------------------------------------------
# Input encoder front end (VGG subsampling).  Per the perf review the banded
# Pallas matmul formulation (~27x FLOP / O(W^2 C^2) weight blowup) is replaced
# by XLA's native conv + a reshape-max pool; only the projection is Pallas.
# TODO(synk): a Pallas 9-tap (Cin->Cout per (di,dj)) formulation on a
# channels-last layout could replace lax.conv here if desired.
# ----------------------------------------------------------------------------
def _conv3x3_relu(z, w, b):
    y = lax.conv_general_dilated(
        z, w.astype(z.dtype), window_strides=(1, 1), padding="SAME",
        dimension_numbers=("NHWC", "HWIO", "NHWC"),
        preferred_element_type=jnp.float32)
    return jnp.maximum(y + b, 0.0).astype(ACT_DTYPE)


def _maxpool2x2(z):
    b_, hh, ww, cc = z.shape
    return z.reshape(b_, hh // 2, 2, ww // 2, 2, cc).max(axis=(2, 4))


def input_encoder_apply(x, input_lens, p):
    # VGG-style subsampling (time and freq reduced 4x) + Pallas linear proj.
    bsz, t, f = x.shape
    h = x.reshape(bsz, t, f, 1).astype(ACT_DTYPE)
    h = _conv3x3_relu(h, p["w1"], p["b1"])
    h = _conv3x3_relu(h, p["w2"], p["b2"])
    h = _maxpool2x2(h)
    h = _conv3x3_relu(h, p["w3"], p["b3"])
    h = _conv3x3_relu(h, p["w4"], p["b4"])
    h = _maxpool2x2(h)
    t4, f4 = t // 4, f // 4
    c2 = h.shape[-1]
    out = pallas_linear(h.reshape(bsz * t4, f4 * c2), p["wp"], p["bp"])
    out_lens = input_lens // 4
    return out.reshape(bsz, t4, -1), out_lens


# ----------------------------------------------------------------------------
# Model glue
# ----------------------------------------------------------------------------
def conformer_block_apply(x3d, p, *, n_heads, conv_kernel_size):
    b, t, d = x3d.shape
    # FeedForward (half-step residual), fused LN->Linear->Swish->Linear.
    x2 = pallas_ffn(x3d.reshape(b * t, d), p["ff1"], 0.5)
    # Multi-head self-attention (residual fused).
    x3 = pallas_mhsa(x2.reshape(b, t, d), p["mhsa"], n_heads)
    # Convolution module (LN/pointwise/GLU/depthwise/BN/Swish/pointwise + res).
    x3 = pallas_conv_module(x3, p["conv"], conv_kernel_size)
    # FeedForward (half-step residual) + final block LayerNorm, fused.
    x2 = pallas_ffn(x3.reshape(b * t, d), p["ff2"], 0.5,
                    final_ln=(p["ln_g"], p["ln_b"]))
    return x2.reshape(b, t, d)


def conformer_encoder_apply(x, input_lens, params, *, n_heads,
                            conv_kernel_size):
    out, out_lens = input_encoder_apply(x, input_lens, params["input_enc"])
    for bp in params["blocks"]:
        out = conformer_block_apply(out, bp, n_heads=n_heads,
                                    conv_kernel_size=conv_kernel_size)
    return out, out_lens


# ----------------------------------------------------------------------------
# Deterministic parameter init (synthetic; shapes follow the module __init__)
# ----------------------------------------------------------------------------
def _dense(key, fan_in, fan_out):
    wk, bk = jax.random.split(key)
    s = float(fan_in) ** -0.5
    w = jax.random.uniform(wk, (fan_in, fan_out), jnp.float32, -s, s)
    b = jax.random.uniform(bk, (fan_out,), jnp.float32, -s, s)
    return w, b


def init_input_encoder(key, n_feats, embed_dim, c1, c2):
    k1, k2, k3, k4, k5 = jax.random.split(key, 5)

    def conv_init(k, cin, cout):
        kk, kb = jax.random.split(k)
        s = float(9 * cin) ** -0.5
        w = jax.random.uniform(kk, (3, 3, cin, cout), jnp.float32, -s, s)
        b = jax.random.uniform(kb, (cout,), jnp.float32, -s, s)
        return w, b

    w1, b1 = conv_init(k1, 1, c1)
    w2, b2 = conv_init(k2, c1, c1)
    w3, b3 = conv_init(k3, c1, c2)
    w4, b4 = conv_init(k4, c2, c2)
    wp, bp = _dense(k5, c2 * (n_feats // 4), embed_dim)
    return dict(w1=w1, b1=b1, w2=w2, b2=b2, w3=w3, b3=b3, w4=w4, b4=b4,
                wp=wp.astype(W_DTYPE), bp=bp)


def init_block(key, d, ff_expansion, ksize):
    ks = jax.random.split(key, 4)

    def ff(k):
        k1, k2 = jax.random.split(k)
        w1, b1 = _dense(k1, d, d * ff_expansion)
        w2, b2 = _dense(k2, d * ff_expansion, d)
        return dict(ln_g=jnp.ones(d), ln_b=jnp.zeros(d),
                    w1=w1.astype(W_DTYPE), b1=b1,
                    w2=w2.astype(W_DTYPE), b2=b2)

    def mhsa(k):
        kq, kk_, kv, ko = jax.random.split(k, 4)
        wq, bq = _dense(kq, d, d)
        wk, bk = _dense(kk_, d, d)
        wv, bv = _dense(kv, d, d)
        wo, bo = _dense(ko, d, d)
        return dict(ln_g=jnp.ones(d), ln_b=jnp.zeros(d),
                    wqkv=jnp.concatenate([wq, wk, wv], axis=1).astype(W_DTYPE),
                    bqkv=jnp.concatenate([bq, bk, bv]),
                    wo=wo.astype(W_DTYPE), bo=bo)

    def conv(k):
        k1, k2, k3 = jax.random.split(k, 3)
        pw1_w, pw1_b = _dense(k1, d, 2 * d)
        s = float(ksize) ** -0.5
        dw_w = jax.random.uniform(k2, (ksize, d), jnp.float32, -s, s)
        dw_b = jnp.zeros(d)
        pw2_w, pw2_b = _dense(k3, d, d)
        # BatchNorm1d eval-mode (torch defaults: gamma=1, beta=0, mean=0, var=1)
        gamma, beta = jnp.ones(d), jnp.zeros(d)
        rmean, rvar = jnp.zeros(d), jnp.ones(d)
        bn_s = gamma * lax.rsqrt(rvar + 1e-5)
        bn_b = beta - rmean * bn_s
        return dict(ln_g=jnp.ones(d), ln_b=jnp.zeros(d),
                    pw1_w=pw1_w.astype(W_DTYPE), pw1_b=pw1_b,
                    dw_w=dw_w, dw_b=dw_b, bn_s=bn_s, bn_b=bn_b,
                    pw2_w=pw2_w.astype(W_DTYPE), pw2_b=pw2_b)

    return dict(ff1=ff(ks[0]), mhsa=mhsa(ks[1]), conv=conv(ks[2]),
                ff2=ff(ks[3]), ln_g=jnp.ones(d), ln_b=jnp.zeros(d))


def init_params(key, *, n_feats, embed_dim, ff_expansion, n_encoders, ksize,
                vgg_c1, vgg_c2):
    k_enc, k_blocks = jax.random.split(key)
    block_keys = jax.random.split(k_blocks, n_encoders)
    return dict(
        input_enc=init_input_encoder(k_enc, n_feats, embed_dim, vgg_c1, vgg_c2),
        blocks=[init_block(k, embed_dim, ff_expansion, ksize)
                for k in block_keys])


# ----------------------------------------------------------------------------
if __name__ == "__main__":
    # Small demo config (module defaults: n_feats=80, embed_dim=256, 16 blocks,
    # kernel 31 — scaled down for a quick synthetic run).
    B, T, N_FEATS = 2, 16, 16
    EMBED_DIM = 32
    FF_EXPANSION = 4
    N_HEADS = 4
    CONV_KSIZE = 7
    N_ENCODERS = 2
    VGG_C1, VGG_C2 = 8, 16

    key = jax.random.PRNGKey(0)
    k_params, k_x = jax.random.split(key)
    params = init_params(k_params, n_feats=N_FEATS, embed_dim=EMBED_DIM,
                         ff_expansion=FF_EXPANSION, n_encoders=N_ENCODERS,
                         ksize=CONV_KSIZE, vgg_c1=VGG_C1, vgg_c2=VGG_C2)

    x = jax.random.normal(k_x, (B, T, N_FEATS), jnp.float32)
    input_lens = jnp.array([16, 12], dtype=jnp.int32)

    fwd = jax.jit(functools.partial(conformer_encoder_apply,
                                    n_heads=N_HEADS,
                                    conv_kernel_size=CONV_KSIZE))
    out, out_lens = fwd(x, input_lens, params)
    jax.block_until_ready((out, out_lens))
    assert out.shape == (B, T // 4, EMBED_DIM), out.shape
    assert out_lens.shape == (B,), out_lens.shape
    print("KERNEL_OK")
</pallas_src>

<mosaic_0001>
module attributes {stable_mosaic.version = 11 : i64} {
  func.func @_linear_kernel(%arg0: i32, %arg1: memref<8x64xbf16, #tpu.memory_space<vmem>>, %arg2: memref<64x32xbf16, #tpu.memory_space<vmem>>, %arg3: memref<1x32xf32, #tpu.memory_space<vmem>>, %arg4: memref<8x32xbf16, #tpu.memory_space<vmem>>) attributes {dimension_semantics = [#tpu.dimension_semantics<parallel>], iteration_bounds = array<i64: 1>, scalar_prefetch = 0 : i64, scratch_operands = 0 : i64, tpu.core_type = #tpu.core_type<tc>, window_params = [{transform_indices = @transform_0, window_bounds = array<i64: 8, 64>}, {pipeline_mode = #tpu.pipeline_mode<synchronous>, transform_indices = @transform_1, window_bounds = array<i64: 64, 32>}, {pipeline_mode = #tpu.pipeline_mode<synchronous>, transform_indices = @transform_2, window_bounds = array<i64: 1, 32>}, {transform_indices = @transform_3, window_bounds = array<i64: 8, 32>}]} {
    %c0 = arith.constant 0 : index
    %c0_0 = arith.constant 0 : index
    %0 = vector.load %arg1[%c0, %c0_0] : memref<8x64xbf16, #tpu.memory_space<vmem>>, vector<8x64xbf16>
    %c0_1 = arith.constant 0 : index
    %c0_2 = arith.constant 0 : index
    %1 = vector.load %arg2[%c0_1, %c0_2] : memref<64x32xbf16, #tpu.memory_space<vmem>>, vector<64x32xbf16>
    %cst = arith.constant dense<0.000000e+00> : vector<8x32xf32>
    %2 = tpu.matmul %0, %1, %cst {dimension_numbers = #tpu.dot_dimension_numbers<[1], [0], [0], [1], [0, 0, 1, 1], [], []>} : vector<8x64xbf16>, vector<64x32xbf16>, vector<8x32xf32> -> vector<8x32xf32>
    %c0_3 = arith.constant 0 : index
    %c0_4 = arith.constant 0 : index
    %3 = vector.load %arg3[%c0_3, %c0_4] : memref<1x32xf32, #tpu.memory_space<vmem>>, vector<1x32xf32>
    %4 = vector.broadcast %3 : vector<1x32xf32> to vector<8x32xf32>
    %5 = arith.addf %2, %4 : vector<8x32xf32>
    %6 = arith.truncf %5 : vector<8x32xf32> to vector<8x32xbf16>
    %c0_5 = arith.constant 0 : index
    %c0_6 = arith.constant 0 : index
    %7 = vector.load %arg4[%c0_5, %c0_6] : memref<8x32xbf16, #tpu.memory_space<vmem>>, vector<8x32xbf16>
    tpu.vector_store %arg4[%c0_5, %c0_6], %6 {strides = array<i32>} : memref<8x32xbf16, #tpu.memory_space<vmem>>, vector<8x32xbf16>,
    return
  }
  func.func @transform_0(%arg0: i32) -> (i32, i32) {
    %c0_i32 = arith.constant 0 : i32
    %c0_i32_0 = arith.constant 0 : i32
    return %arg0, %c0_i32 : i32, i32
  }
  func.func @transform_1(%arg0: i32) -> (i32, i32) {
    %c0_i32 = arith.constant 0 : i32
    %c0_i32_0 = arith.constant 0 : i32
    %c0_i32_1 = arith.constant 0 : i32
    return %c0_i32, %c0_i32_0 : i32, i32
  }
  func.func @transform_2(%arg0: i32) -> (i32, i32) {
    %c0_i32 = arith.constant 0 : i32
    %c0_i32_0 = arith.constant 0 : i32
    %c0_i32_1 = arith.constant 0 : i32
    return %c0_i32, %c0_i32_0 : i32, i32
  }
  func.func @transform_3(%arg0: i32) -> (i32, i32) {
    %c0_i32 = arith.constant 0 : i32
    %c0_i32_0 = arith.constant 0 : i32
    return %arg0, %c0_i32 : i32, i32
  }
}

module attributes {stable_mosaic.version = 11 : i64} {
  func.func @_ffn_kernel(%arg0: i32, %arg1: memref<8x32xbf16, #tpu.memory_space<vmem>>, %arg2: memref<1x32xf32, #tpu.memory_space<vmem>>, %arg3: memref<1x32xf32, #tpu.memory_space<vmem>>, %arg4: memref<32x128xbf16, #tpu.memory_space<vmem>>, %arg5: memref<1x128xf32, #tpu.memory_space<vmem>>, %arg6: memref<128x32xbf16, #tpu.memory_space<vmem>>, %arg7: memref<1x32xf32, #tpu.memory_space<vmem>>, %arg8: memref<8x32xbf16, #tpu.memory_space<vmem>>) attributes {dimension_semantics = [#tpu.dimension_semantics<parallel>], iteration_bounds = array<i64: 1>, scalar_prefetch = 0 : i64, scratch_operands = 0 : i64, tpu.core_type = #tpu.core_type<tc>, window_params = [{transform_indices = @transform_0, window_bounds = array<i64: 8, 32>}, {pipeline_mode = #tpu.pipeline_mode<synchronous>, transform_indices = @transform_1, window_bounds = array<i64: 1, 32>}, {pipeline_mode = #tpu.pipeline_mode<synchronous>, transform_indices = @transform_2, window_bounds = array<i64: 1, 32>}, {pipeline_mode = #tpu.pipeline_mode<synchronous>, transform_indices = @transform_3, window_bounds = array<i64: 32, 128>}, {pipeline_mode = #tpu.pipeline_mode<synchronous>, transform_indices = @transform_4, window_bounds = array<i64: 1, 128>}, {pipeline_mode = #tpu.pipeline_mode<synchronous>, transform_indices = @transform_5, window_bounds = array<i64: 128, 32>}, {pipeline_mode = #tpu.pipeline_mode<synchronous>, transform_indices = @transform_6, window_bounds = array<i64: 1, 32>}, {transform_indices = @transform_7, window_bounds = array<i64: 8, 32>}]} {
    %c0 = arith.constant 0 : index
    %c0_0 = arith.constant 0 : index
    %0 = vector.load %arg1[%c0, %c0_0] : memref<8x32xbf16, #tpu.memory_space<vmem>>, vector<8x32xbf16>
    %1 = arith.extf %0 : vector<8x32xbf16> to vector<8x32xf32>
    %cst = arith.constant dense<0.000000e+00> : vector<8xf32>
    %2 = vector.multi_reduction <add>, %1, %cst [1] : vector<8x32xf32> to vector<8xf32>
    %3 = vector.shape_cast %2 : vector<8xf32> to vector<8x1xf32>
    %cst_1 = arith.constant 3.200000e+01 : f32
    %4 = vector.broadcast %cst_1 : f32 to vector<8x1xf32>
    %5 = arith.divf %3, %4 : vector<8x1xf32>
    %6 = vector.broadcast %5 : vector<8x1xf32> to vector<8x32xf32>
    %7 = arith.subf %1, %6 : vector<8x32xf32>
    %8 = arith.mulf %7, %7 : vector<8x32xf32>
    %cst_2 = arith.constant dense<0.000000e+00> : vector<8xf32>
    %9 = vector.multi_reduction <add>, %8, %cst_2 [1] : vector<8x32xf32> to vector<8xf32>
    %10 = vector.shape_cast %9 : vector<8xf32> to vector<8x1xf32>
    %cst_3 = arith.constant 3.200000e+01 : f32
    %11 = vector.broadcast %cst_3 : f32 to vector<8x1xf32>
    %12 = arith.divf %10, %11 : vector<8x1xf32>
    %13 = vector.broadcast %5 : vector<8x1xf32> to vector<8x32xf32>
    %14 = arith.subf %1, %13 : vector<8x32xf32>
    %cst_4 = arith.constant 9.99999974E-6 : f32
    %15 = vector.broadcast %cst_4 : f32 to vector<8x1xf32>
    %16 = arith.addf %12, %15 : vector<8x1xf32>
    %17 = math.rsqrt %16 : vector<8x1xf32>
    %18 = vector.broadcast %17 : vector<8x1xf32> to vector<8x32xf32>
    %19 = arith.mulf %14, %18 : vector<8x32xf32>
    %c0_5 = arith.constant 0 : index
    %c0_6 = arith.constant 0 : index
    %20 = vector.load %arg2[%c0_5, %c0_6] : memref<1x32xf32, #tpu.memory_space<vmem>>, vector<1x32xf32>
    %21 = vector.broadcast %20 : vector<1x32xf32> to vector<8x32xf32>
    %22 = arith.mulf %19, %21 : vector<8x32xf32>
    %c0_7 = arith.constant 0 : index
    %c0_8 = arith.constant 0 : index
    %23 = vector.load %arg3[%c0_7, %c0_8] : memref<1x32xf32, #tpu.memory_space<vmem>>, vector<1x32xf32>
    %24 = vector.broadcast %23 : vector<1x32xf32> to vector<8x32xf32>
    %25 = arith.addf %22, %24 : vector<8x32xf32>
    %26 = arith.truncf %25 : vector<8x32xf32> to vector<8x32xbf16>
    %c0_9 = arith.constant 0 : index
    %c0_10 = arith.constant 0 : index
    %27 = vector.load %arg4[%c0_9, %c0_10] : memref<32x128xbf16, #tpu.memory_space<vmem>>, vector<32x128xbf16>
    %cst_11 = arith.constant dense<0.000000e+00> : vector<8x128xf32>
    %28 = tpu.matmul %26, %27, %cst_11 {dimension_numbers = #tpu.dot_dimension_numbers<[1], [0], [0], [1], [0, 0, 1, 1], [], []>} : vector<8x32xbf16>, vector<32x128xbf16>, vector<8x128xf32> -> vector<8x128xf32>
    %c0_12 = arith.constant 0 : index
    %c0_13 = arith.constant 0 : index
    %29 = vector.load %arg5[%c0_12, %c0_13] : memref<1x128xf32, #tpu.memory_space<vmem>>, vector<1x128xf32>
    %30 = vector.broadcast %29 : vector<1x128xf32> to vector<8x128xf32>
    %31 = arith.addf %28, %30 : vector<8x128xf32>
    %32 = arith.negf %31 : vector<8x128xf32>
    %33 = math.exp %32 : vector<8x128xf32>
    %cst_14 = arith.constant 1.000000e+00 : f32
    %34 = vector.broadcast %cst_14 : f32 to vector<8x128xf32>
    %35 = arith.addf %34, %33 : vector<8x128xf32>
    %36 = arith.divf %34, %35 : vector<8x128xf32>
    %37 = arith.mulf %31, %36 : vector<8x128xf32>
    %38 = arith.truncf %37 : vector<8x128xf32> to vector<8x128xbf16>
    %c0_15 = arith.constant 0 : index
    %c0_16 = arith.constant 0 : index
    %39 = vector.load %arg6[%c0_15, %c0_16] : memref<128x32xbf16, #tpu.memory_space<vmem>>, vector<128x32xbf16>
    %cst_17 = arith.constant dense<0.000000e+00> : vector<8x32xf32>
    %40 = tpu.matmul %38, %39, %cst_17 {dimension_numbers = #tpu.dot_dimension_numbers<[1], [0], [0], [1], [0, 0, 1, 1], [], []>} : vector<8x128xbf16>, vector<128x32xbf16>, vector<8x32xf32> -> vector<8x32xf32>
    %c0_18 = arith.constant 0 : index
    %c0_19 = arith.constant 0 : index
    %41 = vector.load %arg7[%c0_18, %c0_19] : memref<1x32xf32, #tpu.memory_space<vmem>>, vector<1x32xf32>
    %42 = vector.broadcast %41 : vector<1x32xf32> to vector<8x32xf32>
    %43 = arith.addf %40, %42 : vector<8x32xf32>
    %44 = arith.extf %0 : vector<8x32xbf16> to vector<8x32xf32>
    %cst_20 = arith.constant 5.000000e-01 : f32
    %45 = vector.broadcast %cst_20 : f32 to vector<8x32xf32>
    %46 = arith.mulf %45, %43 : vector<8x32xf32>
    %47 = arith.addf %44, %46 : vector<8x32xf32>
    %48 = arith.truncf %47 : vector<8x32xf32> to vector<8x32xbf16>
    %c0_21 = arith.constant 0 : index
    %c0_22 = arith.constant 0 : index
    %49 = vector.load %arg8[%c0_21, %c0_22] : memref<8x32xbf16, #tpu.memory_space<vmem>>, vector<8x32xbf16>
    tpu.vector_store %arg8[%c0_21, %c0_22], %48 {strides = array<i32>} : memref<8x32xbf16, #tpu.memory_space<vmem>>, vector<8x32xbf16>,
    return
  }
  func.func @transform_0(%arg0: i32) -> (i32, i32) {
    %c0_i32 = arith.constant 0 : i32
    %c0_i32_0 = arith.constant 0 : i32
    return %arg0, %c0_i32 : i32, i32
  }
  func.func @transform_1(%arg0: i32) -> (i32, i32) {
    %c0_i32 = arith.constant 0 : i32
    %c0_i32_0 = arith.constant 0 : i32
    %c0_i32_1 = arith.constant 0 : i32
    return %c0_i32, %c0_i32_0 : i32, i32
  }
  func.func @transform_2(%arg0: i32) -> (i32, i32) {
    %c0_i32 = arith.constant 0 : i32
    %c0_i32_0 = arith.constant 0 : i32
    %c0_i32_1 = arith.constant 0 : i32
    return %c0_i32, %c0_i32_0 : i32, i32
  }
  func.func @transform_3(%arg0: i32) -> (i32, i32) {
    %c0_i32 = arith.constant 0 : i32
    %c0_i32_0 = arith.constant 0 : i32
    %c0_i32_1 = arith.constant 0 : i32
    return %c0_i32, %c0_i32_0 : i32, i32
  }
  func.func @transform_4(%arg0: i32) -> (i32, i32) {
    %c0_i32 = arith.constant 0 : i32
    %c0_i32_0 = arith.constant 0 : i32
    %c0_i32_1 = arith.constant 0 : i32
    return %c0_i32, %c0_i32_0 : i32, i32
  }
  func.func @transform_5(%arg0: i32) -> (i32, i32) {
    %c0_i32 = arith.constant 0 : i32
    %c0_i32_0 = arith.constant 0 : i32
    %c0_i32_1 = arith.constant 0 : i32
    return %c0_i32, %c0_i32_0 : i32, i32
  }
  func.func @transform_6(%arg0: i32) -> (i32, i32) {
    %c0_i32 = arith.constant 0 : i32
    %c0_i32_0 = arith.constant 0 : i32
    %c0_i32_1 = arith.constant 0 : i32
    return %c0_i32, %c0_i32_0 : i32, i32
  }
  func.func @transform_7(%arg0: i32) -> (i32, i32) {
    %c0_i32 = arith.constant 0 : i32
    %c0_i32_0 = arith.constant 0 : i32
    return %arg0, %c0_i32 : i32, i32
  }
}

module attributes {stable_mosaic.version = 11 : i64} {
  func.func @_mhsa_kernel(%arg0: i32, %arg1: memref<1x4x32xbf16, #tpu.memory_space<vmem>>, %arg2: memref<1x32xf32, #tpu.memory_space<vmem>>, %arg3: memref<1x32xf32, #tpu.memory_space<vmem>>, %arg4: memref<32x96xbf16, #tpu.memory_space<vmem>>, %arg5: memref<1x96xf32, #tpu.memory_space<vmem>>, %arg6: memref<32x32xbf16, #tpu.memory_space<vmem>>, %arg7: memref<1x32xf32, #tpu.memory_space<vmem>>, %arg8: memref<1x4x32xbf16, #tpu.memory_space<vmem>>, %arg9: memref<4x96xbf16, #tpu.memory_space<vmem>>, %arg10: memref<4x32xbf16, #tpu.memory_space<vmem>>) attributes {dimension_semantics = [#tpu.dimension_semantics<parallel>], iteration_bounds = array<i64: 2>, scalar_prefetch = 0 : i64, scratch_operands = 2 : i64, tpu.core_type = #tpu.core_type<tc>, window_params = [{transform_indices = @transform_0, window_bounds = array<i64: 1, 4, 32>}, {pipeline_mode = #tpu.pipeline_mode<synchronous>, transform_indices = @transform_1, window_bounds = array<i64: 1, 32>}, {pipeline_mode = #tpu.pipeline_mode<synchronous>, transform_indices = @transform_2, window_bounds = array<i64: 1, 32>}, {pipeline_mode = #tpu.pipeline_mode<synchronous>, transform_indices = @transform_3, window_bounds = array<i64: 32, 96>}, {pipeline_mode = #tpu.pipeline_mode<synchronous>, transform_indices = @transform_4, window_bounds = array<i64: 1, 96>}, {pipeline_mode = #tpu.pipeline_mode<synchronous>, transform_indices = @transform_5, window_bounds = array<i64: 32, 32>}, {pipeline_mode = #tpu.pipeline_mode<synchronous>, transform_indices = @transform_6, window_bounds = array<i64: 1, 32>}, {transform_indices = @transform_7, window_bounds = array<i64: 1, 4, 32>}]} {
    %c0 = arith.constant 0 : index
    %c0_0 = arith.constant 0 : index
    %c0_1 = arith.constant 0 : index
    %0 = vector.load %arg1[%c0, %c0_0, %c0_1] : memref<1x4x32xbf16, #tpu.memory_space<vmem>>, vector<1x4x32xbf16>
    %1 = vector.shape_cast %0 : vector<1x4x32xbf16> to vector<4x32xbf16>
    %2 = arith.extf %1 : vector<4x32xbf16> to vector<4x32xf32>
    %cst = arith.constant dense<0.000000e+00> : vector<4xf32>
    %3 = vector.multi_reduction <add>, %2, %cst [1] : vector<4x32xf32> to vector<4xf32>
    %4 = vector.shape_cast %3 : vector<4xf32> to vector<4x1xf32>
    %cst_2 = arith.constant 3.200000e+01 : f32
    %5 = vector.broadcast %cst_2 : f32 to vector<4x1xf32>
    %6 = arith.divf %4, %5 : vector<4x1xf32>
    %7 = vector.broadcast %6 : vector<4x1xf32> to vector<4x32xf32>
    %8 = arith.subf %2, %7 : vector<4x32xf32>
    %9 = arith.mulf %8, %8 : vector<4x32xf32>
    %cst_3 = arith.constant dense<0.000000e+00> : vector<4xf32>
    %10 = vector.multi_reduction <add>, %9, %cst_3 [1] : vector<4x32xf32> to vector<4xf32>
    %11 = vector.shape_cast %10 : vector<4xf32> to vector<4x1xf32>
    %cst_4 = arith.constant 3.200000e+01 : f32
    %12 = vector.broadcast %cst_4 : f32 to vector<4x1xf32>
    %13 = arith.divf %11, %12 : vector<4x1xf32>
    %14 = vector.broadcast %6 : vector<4x1xf32> to vector<4x32xf32>
    %15 = arith.subf %2, %14 : vector<4x32xf32>
    %cst_5 = arith.constant 9.99999974E-6 : f32
    %16 = vector.broadcast %cst_5 : f32 to vector<4x1xf32>
    %17 = arith.addf %13, %16 : vector<4x1xf32>
    %18 = math.rsqrt %17 : vector<4x1xf32>
    %19 = vector.broadcast %18 : vector<4x1xf32> to vector<4x32xf32>
    %20 = arith.mulf %15, %19 : vector<4x32xf32>
    %c0_6 = arith.constant 0 : index
    %c0_7 = arith.constant 0 : index
    %21 = vector.load %arg2[%c0_6, %c0_7] : memref<1x32xf32, #tpu.memory_space<vmem>>, vector<1x32xf32>
    %22 = vector.broadcast %21 : vector<1x32xf32> to vector<4x32xf32>
    %23 = arith.mulf %20, %22 : vector<4x32xf32>
    %c0_8 = arith.constant 0 : index
    %c0_9 = arith.constant 0 : index
    %24 = vector.load %arg3[%c0_8, %c0_9] : memref<1x32xf32, #tpu.memory_space<vmem>>, vector<1x32xf32>
    %25 = vector.broadcast %24 : vector<1x32xf32> to vector<4x32xf32>
    %26 = arith.addf %23, %25 : vector<4x32xf32>
    %27 = arith.truncf %26 : vector<4x32xf32> to vector<4x32xbf16>
    %c0_10 = arith.constant 0 : index
    %c0_11 = arith.constant 0 : index
    %28 = vector.load %arg4[%c0_10, %c0_11] : memref<32x96xbf16, #tpu.memory_space<vmem>>, vector<32x96xbf16>
    %cst_12 = arith.constant dense<0.000000e+00> : vector<4x96xf32>
    %29 = tpu.matmul %27, %28, %cst_12 {dimension_numbers = #tpu.dot_dimension_numbers<[1], [0], [0], [1], [0, 0, 1, 1], [], []>} : vector<4x32xbf16>, vector<32x96xbf16>, vector<4x96xf32> -> vector<4x96xf32>
    %c0_13 = arith.constant 0 : index
    %c0_14 = arith.constant 0 : index
    %30 = vector.load %arg5[%c0_13, %c0_14] : memref<1x96xf32, #tpu.memory_space<vmem>>, vector<1x96xf32>
    %31 = vector.broadcast %30 : vector<1x96xf32> to vector<4x96xf32>
    %32 = arith.addf %29, %31 : vector<4x96xf32>
    %33 = arith.truncf %32 : vector<4x96xf32> to vector<4x96xbf16>
    %c0_15 = arith.constant 0 : index
    %c0_16 = arith.constant 0 : index
    %34 = vector.load %arg9[%c0_15, %c0_16] : memref<4x96xbf16, #tpu.memory_space<vmem>>, vector<4x96xbf16>
    tpu.vector_store %arg9[%c0_15, %c0_16], %33 {strides = array<i32>} : memref<4x96xbf16, #tpu.memory_space<vmem>>, vector<4x96xbf16>,
    %c0_17 = arith.constant 0 : index
    %c0_18 = arith.constant 0 : index
    %35 = vector.load %arg9[%c0_17, %c0_18] : memref<4x96xbf16, #tpu.memory_space<vmem>>, vector<4x8xbf16>
    %c0_19 = arith.constant 0 : index
    %c32 = arith.constant 32 : index
    %36 = vector.load %arg9[%c0_19, %c32] : memref<4x96xbf16, #tpu.memory_space<vmem>>, vector<4x8xbf16>
    %c0_20 = arith.constant 0 : index
    %c64 = arith.constant 64 : index
    %37 = vector.load %arg9[%c0_20, %c64] : memref<4x96xbf16, #tpu.memory_space<vmem>>, vector<4x8xbf16>
    %cst_21 = arith.constant dense<0.000000e+00> : vector<4x4xf32>
    %38 = tpu.matmul %35, %36, %cst_21 {dimension_numbers = #tpu.dot_dimension_numbers<[1], [1], [0], [0], [0, 0, 1, 0], [], []>} : vector<4x8xbf16>, vector<4x8xbf16>, vector<4x4xf32> -> vector<4x4xf32>
    %cst_22 = arith.constant 0.353553385 : f32
    %39 = vector.broadcast %cst_22 : f32 to vector<4x4xf32>
    %40 = arith.mulf %38, %39 : vector<4x4xf32>
    %cst_23 = arith.constant dense<0xFF800000> : vector<4xf32>
    %41 = vector.multi_reduction <maximumf>, %40, %cst_23 [1] : vector<4x4xf32> to vector<4xf32>
    %42 = vector.shape_cast %41 : vector<4xf32> to vector<4x1xf32>
    %43 = vector.broadcast %42 : vector<4x1xf32> to vector<4x4xf32>
    %44 = arith.subf %40, %43 : vector<4x4xf32>
    %45 = math.exp %44 : vector<4x4xf32>
    %cst_24 = arith.constant dense<0.000000e+00> : vector<4xf32>
    %46 = vector.multi_reduction <add>, %45, %cst_24 [1] : vector<4x4xf32> to vector<4xf32>
    %47 = vector.shape_cast %46 : vector<4xf32> to vector<4x1xf32>
    %48 = tpu.reciprocal %47 {approx = true} : vector<4x1xf32> -> vector<4x1xf32>
    %49 = vector.broadcast %48 : vector<4x1xf32> to vector<4x4xf32>
    %50 = arith.mulf %45, %49 : vector<4x4xf32>
    %51 = arith.truncf %50 : vector<4x4xf32> to vector<4x4xbf16>
    %cst_25 = arith.constant dense<0.000000e+00> : vector<4x8xf32>
    %52 = tpu.matmul %51, %37, %cst_25 {dimension_numbers = #tpu.dot_dimension_numbers<[1], [0], [0], [1], [0, 0, 1, 1], [], []>} : vector<4x4xbf16>, vector<4x8xbf16>, vector<4x8xf32> -> vector<4x8xf32>
    %53 = arith.truncf %52 : vector<4x8xf32> to vector<4x8xbf16>
    %c0_26 = arith.constant 0 : index
    %c0_27 = arith.constant 0 : index
    %54 = vector.load %arg10[%c0_26, %c0_27] : memref<4x32xbf16, #tpu.memory_space<vmem>>, vector<4x8xbf16>
    tpu.vector_store %arg10[%c0_26, %c0_27], %53 {strides = array<i32>} : memref<4x32xbf16, #tpu.memory_space<vmem>>, vector<4x8xbf16>,
    %c0_28 = arith.constant 0 : index
    %c8 = arith.constant 8 : index
    %55 = vector.load %arg9[%c0_28, %c8] : memref<4x96xbf16, #tpu.memory_space<vmem>>, vector<4x8xbf16>
    %c0_29 = arith.constant 0 : index
    %c40 = arith.constant 40 : index
    %56 = vector.load %arg9[%c0_29, %c40] : memref<4x96xbf16, #tpu.memory_space<vmem>>, vector<4x8xbf16>
    %c0_30 = arith.constant 0 : index
    %c72 = arith.constant 72 : index
    %57 = vector.load %arg9[%c0_30, %c72] : memref<4x96xbf16, #tpu.memory_space<vmem>>, vector<4x8xbf16>
    %cst_31 = arith.constant dense<0.000000e+00> : vector<4x4xf32>
    %58 = tpu.matmul %55, %56, %cst_31 {dimension_numbers = #tpu.dot_dimension_numbers<[1], [1], [0], [0], [0, 0, 1, 0], [], []>} : vector<4x8xbf16>, vector<4x8xbf16>, vector<4x4xf32> -> vector<4x4xf32>
    %cst_32 = arith.constant 0.353553385 : f32
    %59 = vector.broadcast %cst_32 : f32 to vector<4x4xf32>
    %60 = arith.mulf %58, %59 : vector<4x4xf32>
    %cst_33 = arith.constant dense<0xFF800000> : vector<4xf32>
    %61 = vector.multi_reduction <maximumf>, %60, %cst_33 [1] : vector<4x4xf32> to vector<4xf32>
    %62 = vector.shape_cast %61 : vector<4xf32> to vector<4x1xf32>
    %63 = vector.broadcast %62 : vector<4x1xf32> to vector<4x4xf32>
    %64 = arith.subf %60, %63 : vector<4x4xf32>
    %65 = math.exp %64 : vector<4x4xf32>
    %cst_34 = arith.constant dense<0.000000e+00> : vector<4xf32>
    %66 = vector.multi_reduction <add>, %65, %cst_34 [1] : vector<4x4xf32> to vector<4xf32>
    %67 = vector.shape_cast %66 : vector<4xf32> to vector<4x1xf32>
    %68 = tpu.reciprocal %67 {approx = true} : vector<4x1xf32> -> vector<4x1xf32>
    %69 = vector.broadcast %68 : vector<4x1xf32> to vector<4x4xf32>
    %70 = arith.mulf %65, %69 : vector<4x4xf32>
    %71 = arith.truncf %70 : vector<4x4xf32> to vector<4x4xbf16>
    %cst_35 = arith.constant dense<0.000000e+00> : vector<4x8xf32>
    %72 = tpu.matmul %71, %57, %cst_35 {dimension_numbers = #tpu.dot_dimension_numbers<[1], [0], [0], [1], [0, 0, 1, 1], [], []>} : vector<4x4xbf16>, vector<4x8xbf16>, vector<4x8xf32> -> vector<4x8xf32>
    %73 = arith.truncf %72 : vector<4x8xf32> to vector<4x8xbf16>
    %c0_36 = arith.constant 0 : index
    %c8_37 = arith.constant 8 : index
    %74 = vector.load %arg10[%c0_36, %c8_37] : memref<4x32xbf16, #tpu.memory_space<vmem>>, vector<4x8xbf16>
    tpu.vector_store %arg10[%c0_36, %c8_37], %73 {strides = array<i32>} : memref<4x32xbf16, #tpu.memory_space<vmem>>, vector<4x8xbf16>,
    %c0_38 = arith.constant 0 : index
    %c16 = arith.constant 16 : index
    %75 = vector.load %arg9[%c0_38, %c16] : memref<4x96xbf16, #tpu.memory_space<vmem>>, vector<4x8xbf16>
    %c0_39 = arith.constant 0 : index
    %c48 = arith.constant 48 : index
    %76 = vector.load %arg9[%c0_39, %c48] : memref<4x96xbf16, #tpu.memory_space<vmem>>, vector<4x8xbf16>
    %c0_40 = arith.constant 0 : index
    %c80 = arith.constant 80 : index
    %77 = vector.load %arg9[%c0_40, %c80] : memref<4x96xbf16, #tpu.memory_space<vmem>>, vector<4x8xbf16>
    %cst_41 = arith.constant dense<0.000000e+00> : vector<4x4xf32>
    %78 = tpu.matmul %75, %76, %cst_41 {dimension_numbers = #tpu.dot_dimension_numbers<[1], [1], [0], [0], [0, 0, 1, 0], [], []>} : vector<4x8xbf16>, vector<4x8xbf16>, vector<4x4xf32> -> vector<4x4xf32>
    %cst_42 = arith.constant 0.353553385 : f32
    %79 = vector.broadcast %cst_42 : f32 to vector<4x4xf32>
    %80 = arith.mulf %78, %79 : vector<4x4xf32>
    %cst_43 = arith.constant dense<0xFF800000> : vector<4xf32>
    %81 = vector.multi_reduction <maximumf>, %80, %cst_43 [1] : vector<4x4xf32> to vector<4xf32>
    %82 = vector.shape_cast %81 : vector<4xf32> to vector<4x1xf32>
    %83 = vector.broadcast %82 : vector<4x1xf32> to vector<4x4xf32>
    %84 = arith.subf %80, %83 : vector<4x4xf32>
    %85 = math.exp %84 : vector<4x4xf32>
    %cst_44 = arith.constant dense<0.000000e+00> : vector<4xf32>
    %86 = vector.multi_reduction <add>, %85, %cst_44 [1] : vector<4x4xf32> to vector<4xf32>
    %87 = vector.shape_cast %86 : vector<4xf32> to vector<4x1xf32>
    %88 = tpu.reciprocal %87 {approx = true} : vector<4x1xf32> -> vector<4x1xf32>
    %89 = vector.broadcast %88 : vector<4x1xf32> to vector<4x4xf32>
    %90 = arith.mulf %85, %89 : vector<4x4xf32>
    %91 = arith.truncf %90 : vector<4x4xf32> to vector<4x4xbf16>
    %cst_45 = arith.constant dense<0.000000e+00> : vector<4x8xf32>
    %92 = tpu.matmul %91, %77, %cst_45 {dimension_numbers = #tpu.dot_dimension_numbers<[1], [0], [0], [1], [0, 0, 1, 1], [], []>} : vector<4x4xbf16>, vector<4x8xbf16>, vector<4x8xf32> -> vector<4x8xf32>
    %93 = arith.truncf %92 : vector<4x8xf32> to vector<4x8xbf16>
    %c0_46 = arith.constant 0 : index
    %c16_47 = arith.constant 16 : index
    %94 = vector.load %arg10[%c0_46, %c16_47] : memref<4x32xbf16, #tpu.memory_space<vmem>>, vector<4x8xbf16>
    tpu.vector_store %arg10[%c0_46, %c16_47], %93 {strides = array<i32>} : memref<4x32xbf16, #tpu.memory_space<vmem>>, vector<4x8xbf16>,
    %c0_48 = arith.constant 0 : index
    %c24 = arith.constant 24 : index
    %95 = vector.load %arg9[%c0_48, %c24] : memref<4x96xbf16, #tpu.memory_space<vmem>>, vector<4x8xbf16>
    %c0_49 = arith.constant 0 : index
    %c56 = arith.constant 56 : index
    %96 = vector.load %arg9[%c0_49, %c56] : memref<4x96xbf16, #tpu.memory_space<vmem>>, vector<4x8xbf16>
    %c0_50 = arith.constant 0 : index
    %c88 = arith.constant 88 : index
    %97 = vector.load %arg9[%c0_50, %c88] : memref<4x96xbf16, #tpu.memory_space<vmem>>, vector<4x8xbf16>
    %cst_51 = arith.constant dense<0.000000e+00> : vector<4x4xf32>
    %98 = tpu.matmul %95, %96, %cst_51 {dimension_numbers = #tpu.dot_dimension_numbers<[1], [1], [0], [0], [0, 0, 1, 0], [], []>} : vector<4x8xbf16>, vector<4x8xbf16>, vector<4x4xf32> -> vector<4x4xf32>
    %cst_52 = arith.constant 0.353553385 : f32
    %99 = vector.broadcast %cst_52 : f32 to vector<4x4xf32>
    %100 = arith.mulf %98, %99 : vector<4x4xf32>
    %cst_53 = arith.constant dense<0xFF800000> : vector<4xf32>
    %101 = vector.multi_reduction <maximumf>, %100, %cst_53 [1] : vector<4x4xf32> to vector<4xf32>
    %102 = vector.shape_cast %101 : vector<4xf32> to vector<4x1xf32>
    %103 = vector.broadcast %102 : vector<4x1xf32> to vector<4x4xf32>
    %104 = arith.subf %100, %103 : vector<4x4xf32>
    %105 = math.exp %104 : vector<4x4xf32>
    %cst_54 = arith.constant dense<0.000000e+00> : vector<4xf32>
    %106 = vector.multi_reduction <add>, %105, %cst_54 [1] : vector<4x4xf32> to vector<4xf32>
    %107 = vector.shape_cast %106 : vector<4xf32> to vector<4x1xf32>
    %108 = tpu.reciprocal %107 {approx = true} : vector<4x1xf32> -> vector<4x1xf32>
    %109 = vector.broadcast %108 : vector<4x1xf32> to vector<4x4xf32>
    %110 = arith.mulf %105, %109 : vector<4x4xf32>
    %111 = arith.truncf %110 : vector<4x4xf32> to vector<4x4xbf16>
    %cst_55 = arith.constant dense<0.000000e+00> : vector<4x8xf32>
    %112 = tpu.matmul %111, %97, %cst_55 {dimension_numbers = #tpu.dot_dimension_numbers<[1], [0], [0], [1], [0, 0, 1, 1], [], []>} : vector<4x4xbf16>, vector<4x8xbf16>, vector<4x8xf32> -> vector<4x8xf32>
    %113 = arith.truncf %112 : vector<4x8xf32> to vector<4x8xbf16>
    %c0_56 = arith.constant 0 : index
    %c24_57 = arith.constant 24 : index
    %114 = vector.load %arg10[%c0_56, %c24_57] : memref<4x32xbf16, #tpu.memory_space<vmem>>, vector<4x8xbf16>
    tpu.vector_store %arg10[%c0_56, %c24_57], %113 {strides = array<i32>} : memref<4x32xbf16, #tpu.memory_space<vmem>>, vector<4x8xbf16>,
    %c0_58 = arith.constant 0 : index
    %c0_59 = arith.constant 0 : index
    %115 = vector.load %arg10[%c0_58, %c0_59] : memref<4x32xbf16, #tpu.memory_space<vmem>>, vector<4x32xbf16>
    %c0_60 = arith.constant 0 : index
    %c0_61 = arith.constant 0 : index
    %116 = vector.load %arg6[%c0_60, %c0_61] : memref<32x32xbf16, #tpu.memory_space<vmem>>, vector<32x32xbf16>
    %cst_62 = arith.constant dense<0.000000e+00> : vector<4x32xf32>
    %117 = tpu.matmul %115, %116, %cst_62 {dimension_numbers = #tpu.dot_dimension_numbers<[1], [0], [0], [1], [0, 0, 1, 1], [], []>} : vector<4x32xbf16>, vector<32x32xbf16>, vector<4x32xf32> -> vector<4x32xf32>
    %c0_63 = arith.constant 0 : index
    %c0_64 = arith.constant 0 : index
    %118 = vector.load %arg7[%c0_63, %c0_64] : memref<1x32xf32, #tpu.memory_space<vmem>>, vector<1x32xf32>
    %119 = vector.broadcast %118 : vector<1x32xf32> to vector<4x32xf32>
    %120 = arith.addf %117, %119 : vector<4x32xf32>
    %121 = arith.extf %1 : vector<4x32xbf16> to vector<4x32xf32>
    %122 = arith.addf %121, %120 : vector<4x32xf32>
    %123 = arith.truncf %122 : vector<4x32xf32> to vector<4x32xbf16>
    %c0_65 = arith.constant 0 : index
    %c0_66 = arith.constant 0 : index
    %c0_67 = arith.constant 0 : index
    %124 = vector.load %arg8[%c0_65, %c0_66, %c0_67] : memref<1x4x32xbf16, #tpu.memory_space<vmem>>, vector<1x4x32xbf16>
    %125 = vector.shape_cast %124 : vector<1x4x32xbf16> to vector<4x32xbf16>
    %126 = vector.shape_cast %123 : vector<4x32xbf16> to vector<1x4x32xbf16>
    tpu.vector_store %arg8[%c0_65, %c0_66, %c0_67], %126 {strides = array<i32>} : memref<1x4x32xbf16, #tpu.memory_space<vmem>>, vector<1x4x32xbf16>,
    return
  }
  func.func @transform_0(%arg0: i32) -> (i32, i32, i32) {
    %c0_i32 = arith.constant 0 : i32
    %c0_i32_0 = arith.constant 0 : i32
    %c0_i32_1 = arith.constant 0 : i32
    return %arg0, %c0_i32, %c0_i32_0 : i32, i32, i32
  }
  func.func @transform_1(%arg0: i32) -> (i32, i32) {
    %c0_i32 = arith.constant 0 : i32
    %c0_i32_0 = arith.constant 0 : i32
    %c0_i32_1 = arith.constant 0 : i32
    return %c0_i32, %c0_i32_0 : i32, i32
  }
  func.func @transform_2(%arg0: i32) -> (i32, i32) {
    %c0_i32 = arith.constant 0 : i32
    %c0_i32_0 = arith.constant 0 : i32
    %c0_i32_1 = arith.constant 0 : i32
    return %c0_i32, %c0_i32_0 : i32, i32
  }
  func.func @transform_3(%arg0: i32) -> (i32, i32) {
    %c0_i32 = arith.constant 0 : i32
    %c0_i32_0 = arith.constant 0 : i32
    %c0_i32_1 = arith.constant 0 : i32
    return %c0_i32, %c0_i32_0 : i32, i32
  }
  func.func @transform_4(%arg0: i32) -> (i32, i32) {
    %c0_i32 = arith.constant 0 : i32
    %c0_i32_0 = arith.constant 0 : i32
    %c0_i32_1 = arith.constant 0 : i32
    return %c0_i32, %c0_i32_0 : i32, i32
  }
  func.func @transform_5(%arg0: i32) -> (i32, i32) {
    %c0_i32 = arith.constant 0 : i32
    %c0_i32_0 = arith.constant 0 : i32
    %c0_i32_1 = arith.constant 0 : i32
    return %c0_i32, %c0_i32_0 : i32, i32
  }
  func.func @transform_6(%arg0: i32) -> (i32, i32) {
    %c0_i32 = arith.constant 0 : i32
    %c0_i32_0 = arith.constant 0 : i32
    %c0_i32_1 = arith.constant 0 : i32
    return %c0_i32, %c0_i32_0 : i32, i32
  }
  func.func @transform_7(%arg0: i32) -> (i32, i32, i32) {
    %c0_i32 = arith.constant 0 : i32
    %c0_i32_0 = arith.constant 0 : i32
    %c0_i32_1 = arith.constant 0 : i32
    return %arg0, %c0_i32, %c0_i32_0 : i32, i32, i32
  }
}

module attributes {stable_mosaic.version = 11 : i64} {
  func.func @_conv_module_kernel(%arg0: i32, %arg1: memref<1x4x32xbf16, #tpu.memory_space<vmem>>, %arg2: memref<1x32xf32, #tpu.memory_space<vmem>>, %arg3: memref<1x32xf32, #tpu.memory_space<vmem>>, %arg4: memref<32x64xbf16, #tpu.memory_space<vmem>>, %arg5: memref<1x64xf32, #tpu.memory_space<vmem>>, %arg6: memref<7x32xf32, #tpu.memory_space<vmem>>, %arg7: memref<1x32xf32, #tpu.memory_space<vmem>>, %arg8: memref<1x32xf32, #tpu.memory_space<vmem>>, %arg9: memref<1x32xf32, #tpu.memory_space<vmem>>, %arg10: memref<32x32xbf16, #tpu.memory_space<vmem>>, %arg11: memref<1x32xf32, #tpu.memory_space<vmem>>, %arg12: memref<1x4x32xbf16, #tpu.memory_space<vmem>>, %arg13: memref<10x32xf32, #tpu.memory_space<vmem>>) attributes {dimension_semantics = [#tpu.dimension_semantics<parallel>], iteration_bounds = array<i64: 2>, scalar_prefetch = 0 : i64, scratch_operands = 1 : i64, tpu.core_type = #tpu.core_type<tc>, window_params = [{transform_indices = @transform_0, window_bounds = array<i64: 1, 4, 32>}, {pipeline_mode = #tpu.pipeline_mode<synchronous>, transform_indices = @transform_1, window_bounds = array<i64: 1, 32>}, {pipeline_mode = #tpu.pipeline_mode<synchronous>, transform_indices = @transform_2, window_bounds = array<i64: 1, 32>}, {pipeline_mode = #tpu.pipeline_mode<synchronous>, transform_indices = @transform_3, window_bounds = array<i64: 32, 64>}, {pipeline_mode = #tpu.pipeline_mode<synchronous>, transform_indices = @transform_4, window_bounds = array<i64: 1, 64>}, {pipeline_mode = #tpu.pipeline_mode<synchronous>, transform_indices = @transform_5, window_bounds = array<i64: 7, 32>}, {pipeline_mode = #tpu.pipeline_mode<synchronous>, transform_indices = @transform_6, window_bounds = array<i64: 1, 32>}, {pipeline_mode = #tpu.pipeline_mode<synchronous>, transform_indices = @transform_7, window_bounds = array<i64: 1, 32>}, {pipeline_mode = #tpu.pipeline_mode<synchronous>, transform_indices = @transform_8, window_bounds = array<i64: 1, 32>}, {pipeline_mode = #tpu.pipeline_mode<synchronous>, transform_indices = @transform_9, window_bounds = array<i64: 32, 32>}, {pipeline_mode = #tpu.pipeline_mode<synchronous>, transform_indices = @transform_10, window_bounds = array<i64: 1, 32>}, {transform_indices = @transform_11, window_bounds = array<i64: 1, 4, 32>}]} {
    %c0 = arith.constant 0 : index
    %c0_0 = arith.constant 0 : index
    %c0_1 = arith.constant 0 : index
    %0 = vector.load %arg1[%c0, %c0_0, %c0_1] : memref<1x4x32xbf16, #tpu.memory_space<vmem>>, vector<1x4x32xbf16>
    %1 = vector.shape_cast %0 : vector<1x4x32xbf16> to vector<4x32xbf16>
    %2 = arith.extf %1 : vector<4x32xbf16> to vector<4x32xf32>
    %cst = arith.constant dense<0.000000e+00> : vector<4xf32>
    %3 = vector.multi_reduction <add>, %2, %cst [1] : vector<4x32xf32> to vector<4xf32>
    %4 = vector.shape_cast %3 : vector<4xf32> to vector<4x1xf32>
    %cst_2 = arith.constant 3.200000e+01 : f32
    %5 = vector.broadcast %cst_2 : f32 to vector<4x1xf32>
    %6 = arith.divf %4, %5 : vector<4x1xf32>
    %7 = vector.broadcast %6 : vector<4x1xf32> to vector<4x32xf32>
    %8 = arith.subf %2, %7 : vector<4x32xf32>
    %9 = arith.mulf %8, %8 : vector<4x32xf32>
    %cst_3 = arith.constant dense<0.000000e+00> : vector<4xf32>
    %10 = vector.multi_reduction <add>, %9, %cst_3 [1] : vector<4x32xf32> to vector<4xf32>
    %11 = vector.shape_cast %10 : vector<4xf32> to vector<4x1xf32>
    %cst_4 = arith.constant 3.200000e+01 : f32
    %12 = vector.broadcast %cst_4 : f32 to vector<4x1xf32>
    %13 = arith.divf %11, %12 : vector<4x1xf32>
    %14 = vector.broadcast %6 : vector<4x1xf32> to vector<4x32xf32>
    %15 = arith.subf %2, %14 : vector<4x32xf32>
    %cst_5 = arith.constant 9.99999974E-6 : f32
    %16 = vector.broadcast %cst_5 : f32 to vector<4x1xf32>
    %17 = arith.addf %13, %16 : vector<4x1xf32>
    %18 = math.rsqrt %17 : vector<4x1xf32>
    %19 = vector.broadcast %18 : vector<4x1xf32> to vector<4x32xf32>
    %20 = arith.mulf %15, %19 : vector<4x32xf32>
    %c0_6 = arith.constant 0 : index
    %c0_7 = arith.constant 0 : index
    %21 = vector.load %arg2[%c0_6, %c0_7] : memref<1x32xf32, #tpu.memory_space<vmem>>, vector<1x32xf32>
    %22 = vector.broadcast %21 : vector<1x32xf32> to vector<4x32xf32>
    %23 = arith.mulf %20, %22 : vector<4x32xf32>
    %c0_8 = arith.constant 0 : index
    %c0_9 = arith.constant 0 : index
    %24 = vector.load %arg3[%c0_8, %c0_9] : memref<1x32xf32, #tpu.memory_space<vmem>>, vector<1x32xf32>
    %25 = vector.broadcast %24 : vector<1x32xf32> to vector<4x32xf32>
    %26 = arith.addf %23, %25 : vector<4x32xf32>
    %27 = arith.truncf %26 : vector<4x32xf32> to vector<4x32xbf16>
    %c0_10 = arith.constant 0 : index
    %c0_11 = arith.constant 0 : index
    %28 = vector.load %arg4[%c0_10, %c0_11] : memref<32x64xbf16, #tpu.memory_space<vmem>>, vector<32x64xbf16>
    %cst_12 = arith.constant dense<0.000000e+00> : vector<4x64xf32>
    %29 = tpu.matmul %27, %28, %cst_12 {dimension_numbers = #tpu.dot_dimension_numbers<[1], [0], [0], [1], [0, 0, 1, 1], [], []>} : vector<4x32xbf16>, vector<32x64xbf16>, vector<4x64xf32> -> vector<4x64xf32>
    %c0_13 = arith.constant 0 : index
    %c0_14 = arith.constant 0 : index
    %30 = vector.load %arg5[%c0_13, %c0_14] : memref<1x64xf32, #tpu.memory_space<vmem>>, vector<1x64xf32>
    %31 = vector.broadcast %30 : vector<1x64xf32> to vector<4x64xf32>
    %32 = arith.addf %29, %31 : vector<4x64xf32>
    %33 = vector.extract_strided_slice %32 {offsets = [0, 0], sizes = [4, 32], strides = [1, 1]} : vector<4x64xf32> to vector<4x32xf32>
    %34 = vector.extract_strided_slice %32 {offsets = [0, 32], sizes = [4, 32], strides = [1, 1]} : vector<4x64xf32> to vector<4x32xf32>
    %35 = arith.negf %34 : vector<4x32xf32>
    %36 = math.exp %35 : vector<4x32xf32>
    %cst_15 = arith.constant 1.000000e+00 : f32
    %37 = vector.broadcast %cst_15 : f32 to vector<4x32xf32>
    %38 = arith.addf %37, %36 : vector<4x32xf32>
    %39 = arith.divf %37, %38 : vector<4x32xf32>
    %40 = arith.mulf %33, %39 : vector<4x32xf32>
    %cst_16 = arith.constant 0.000000e+00 : f32
    %41 = vector.broadcast %cst_16 : f32 to vector<3x32xf32>
    %c0_17 = arith.constant 0 : index
    %c0_18 = arith.constant 0 : index
    %42 = vector.load %arg13[%c0_17, %c0_18] : memref<10x32xf32, #tpu.memory_space<vmem>>, vector<3x32xf32>
    tpu.vector_store %arg13[%c0_17, %c0_18], %41 {strides = array<i32>} : memref<10x32xf32, #tpu.memory_space<vmem>>, vector<3x32xf32>,
    %cst_19 = arith.constant 0.000000e+00 : f32
    %43 = vector.broadcast %cst_19 : f32 to vector<3x32xf32>
    %c7 = arith.constant 7 : index
    %c0_20 = arith.constant 0 : index
    %44 = vector.load %arg13[%c7, %c0_20] : memref<10x32xf32, #tpu.memory_space<vmem>>, vector<3x32xf32>
    tpu.vector_store %arg13[%c7, %c0_20], %43 {strides = array<i32>} : memref<10x32xf32, #tpu.memory_space<vmem>>, vector<3x32xf32>,
    %c3 = arith.constant 3 : index
    %c0_21 = arith.constant 0 : index
    %45 = vector.load %arg13[%c3, %c0_21] : memref<10x32xf32, #tpu.memory_space<vmem>>, vector<4x32xf32>
    tpu.vector_store %arg13[%c3, %c0_21], %40 {strides = array<i32>} : memref<10x32xf32, #tpu.memory_space<vmem>>, vector<4x32xf32>,
    %c0_22 = arith.constant 0 : index
    %c0_23 = arith.constant 0 : index
    %46 = vector.load %arg13[%c0_22, %c0_23] : memref<10x32xf32, #tpu.memory_space<vmem>>, vector<10x32xf32>
    %c0_24 = arith.constant 0 : index
    %c0_25 = arith.constant 0 : index
    %47 = vector.load %arg6[%c0_24, %c0_25] : memref<7x32xf32, #tpu.memory_space<vmem>>, vector<7x32xf32>
    %cst_26 = arith.constant 0.000000e+00 : f32
    %48 = vector.broadcast %cst_26 : f32 to vector<4x32xf32>
    %49 = vector.extract_strided_slice %46 {offsets = [0, 0], sizes = [4, 32], strides = [1, 1]} : vector<10x32xf32> to vector<4x32xf32>
    %50 = vector.extract_strided_slice %47 {offsets = [0, 0], sizes = [1, 32], strides = [1, 1]} : vector<7x32xf32> to vector<1x32xf32>
    %51 = vector.broadcast %50 : vector<1x32xf32> to vector<4x32xf32>
    %52 = arith.mulf %49, %51 : vector<4x32xf32>
    %53 = arith.addf %48, %52 : vector<4x32xf32>
    %54 = vector.extract_strided_slice %46 {offsets = [1, 0], sizes = [4, 32], strides = [1, 1]} : vector<10x32xf32> to vector<4x32xf32>
    %55 = vector.extract_strided_slice %47 {offsets = [1, 0], sizes = [1, 32], strides = [1, 1]} : vector<7x32xf32> to vector<1x32xf32>
    %56 = vector.broadcast %55 : vector<1x32xf32> to vector<4x32xf32>
    %57 = arith.mulf %54, %56 : vector<4x32xf32>
    %58 = arith.addf %53, %57 : vector<4x32xf32>
    %59 = vector.extract_strided_slice %46 {offsets = [2, 0], sizes = [4, 32], strides = [1, 1]} : vector<10x32xf32> to vector<4x32xf32>
    %60 = vector.extract_strided_slice %47 {offsets = [2, 0], sizes = [1, 32], strides = [1, 1]} : vector<7x32xf32> to vector<1x32xf32>
    %61 = vector.broadcast %60 : vector<1x32xf32> to vector<4x32xf32>
    %62 = arith.mulf %59, %61 : vector<4x32xf32>
    %63 = arith.addf %58, %62 : vector<4x32xf32>
    %64 = vector.extract_strided_slice %46 {offsets = [3, 0], sizes = [4, 32], strides = [1, 1]} : vector<10x32xf32> to vector<4x32xf32>
    %65 = vector.extract_strided_slice %47 {offsets = [3, 0], sizes = [1, 32], strides = [1, 1]} : vector<7x32xf32> to vector<1x32xf32>
    %66 = vector.broadcast %65 : vector<1x32xf32> to vector<4x32xf32>
    %67 = arith.mulf %64, %66 : vector<4x32xf32>
    %68 = arith.addf %63, %67 : vector<4x32xf32>
    %69 = vector.extract_strided_slice %46 {offsets = [4, 0], sizes = [4, 32], strides = [1, 1]} : vector<10x32xf32> to vector<4x32xf32>
    %70 = vector.extract_strided_slice %47 {offsets = [4, 0], sizes = [1, 32], strides = [1, 1]} : vector<7x32xf32> to vector<1x32xf32>
    %71 = vector.broadcast %70 : vector<1x32xf32> to vector<4x32xf32>
    %72 = arith.mulf %69, %71 : vector<4x32xf32>
    %73 = arith.addf %68, %72 : vector<4x32xf32>
    %74 = vector.extract_strided_slice %46 {offsets = [5, 0], sizes = [4, 32], strides = [1, 1]} : vector<10x32xf32> to vector<4x32xf32>
    %75 = vector.extract_strided_slice %47 {offsets = [5, 0], sizes = [1, 32], strides = [1, 1]} : vector<7x32xf32> to vector<1x32xf32>
    %76 = vector.broadcast %75 : vector<1x32xf32> to vector<4x32xf32>
    %77 = arith.mulf %74, %76 : vector<4x32xf32>
    %78 = arith.addf %73, %77 : vector<4x32xf32>
    %79 = vector.extract_strided_slice %46 {offsets = [6, 0], sizes = [4, 32], strides = [1, 1]} : vector<10x32xf32> to vector<4x32xf32>
    %80 = vector.extract_strided_slice %47 {offsets = [6, 0], sizes = [1, 32], strides = [1, 1]} : vector<7x32xf32> to vector<1x32xf32>
    %81 = vector.broadcast %80 : vector<1x32xf32> to vector<4x32xf32>
    %82 = arith.mulf %79, %81 : vector<4x32xf32>
    %83 = arith.addf %78, %82 : vector<4x32xf32>
    %c0_27 = arith.constant 0 : index
    %c0_28 = arith.constant 0 : index
    %84 = vector.load %arg7[%c0_27, %c0_28] : memref<1x32xf32, #tpu.memory_space<vmem>>, vector<1x32xf32>
    %85 = vector.broadcast %84 : vector<1x32xf32> to vector<4x32xf32>
    %86 = arith.addf %83, %85 : vector<4x32xf32>
    %c0_29 = arith.constant 0 : index
    %c0_30 = arith.constant 0 : index
    %87 = vector.load %arg8[%c0_29, %c0_30] : memref<1x32xf32, #tpu.memory_space<vmem>>, vector<1x32xf32>
    %88 = vector.broadcast %87 : vector<1x32xf32> to vector<4x32xf32>
    %89 = arith.mulf %86, %88 : vector<4x32xf32>
    %c0_31 = arith.constant 0 : index
    %c0_32 = arith.constant 0 : index
    %90 = vector.load %arg9[%c0_31, %c0_32] : memref<1x32xf32, #tpu.memory_space<vmem>>, vector<1x32xf32>
    %91 = vector.broadcast %90 : vector<1x32xf32> to vector<4x32xf32>
    %92 = arith.addf %89, %91 : vector<4x32xf32>
    %93 = arith.negf %92 : vector<4x32xf32>
    %94 = math.exp %93 : vector<4x32xf32>
    %cst_33 = arith.constant 1.000000e+00 : f32
    %95 = vector.broadcast %cst_33 : f32 to vector<4x32xf32>
    %96 = arith.addf %95, %94 : vector<4x32xf32>
    %97 = arith.divf %95, %96 : vector<4x32xf32>
    %98 = arith.mulf %92, %97 : vector<4x32xf32>
    %99 = arith.truncf %98 : vector<4x32xf32> to vector<4x32xbf16>
    %c0_34 = arith.constant 0 : index
    %c0_35 = arith.constant 0 : index
    %100 = vector.load %arg10[%c0_34, %c0_35] : memref<32x32xbf16, #tpu.memory_space<vmem>>, vector<32x32xbf16>
    %cst_36 = arith.constant dense<0.000000e+00> : vector<4x32xf32>
    %101 = tpu.matmul %99, %100, %cst_36 {dimension_numbers = #tpu.dot_dimension_numbers<[1], [0], [0], [1], [0, 0, 1, 1], [], []>} : vector<4x32xbf16>, vector<32x32xbf16>, vector<4x32xf32> -> vector<4x32xf32>
    %c0_37 = arith.constant 0 : index
    %c0_38 = arith.constant 0 : index
    %102 = vector.load %arg11[%c0_37, %c0_38] : memref<1x32xf32, #tpu.memory_space<vmem>>, vector<1x32xf32>
    %103 = vector.broadcast %102 : vector<1x32xf32> to vector<4x32xf32>
    %104 = arith.addf %101, %103 : vector<4x32xf32>
    %105 = arith.extf %1 : vector<4x32xbf16> to vector<4x32xf32>
    %106 = arith.addf %105, %104 : vector<4x32xf32>
    %107 = arith.truncf %106 : vector<4x32xf32> to vector<4x32xbf16>
    %c0_39 = arith.constant 0 : index
    %c0_40 = arith.constant 0 : index
    %c0_41 = arith.constant 0 : index
    %108 = vector.load %arg12[%c0_39, %c0_40, %c0_41] : memref<1x4x32xbf16, #tpu.memory_space<vmem>>, vector<1x4x32xbf16>
    %109 = vector.shape_cast %108 : vector<1x4x32xbf16> to vector<4x32xbf16>
    %110 = vector.shape_cast %107 : vector<4x32xbf16> to vector<1x4x32xbf16>
    tpu.vector_store %arg12[%c0_39, %c0_40, %c0_41], %110 {strides = array<i32>} : memref<1x4x32xbf16, #tpu.memory_space<vmem>>, vector<1x4x32xbf16>,
    return
  }
  func.func @transform_0(%arg0: i32) -> (i32, i32, i32) {
    %c0_i32 = arith.constant 0 : i32
    %c0_i32_0 = arith.constant 0 : i32
    %c0_i32_1 = arith.constant 0 : i32
    return %arg0, %c0_i32, %c0_i32_0 : i32, i32, i32
  }
  func.func @transform_1(%arg0: i32) -> (i32, i32) {
    %c0_i32 = arith.constant 0 : i32
    %c0_i32_0 = arith.constant 0 : i32
    %c0_i32_1 = arith.constant 0 : i32
    return %c0_i32, %c0_i32_0 : i32, i32
  }
  func.func @transform_2(%arg0: i32) -> (i32, i32) {
    %c0_i32 = arith.constant 0 : i32
    %c0_i32_0 = arith.constant 0 : i32
    %c0_i32_1 = arith.constant 0 : i32
    return %c0_i32, %c0_i32_0 : i32, i32
  }
  func.func @transform_3(%arg0: i32) -> (i32, i32) {
    %c0_i32 = arith.constant 0 : i32
    %c0_i32_0 = arith.constant 0 : i32
    %c0_i32_1 = arith.constant 0 : i32
    return %c0_i32, %c0_i32_0 : i32, i32
  }
  func.func @transform_4(%arg0: i32) -> (i32, i32) {
    %c0_i32 = arith.constant 0 : i32
    %c0_i32_0 = arith.constant 0 : i32
    %c0_i32_1 = arith.constant 0 : i32
    return %c0_i32, %c0_i32_0 : i32, i32
  }
  func.func @transform_5(%arg0: i32) -> (i32, i32) {
    %c0_i32 = arith.constant 0 : i32
    %c0_i32_0 = arith.constant 0 : i32
    %c0_i32_1 = arith.constant 0 : i32
    return %c0_i32, %c0_i32_0 : i32, i32
  }
  func.func @transform_6(%arg0: i32) -> (i32, i32) {
    %c0_i32 = arith.constant 0 : i32
    %c0_i32_0 = arith.constant 0 : i32
    %c0_i32_1 = arith.constant 0 : i32
    return %c0_i32, %c0_i32_0 : i32, i32
  }
  func.func @transform_7(%arg0: i32) -> (i32, i32) {
    %c0_i32 = arith.constant 0 : i32
    %c0_i32_0 = arith.constant 0 : i32
    %c0_i32_1 = arith.constant 0 : i32
    return %c0_i32, %c0_i32_0 : i32, i32
  }
  func.func @transform_8(%arg0: i32) -> (i32, i32) {
    %c0_i32 = arith.constant 0 : i32
    %c0_i32_0 = arith.constant 0 : i32
    %c0_i32_1 = arith.constant 0 : i32
    return %c0_i32, %c0_i32_0 : i32, i32
  }
  func.func @transform_9(%arg0: i32) -> (i32, i32) {
    %c0_i32 = arith.constant 0 : i32
    %c0_i32_0 = arith.constant 0 : i32
    %c0_i32_1 = arith.constant 0 : i32
    return %c0_i32, %c0_i32_0 : i32, i32
  }
  func.func @transform_10(%arg0: i32) -> (i32, i32) {
    %c0_i32 = arith.constant 0 : i32
    %c0_i32_0 = arith.constant 0 : i32
    %c0_i32_1 = arith.constant 0 : i32
    return %c0_i32, %c0_i32_0 : i32, i32
  }
  func.func @transform_11(%arg0: i32) -> (i32, i32, i32) {
    %c0_i32 = arith.constant 0 : i32
    %c0_i32_0 = arith.constant 0 : i32
    %c0_i32_1 = arith.constant 0 : i32
    return %arg0, %c0_i32, %c0_i32_0 : i32, i32, i32
  }
}

module attributes {stable_mosaic.version = 11 : i64} {
  func.func @_ffn_kernel(%arg0: i32, %arg1: memref<8x32xbf16, #tpu.memory_space<vmem>>, %arg2: memref<1x32xf32, #tpu.memory_space<vmem>>, %arg3: memref<1x32xf32, #tpu.memory_space<vmem>>, %arg4: memref<32x128xbf16, #tpu.memory_space<vmem>>, %arg5: memref<1x128xf32, #tpu.memory_space<vmem>>, %arg6: memref<128x32xbf16, #tpu.memory_space<vmem>>, %arg7: memref<1x32xf32, #tpu.memory_space<vmem>>, %arg8: memref<1x32xf32, #tpu.memory_space<vmem>>, %arg9: memref<1x32xf32, #tpu.memory_space<vmem>>, %arg10: memref<8x32xbf16, #tpu.memory_space<vmem>>) attributes {dimension_semantics = [#tpu.dimension_semantics<parallel>], iteration_bounds = array<i64: 1>, scalar_prefetch = 0 : i64, scratch_operands = 0 : i64, tpu.core_type = #tpu.core_type<tc>, window_params = [{transform_indices = @transform_0, window_bounds = array<i64: 8, 32>}, {pipeline_mode = #tpu.pipeline_mode<synchronous>, transform_indices = @transform_1, window_bounds = array<i64: 1, 32>}, {pipeline_mode = #tpu.pipeline_mode<synchronous>, transform_indices = @transform_2, window_bounds = array<i64: 1, 32>}, {pipeline_mode = #tpu.pipeline_mode<synchronous>, transform_indices = @transform_3, window_bounds = array<i64: 32, 128>}, {pipeline_mode = #tpu.pipeline_mode<synchronous>, transform_indices = @transform_4, window_bounds = array<i64: 1, 128>}, {pipeline_mode = #tpu.pipeline_mode<synchronous>, transform_indices = @transform_5, window_bounds = array<i64: 128, 32>}, {pipeline_mode = #tpu.pipeline_mode<synchronous>, transform_indices = @transform_6, window_bounds = array<i64: 1, 32>}, {pipeline_mode = #tpu.pipeline_mode<synchronous>, transform_indices = @transform_7, window_bounds = array<i64: 1, 32>}, {pipeline_mode = #tpu.pipeline_mode<synchronous>, transform_indices = @transform_8, window_bounds = array<i64: 1, 32>}, {transform_indices = @transform_9, window_bounds = array<i64: 8, 32>}]} {
    %c0 = arith.constant 0 : index
    %c0_0 = arith.constant 0 : index
    %0 = vector.load %arg1[%c0, %c0_0] : memref<8x32xbf16, #tpu.memory_space<vmem>>, vector<8x32xbf16>
    %1 = arith.extf %0 : vector<8x32xbf16> to vector<8x32xf32>
    %cst = arith.constant dense<0.000000e+00> : vector<8xf32>
    %2 = vector.multi_reduction <add>, %1, %cst [1] : vector<8x32xf32> to vector<8xf32>
    %3 = vector.shape_cast %2 : vector<8xf32> to vector<8x1xf32>
    %cst_1 = arith.constant 3.200000e+01 : f32
    %4 = vector.broadcast %cst_1 : f32 to vector<8x1xf32>
    %5 = arith.divf %3, %4 : vector<8x1xf32>
    %6 = vector.broadcast %5 : vector<8x1xf32> to vector<8x32xf32>
    %7 = arith.subf %1, %6 : vector<8x32xf32>
    %8 = arith.mulf %7, %7 : vector<8x32xf32>
    %cst_2 = arith.constant dense<0.000000e+00> : vector<8xf32>
    %9 = vector.multi_reduction <add>, %8, %cst_2 [1] : vector<8x32xf32> to vector<8xf32>
    %10 = vector.shape_cast %9 : vector<8xf32> to vector<8x1xf32>
    %cst_3 = arith.constant 3.200000e+01 : f32
    %11 = vector.broadcast %cst_3 : f32 to vector<8x1xf32>
    %12 = arith.divf %10, %11 : vector<8x1xf32>
    %13 = vector.broadcast %5 : vector<8x1xf32> to vector<8x32xf32>
    %14 = arith.subf %1, %13 : vector<8x32xf32>
    %cst_4 = arith.constant 9.99999974E-6 : f32
    %15 = vector.broadcast %cst_4 : f32 to vector<8x1xf32>
    %16 = arith.addf %12, %15 : vector<8x1xf32>
    %17 = math.rsqrt %16 : vector<8x1xf32>
    %18 = vector.broadcast %17 : vector<8x1xf32> to vector<8x32xf32>
    %19 = arith.mulf %14, %18 : vector<8x32xf32>
    %c0_5 = arith.constant 0 : index
    %c0_6 = arith.constant 0 : index
    %20 = vector.load %arg2[%c0_5, %c0_6] : memref<1x32xf32, #tpu.memory_space<vmem>>, vector<1x32xf32>
    %21 = vector.broadcast %20 : vector<1x32xf32> to vector<8x32xf32>
    %22 = arith.mulf %19, %21 : vector<8x32xf32>
    %c0_7 = arith.constant 0 : index
    %c0_8 = arith.constant 0 : index
    %23 = vector.load %arg3[%c0_7, %c0_8] : memref<1x32xf32, #tpu.memory_space<vmem>>, vector<1x32xf32>
    %24 = vector.broadcast %23 : vector<1x32xf32> to vector<8x32xf32>
    %25 = arith.addf %22, %24 : vector<8x32xf32>
    %26 = arith.truncf %25 : vector<8x32xf32> to vector<8x32xbf16>
    %c0_9 = arith.constant 0 : index
    %c0_10 = arith.constant 0 : index
    %27 = vector.load %arg4[%c0_9, %c0_10] : memref<32x128xbf16, #tpu.memory_space<vmem>>, vector<32x128xbf16>
    %cst_11 = arith.constant dense<0.000000e+00> : vector<8x128xf32>
    %28 = tpu.matmul %26, %27, %cst_11 {dimension_numbers = #tpu.dot_dimension_numbers<[1], [0], [0], [1], [0, 0, 1, 1], [], []>} : vector<8x32xbf16>, vector<32x128xbf16>, vector<8x128xf32> -> vector<8x128xf32>
    %c0_12 = arith.constant 0 : index
    %c0_13 = arith.constant 0 : index
    %29 = vector.load %arg5[%c0_12, %c0_13] : memref<1x128xf32, #tpu.memory_space<vmem>>, vector<1x128xf32>
    %30 = vector.broadcast %29 : vector<1x128xf32> to vector<8x128xf32>
    %31 = arith.addf %28, %30 : vector<8x128xf32>
    %32 = arith.negf %31 : vector<8x128xf32>
    %33 = math.exp %32 : vector<8x128xf32>
    %cst_14 = arith.constant 1.000000e+00 : f32
    %34 = vector.broadcast %cst_14 : f32 to vector<8x128xf32>
    %35 = arith.addf %34, %33 : vector<8x128xf32>
    %36 = arith.divf %34, %35 : vector<8x128xf32>
    %37 = arith.mulf %31, %36 : vector<8x128xf32>
    %38 = arith.truncf %37 : vector<8x128xf32> to vector<8x128xbf16>
    %c0_15 = arith.constant 0 : index
    %c0_16 = arith.constant 0 : index
    %39 = vector.load %arg6[%c0_15, %c0_16] : memref<128x32xbf16, #tpu.memory_space<vmem>>, vector<128x32xbf16>
    %cst_17 = arith.constant dense<0.000000e+00> : vector<8x32xf32>
    %40 = tpu.matmul %38, %39, %cst_17 {dimension_numbers = #tpu.dot_dimension_numbers<[1], [0], [0], [1], [0, 0, 1, 1], [], []>} : vector<8x128xbf16>, vector<128x32xbf16>, vector<8x32xf32> -> vector<8x32xf32>
    %c0_18 = arith.constant 0 : index
    %c0_19 = arith.constant 0 : index
    %41 = vector.load %arg7[%c0_18, %c0_19] : memref<1x32xf32, #tpu.memory_space<vmem>>, vector<1x32xf32>
    %42 = vector.broadcast %41 : vector<1x32xf32> to vector<8x32xf32>
    %43 = arith.addf %40, %42 : vector<8x32xf32>
    %44 = arith.extf %0 : vector<8x32xbf16> to vector<8x32xf32>
    %cst_20 = arith.constant 5.000000e-01 : f32
    %45 = vector.broadcast %cst_20 : f32 to vector<8x32xf32>
    %46 = arith.mulf %45, %43 : vector<8x32xf32>
    %47 = arith.addf %44, %46 : vector<8x32xf32>
    %cst_21 = arith.constant dense<0.000000e+00> : vector<8xf32>
    %48 = vector.multi_reduction <add>, %47, %cst_21 [1] : vector<8x32xf32> to vector<8xf32>
    %49 = vector.shape_cast %48 : vector<8xf32> to vector<8x1xf32>
    %cst_22 = arith.constant 3.200000e+01 : f32
    %50 = vector.broadcast %cst_22 : f32 to vector<8x1xf32>
    %51 = arith.divf %49, %50 : vector<8x1xf32>
    %52 = vector.broadcast %51 : vector<8x1xf32> to vector<8x32xf32>
    %53 = arith.subf %47, %52 : vector<8x32xf32>
    %54 = arith.mulf %53, %53 : vector<8x32xf32>
    %cst_23 = arith.constant dense<0.000000e+00> : vector<8xf32>
    %55 = vector.multi_reduction <add>, %54, %cst_23 [1] : vector<8x32xf32> to vector<8xf32>
    %56 = vector.shape_cast %55 : vector<8xf32> to vector<8x1xf32>
    %cst_24 = arith.constant 3.200000e+01 : f32
    %57 = vector.broadcast %cst_24 : f32 to vector<8x1xf32>
    %58 = arith.divf %56, %57 : vector<8x1xf32>
    %59 = vector.broadcast %51 : vector<8x1xf32> to vector<8x32xf32>
    %60 = arith.subf %47, %59 : vector<8x32xf32>
    %cst_25 = arith.constant 9.99999974E-6 : f32
    %61 = vector.broadcast %cst_25 : f32 to vector<8x1xf32>
    %62 = arith.addf %58, %61 : vector<8x1xf32>
    %63 = math.rsqrt %62 : vector<8x1xf32>
    %64 = vector.broadcast %63 : vector<8x1xf32> to vector<8x32xf32>
    %65 = arith.mulf %60, %64 : vector<8x32xf32>
    %c0_26 = arith.constant 0 : index
    %c0_27 = arith.constant 0 : index
    %66 = vector.load %arg8[%c0_26, %c0_27] : memref<1x32xf32, #tpu.memory_space<vmem>>, vector<1x32xf32>
    %67 = vector.broadcast %66 : vector<1x32xf32> to vector<8x32xf32>
    %68 = arith.mulf %65, %67 : vector<8x32xf32>
    %c0_28 = arith.constant 0 : index
    %c0_29 = arith.constant 0 : index
    %69 = vector.load %arg9[%c0_28, %c0_29] : memref<1x32xf32, #tpu.memory_space<vmem>>, vector<1x32xf32>
    %70 = vector.broadcast %69 : vector<1x32xf32> to vector<8x32xf32>
    %71 = arith.addf %68, %70 : vector<8x32xf32>
    %72 = arith.truncf %71 : vector<8x32xf32> to vector<8x32xbf16>
    %c0_30 = arith.constant 0 : index
    %c0_31 = arith.constant 0 : index
    %73 = vector.load %arg10[%c0_30, %c0_31] : memref<8x32xbf16, #tpu.memory_space<vmem>>, vector<8x32xbf16>
    tpu.vector_store %arg10[%c0_30, %c0_31], %72 {strides = array<i32>} : memref<8x32xbf16, #tpu.memory_space<vmem>>, vector<8x32xbf16>,
    return
  }
  func.func @transform_0(%arg0: i32) -> (i32, i32) {
    %c0_i32 = arith.constant 0 : i32
    %c0_i32_0 = arith.constant 0 : i32
    return %arg0, %c0_i32 : i32, i32
  }
  func.func @transform_1(%arg0: i32) -> (i32, i32) {
    %c0_i32 = arith.constant 0 : i32
    %c0_i32_0 = arith.constant 0 : i32
    %c0_i32_1 = arith.constant 0 : i32
    return %c0_i32, %c0_i32_0 : i32, i32
  }
  func.func @transform_2(%arg0: i32) -> (i32, i32) {
    %c0_i32 = arith.constant 0 : i32
    %c0_i32_0 = arith.constant 0 : i32
    %c0_i32_1 = arith.constant 0 : i32
    return %c0_i32, %c0_i32_0 : i32, i32
  }
  func.func @transform_3(%arg0: i32) -> (i32, i32) {
    %c0_i32 = arith.constant 0 : i32
    %c0_i32_0 = arith.constant 0 : i32
    %c0_i32_1 = arith.constant 0 : i32
    return %c0_i32, %c0_i32_0 : i32, i32
  }
  func.func @transform_4(%arg0: i32) -> (i32, i32) {
    %c0_i32 = arith.constant 0 : i32
    %c0_i32_0 = arith.constant 0 : i32
    %c0_i32_1 = arith.constant 0 : i32
    return %c0_i32, %c0_i32_0 : i32, i32
  }
  func.func @transform_5(%arg0: i32) -> (i32, i32) {
    %c0_i32 = arith.constant 0 : i32
    %c0_i32_0 = arith.constant 0 : i32
    %c0_i32_1 = arith.constant 0 : i32
    return %c0_i32, %c0_i32_0 : i32, i32
  }
  func.func @transform_6(%arg0: i32) -> (i32, i32) {
    %c0_i32 = arith.constant 0 : i32
    %c0_i32_0 = arith.constant 0 : i32
    %c0_i32_1 = arith.constant 0 : i32
    return %c0_i32, %c0_i32_0 : i32, i32
  }
  func.func @transform_7(%arg0: i32) -> (i32, i32) {
    %c0_i32 = arith.constant 0 : i32
    %c0_i32_0 = arith.constant 0 : i32
    %c0_i32_1 = arith.constant 0 : i32
    return %c0_i32, %c0_i32_0 : i32, i32
  }
  func.func @transform_8(%arg0: i32) -> (i32, i32) {
    %c0_i32 = arith.constant 0 : i32
    %c0_i32_0 = arith.constant 0 : i32
    %c0_i32_1 = arith.constant 0 : i32
    return %c0_i32, %c0_i32_0 : i32, i32
  }
  func.func @transform_9(%arg0: i32) -> (i32, i32) {
    %c0_i32 = arith.constant 0 : i32
    %c0_i32_0 = arith.constant 0 : i32
    return %arg0, %c0_i32 : i32, i32
  }
}

</mosaic_0001>

<llo_original>
// kernel: conformer_encoder_apply.9
$region0: #{conformer_encoder_apply.9}
  #allocation0 [shape = 'u32[]', space=smem, size = 0x4, offset = 0x4, fixed_abs, tag = 'smem constant byte address 0x4 - core index']
  #allocation1 [shape = 'u32[144,128]{1,0:T(1,128)}', space=vmem, size = 0x12000, scoped, tag = 'internal scratch']
  %s0 = inlined_call_operand.vmem [shape: bf16[8,64], index: 0, kind: input, shape index: {}]
  %s1 = inlined_call_operand.vmem [shape: bf16[64,32], index: 1, kind: input, shape index: {}]
  %s2 = inlined_call_operand.vmem [shape: f32[1,32], index: 2, kind: input, shape index: {}]
  %s3 = inlined_call_operand.vmem [shape: bf16[8,32], index: 3, kind: output, shape index: {}]
  %s4 = sld [smem:[#allocation0]]
  $region22: #{conformer_encoder_apply.9} parent=0
    _
  %s6 = ssub.s32 1, %s4
  %s7 = scalar_select 0, %s6, %s4
  // Predicated region
  $region2: #{conformer_encoder_apply.9} parent=0 // pred_check
    _
  $region3: #{conformer_encoder_apply.9} parent=0 // pred_check_branch
    %9 = sbr.rel (0) target = $region5
  $region4: #{conformer_encoder_apply.9} parent=0 // pred_region
    _
  $region5: #{conformer_encoder_apply.9} parent=0 // pred_fallthru
    _
  // Predicated region
  $region6: #{conformer_encoder_apply.9} parent=0 // pred_check
    _
  $region7: #{conformer_encoder_apply.9} parent=0 // pred_check_branch
    %11 = sbr.rel (0) target = $region9
  $region8: #{conformer_encoder_apply.9} parent=0 // pred_region
    _
  $region9: #{conformer_encoder_apply.9} parent=0 // pred_fallthru
    _
  // Predicated region
  $region10: #{conformer_encoder_apply.9} parent=0 // pred_check
    _
  $region11: #{conformer_encoder_apply.9} parent=0 // pred_check_branch
    %13 = sbr.rel (0) target = $region13
  $region12: #{conformer_encoder_apply.9} parent=0 // pred_region
    _
  $region13: #{conformer_encoder_apply.9} parent=0 // pred_fallthru
    _
  %v15 = vld [vmem:[%s0] sm:$0xf]
  %v16 = vld [vmem:[%s1] sm:$0xf]
  %v17 = vld [vmem:[%s1 + $0x4] sm:$0xf]
  %v18 = vld [vmem:[%s1 + $0x8] sm:$0xf]
  %v19 = vld [vmem:[%s1 + $0xc] sm:$0xf]
  %v20 = vld [vmem:[%s1 + $0x10] sm:$0xf]
  %v21 = vld [vmem:[%s1 + $0x14] sm:$0xf]
  %v22 = vld [vmem:[%s1 + $0x18] sm:$0xf]
  %v23 = vld [vmem:[%s1 + $0x1c] sm:$0xf]
  %v24 = vld [vmem:[%s2] sm:$0x1]
  %v26 = vlaneseq
  %v27 = vshrl.u32 %v26, 7
  %v28 = vsub.s32 0, %v27
  %v29 = vrot.slane %v24, %v28
  %v39 = vunpack.c.l.b16 %v16
  %v40 = vunpack.c.l.b16 %v17
  %v41 = vunpack.c.l.b16 %v18
  %v42 = vunpack.c.l.b16 %v19
  %v43 = vunpack.c.l.b16 %v20
  %v44 = vunpack.c.l.b16 %v21
  %v45 = vunpack.c.l.b16 %v22
  %v46 = vunpack.c.l.b16 %v23
  %v47 = vpack.c.b16 %v40, %v39
  %v48 = vpack.c.b16 %v42, %v41
  %v49 = vpack.c.b16 %v44, %v43
  %v50 = vpack.c.b16 %v46, %v45
  %vm55 = vcmask 523264
  %v57 = vsel %vm55, %v15, 0
  %59 = vmatprep.subr.bf16.mxu0 0
  %60 = vmatpush1.bf16.msra.mxu0 0
  %61 = vmatprep.subr.bf16.mxu0 0
  %62 = vmatpush1.bf16.msra.mxu0 0
  %63 = vmatprep.subr.bf16.mxu0 0
  %64 = vmatpush1.bf16.msra.mxu0 0
  %65 = vmatprep.subr.bf16.mxu0 0
  %66 = vmatpush1.bf16.msra.mxu0 0
  %67 = vmatprep.subr.bf16.mxu0 0
  %68 = vmatpush1.bf16.msra.mxu0 %v50
  %69 = vmatprep.subr.bf16.mxu0 0
  %70 = vmatpush1.bf16.msra.mxu0 %v49
  %71 = vmatprep.subr.bf16.mxu0 0
  %72 = vmatpush1.bf16.msra.mxu0 %v48
  %73 = vmatprep.subr.bf16.mxu0 0
  %74 = vmatpush1.bf16.msra.mxu0 %v47
  %75 = vmatprep.subr.bf16.mxu0 0
  %76 = vmatpush2.bf16.msra.mxu0 0
  %77 = vmatprep.subr.bf16.mxu0 0
  %78 = vmatpush2.bf16.msra.mxu0 0
  %79 = vmatprep.subr.bf16.mxu0 0
  %80 = vmatpush2.bf16.msra.mxu0 0
  %81 = vmatprep.subr.bf16.mxu0 0
  %82 = vmatpush2.bf16.msra.mxu0 0
  %83 = vmatprep.subr.bf16.mxu0 0
  %84 = vmatpush2.bf16.msra.mxu0 0
  %85 = vmatprep.subr.bf16.mxu0 0
  %86 = vmatpush2.bf16.msra.mxu0 0
  %87 = vmatprep.subr.bf16.mxu0 0
  %88 = vmatpush2.bf16.msra.mxu0 0
  %89 = vmatprep.subr.bf16.mxu0 0
  %90 = vmatpush2.bf16.msra.mxu0 0
  %91 = vmatprep.mubr.bf16.mxu0 0
  %92 = vmatmul.mubr.bf16.gmra.mxu0 %v57
  %v93 = vpop.f32.mrf.mxu0
  %v94 = vadd.f32 %v29, %v93
  %v95 = vpop.f32.mrf.mxu0
  %v96 = vpop.f32.mrf.mxu0
  %v97 = vpop.f32.mrf.mxu0
  %98 = vdwg.mxu0
  %v99 = vpack.c.bf16 %v94, %v94
  %vm100 = vcmask 257024
  %101 = vst.msk [vmem:[%s3] sm:$0xf] %vm100, %v99
  // Predicated region
  $region14: #{conformer_encoder_apply.9} parent=0 // pred_check
    _
  $region15: #{conformer_encoder_apply.9} parent=0 // pred_check_branch
    %103 = sbr.rel (0) target = $region17
  $region16: #{conformer_encoder_apply.9} parent=0 // pred_region
    _
  $region17: #{conformer_encoder_apply.9} parent=0 // pred_fallthru
    _
  // Predicated region
  $region18: #{conformer_encoder_apply.9} parent=0 // pred_check
    _
  $region19: #{conformer_encoder_apply.9} parent=0 // pred_check_branch
    %105 = sbr.rel (0) target = $region21
  $region20: #{conformer_encoder_apply.9} parent=0 // pred_region
    _
  $region21: #{conformer_encoder_apply.9} parent=0 // pred_fallthru
    _

// kernel: conformer_encoder_apply.10
$region0: #{conformer_encoder_apply.10}
  #allocation0 [shape = 'u32[]', space=smem, size = 0x4, offset = 0x4, fixed_abs, tag = 'smem constant byte address 0x4 - core index']
  #allocation1 [shape = 'u32[144,128]{1,0:T(1,128)}', space=vmem, size = 0x12000, scoped, tag = 'internal scratch']
  %s0 = inlined_call_operand.vmem [shape: bf16[8,32], index: 0, kind: input, shape index: {}, may-alias: {0,7}]
  %s1 = inlined_call_operand.vmem [shape: f32[1,32], index: 1, kind: input, shape index: {}]
  %s2 = inlined_call_operand.vmem [shape: f32[1,32], index: 2, kind: input, shape index: {}]
  %s3 = inlined_call_operand.vmem [shape: bf16[32,128], index: 3, kind: input, shape index: {}]
  %s4 = inlined_call_operand.vmem [shape: f32[1,128], index: 4, kind: input, shape index: {}]
  %s5 = inlined_call_operand.vmem [shape: bf16[128,32], index: 5, kind: input, shape index: {}]
  %s6 = inlined_call_operand.vmem [shape: f32[1,32], index: 6, kind: input, shape index: {}]
  %s7 = inlined_call_operand.vmem [shape: bf16[8,32], index: 7, kind: output, shape index: {}, may-alias: {0,7}]
  %s8 = sld [smem:[#allocation0]]
  $region38: #{conformer_encoder_apply.10} parent=0
    _
  %s10 = ssub.s32 1, %s8
  %s11 = scalar_select 0, %s10, %s8
  // Predicated region
  $region2: #{conformer_encoder_apply.10} parent=0 // pred_check
    _
  $region3: #{conformer_encoder_apply.10} parent=0 // pred_check_branch
    %13 = sbr.rel (0) target = $region5
  $region4: #{conformer_encoder_apply.10} parent=0 // pred_region
    _
  $region5: #{conformer_encoder_apply.10} parent=0 // pred_fallthru
    _
  // Predicated region
  $region6: #{conformer_encoder_apply.10} parent=0 // pred_check
    _
  $region7: #{conformer_encoder_apply.10} parent=0 // pred_check_branch
    %15 = sbr.rel (0) target = $region9
  $region8: #{conformer_encoder_apply.10} parent=0 // pred_region
    _
  $region9: #{conformer_encoder_apply.10} parent=0 // pred_fallthru
    _
  // Predicated region
  $region10: #{conformer_encoder_apply.10} parent=0 // pred_check
    _
  $region11: #{conformer_encoder_apply.10} parent=0 // pred_check_branch
    %17 = sbr.rel (0) target = $region13
  $region12: #{conformer_encoder_apply.10} parent=0 // pred_region
    _
  $region13: #{conformer_encoder_apply.10} parent=0 // pred_fallthru
    _
  // Predicated region
  $region14: #{conformer_encoder_apply.10} parent=0 // pred_check
    _
  $region15: #{conformer_encoder_apply.10} parent=0 // pred_check_branch
    %19 = sbr.rel (0) target = $region17
  $region16: #{conformer_encoder_apply.10} parent=0 // pred_region
    _
  $region17: #{conformer_encoder_apply.10} parent=0 // pred_fallthru
    _
  // Predicated region
  $region18: #{conformer_encoder_apply.10} parent=0 // pred_check
    _
  $region19: #{conformer_encoder_apply.10} parent=0 // pred_check_branch
    %21 = sbr.rel (0) target = $region21
  $region20: #{conformer_encoder_apply.10} parent=0 // pred_region
    _
  $region21: #{conformer_encoder_apply.10} parent=0 // pred_fallthru
    _
  // Predicated region
  $region22: #{conformer_encoder_apply.10} parent=0 // pred_check
    _
  $region23: #{conformer_encoder_apply.10} parent=0 // pred_check_branch
    %23 = sbr.rel (0) target = $region25
  $region24: #{conformer_encoder_apply.10} parent=0 // pred_region
    _
  $region25: #{conformer_encoder_apply.10} parent=0 // pred_fallthru
    _
  // Predicated region
  $region26: #{conformer_encoder_apply.10} parent=0 // pred_check
    _
  $region27: #{conformer_encoder_apply.10} parent=0 // pred_check_branch
    %25 = sbr.rel (0) target = $region29
  $region28: #{conformer_encoder_apply.10} parent=0 // pred_region
    _
  $region29: #{conformer_encoder_apply.10} parent=0 // pred_fallthru
    _
  %v27 = vld [vmem:[%s0] sm:$0xf]
  %v28 = vunpack.c.l.bf16 %v27
  %vm29 = vcmask 261120
  %v30 = vsel %vm29, %v28, 0.0
  %31 = vadd.xlane.f32.xlu0 %v30
  %v32 = vpop.xlane.xlu0 %31
  %v33 = vrcp.pop 32.0
  %v34 = vmul.f32 %v32, %v33
  %v35 = vsub.f32 %v28, %v34
  %v36 = vmul.f32 %v35, %v35
  %v37 = vsel %vm29, %v36, 0.0
  %38 = vadd.xlane.f32.xlu0 %v37
  %v39 = vpop.xlane.xlu0 %38
  %v40 = vmul.f32 %v39, %v33
  %v41 = vadd.f32 %v40, 1e-05
  %v42 = vrsqrt.pop %v41
  %v43 = vmul.f32 %v35, %v42
  %v44 = vld [vmem:[%s1] sm:$0x1]
  %v46 = vlaneseq
  %v47 = vshrl.u32 %v46, 7
  %v48 = vsub.s32 0, %v47
  %v49 = vrot.slane %v44, %v48
  %v51 = vmul.f32 %v43, %v49
  %v52 = vld [vmem:[%s2] sm:$0x1]
  %v54 = vlaneseq
  %v55 = vshrl.u32 %v54, 7
  %v56 = vsub.s32 0, %v55
  %v57 = vrot.slane %v52, %v56
  %v59 = vadd.f32 %v51, %v57
  %v60 = vpack.c.bf16 %v59, %v59
  %v61 = vld [vmem:[%s3] sm:$0xf]
  %v62 = vld [vmem:[%s3 + $0x4] sm:$0xf]
  %v63 = vld [vmem:[%s3 + $0x8] sm:$0xf]
  %v64 = vld [vmem:[%s3 + $0xc] sm:$0xf]
  %v65 = vld [vmem:[%s4] sm:$0x1]
  %v67 = vlaneseq
  %v68 = vshrl.u32 %v67, 7
  %v69 = vsub.s32 0, %v68
  %v70 = vrot.slane %v65, %v69
  %v76 = vunpack.c.l.b16 %v61
  %v77 = vunpack.c.l.b16 %v62
  %v78 = vunpack.c.l.b16 %v63
  %v79 = vunpack.c.l.b16 %v64
  %v80 = vpack.c.b16 %v77, %v76
  %v81 = vpack.c.b16 %v79, %v78
  %v85 = vsel %vm29, %v60, 0
  %87 = vmatprep.subr.bf16.mxu0 0
  %88 = vmatpush1.bf16.msra.mxu0 0
  %89 = vmatprep.subr.bf16.mxu0 0
  %90 = vmatpush1.bf16.msra.mxu0 0
  %91 = vmatprep.subr.bf16.mxu0 0
  %92 = vmatpush1.bf16.msra.mxu0 0
  %93 = vmatprep.subr.bf16.mxu0 0
  %94 = vmatpush1.bf16.msra.mxu0 0
  %95 = vmatprep.subr.bf16.mxu0 0
  %96 = vmatpush1.bf16.msra.mxu0 0
  %97 = vmatprep.subr.bf16.mxu0 0
  %98 = vmatpush1.bf16.msra.mxu0 0
  %99 = vmatprep.subr.bf16.mxu0 0
  %100 = vmatpush1.bf16.msra.mxu0 %v81
  %101 = vmatprep.subr.bf16.mxu0 0
  %102 = vmatpush1.bf16.msra.mxu0 %v80
  %103 = vmatprep.subr.bf16.mxu0 0
  %104 = vmatpush2.bf16.msra.mxu0 0
  %105 = vmatprep.subr.bf16.mxu0 0
  %106 = vmatpush2.bf16.msra.mxu0 0
  %107 = vmatprep.subr.bf16.mxu0 0
  %108 = vmatpush2.bf16.msra.mxu0 0
  %109 = vmatprep.subr.bf16.mxu0 0
  %110 = vmatpush2.bf16.msra.mxu0 0
  %111 = vmatprep.subr.bf16.mxu0 0
  %112 = vmatpush2.bf16.msra.mxu0 0
  %113 = vmatprep.subr.bf16.mxu0 0
  %114 = vmatpush2.bf16.msra.mxu0 0
  %115 = vmatprep.subr.bf16.mxu0 0
  %116 = vmatpush2.bf16.msra.mxu0 0
  %117 = vmatprep.subr.bf16.mxu0 0
  %118 = vmatpush2.bf16.msra.mxu0 0
  %119 = vmatprep.mubr.bf16.mxu0 0
  %120 = vmatmul.mubr.bf16.gmra.mxu0 %v85
  %v121 = vpop.f32.mrf.mxu0
  %v122 = vadd.f32 %v70, %v121
  %v123 = vpop.f32.mrf.mxu0
  %v124 = vpop.f32.mrf.mxu0
  %v125 = vpop.f32.mrf.mxu0
  %126 = vdwg.mxu0
  %v127 = vxor.u32 %v122, 2147483648
  %v128 = vmul.f32 %v127, 1.442695
  %v129 = vpow.pop %v128
  %v130 = vadd.f32 %v129, 1.0
  %v131 = vrcp.pop %v130
  %v132 = vmul.f32 1.0, %v131
  %v133 = vmul.f32 %v122, %v132
  %v134 = vpack.c.bf16 %v133, %v133
  %v135 = vld [vmem:[%s5] sm:$0xf]
  %v136 = vld [vmem:[%s5 + $0x4] sm:$0xf]
  %v137 = vld [vmem:[%s5 + $0x8] sm:$0xf]
  %v138 = vld [vmem:[%s5 + $0xc] sm:$0xf]
  %v139 = vld [vmem:[%s5 + $0x10] sm:$0xf]
  %v140 = vld [vmem:[%s5 + $0x14] sm:$0xf]
  %v141 = vld [vmem:[%s5 + $0x18] sm:$0xf]
  %v142 = vld [vmem:[%s5 + $0x1c] sm:$0xf]
  %v143 = vld [vmem:[%s5 + $0x20] sm:$0xf]
  %v144 = vld [vmem:[%s5 + $0x24] sm:$0xf]
  %v145 = vld [vmem:[%s5 + $0x28] sm:$0xf]
  %v146 = vld [vmem:[%s5 + $0x2c] sm:$0xf]
  %v147 = vld [vmem:[%s5 + $0x30] sm:$0xf]
  %v148 = vld [vmem:[%s5 + $0x34] sm:$0xf]
  %v149 = vld [vmem:[%s5 + $0x38] sm:$0xf]
  %v150 = vld [vmem:[%s5 + $0x3c] sm:$0xf]
  %v151 = vld [vmem:[%s6] sm:$0x1]
  %v153 = vlaneseq
  %v154 = vshrl.u32 %v153, 7
  %v155 = vsub.s32 0, %v154
  %v156 = vrot.slane %v151, %v155
  %v174 = vunpack.c.l.b16 %v135
  %v175 = vunpack.c.l.b16 %v136
  %v176 = vunpack.c.l.b16 %v137
  %v177 = vunpack.c.l.b16 %v138
  %v178 = vunpack.c.l.b16 %v139
  %v179 = vunpack.c.l.b16 %v140
  %v180 = vunpack.c.l.b16 %v141
  %v181 = vunpack.c.l.b16 %v142
  %v182 = vunpack.c.l.b16 %v143
  %v183 = vunpack.c.l.b16 %v144
  %v184 = vunpack.c.l.b16 %v145
  %v185 = vunpack.c.l.b16 %v146
  %v186 = vunpack.c.l.b16 %v147
  %v187 = vunpack.c.l.b16 %v148
  %v188 = vunpack.c.l.b16 %v149
  %v189 = vunpack.c.l.b16 %v150
  %v190 = vpack.c.b16 %v175, %v174
  %v191 = vpack.c.b16 %v177, %v176
  %v192 = vpack.c.b16 %v179, %v178
  %v193 = vpack.c.b16 %v181, %v180
  %v194 = vpack.c.b16 %v183, %v182
  %v195 = vpack.c.b16 %v185, %v184
  %v196 = vpack.c.b16 %v187, %v186
  %v197 = vpack.c.b16 %v189, %v188
  %206 = vmatprep.subr.bf16.mxu0 0
  %207 = vmatpush1.bf16.msra.mxu0 %v197
  %208 = vmatprep.subr.bf16.mxu0 0
  %209 = vmatpush1.bf16.msra.mxu0 %v196
  %210 = vmatprep.subr.bf16.mxu0 0
  %211 = vmatpush1.bf16.msra.mxu0 %v195
  %212 = vmatprep.subr.bf16.mxu0 0
  %213 = vmatpush1.bf16.msra.mxu0 %v194
  %214 = vmatprep.subr.bf16.mxu0 0
  %215 = vmatpush1.bf16.msra.mxu0 %v193
  %216 = vmatprep.subr.bf16.mxu0 0
  %217 = vmatpush1.bf16.msra.mxu0 %v192
  %218 = vmatprep.subr.bf16.mxu0 0
  %219 = vmatpush1.bf16.msra.mxu0 %v191
  %220 = vmatprep.subr.bf16.mxu0 0
  %221 = vmatpush1.bf16.msra.mxu0 %v190
  %222 = vmatprep.subr.bf16.mxu0 0
  %223 = vmatpush2.bf16.msra.mxu0 0
  %224 = vmatprep.subr.bf16.mxu0 0
  %225 = vmatpush2.bf16.msra.mxu0 0
  %226 = vmatprep.subr.bf16.mxu0 0
  %227 = vmatpush2.bf16.msra.mxu0 0
  %228 = vmatprep.subr.bf16.mxu0 0
  %229 = vmatpush2.bf16.msra.mxu0 0
  %230 = vmatprep.subr.bf16.mxu0 0
  %231 = vmatpush2.bf16.msra.mxu0 0
  %232 = vmatprep.subr.bf16.mxu0 0
  %233 = vmatpush2.bf16.msra.mxu0 0
  %234 = vmatprep.subr.bf16.mxu0 0
  %235 = vmatpush2.bf16.msra.mxu0 0
  %236 = vmatprep.subr.bf16.mxu0 0
  %237 = vmatpush2.bf16.msra.mxu0 0
  %238 = vmatprep.mubr.bf16.mxu0 0
  %239 = vmatmul.mubr.bf16.gmra.mxu0 %v134
  %v240 = vpop.f32.mrf.mxu0
  %v241 = vadd.f32 %v156, %v240
  %v242 = vpop.f32.mrf.mxu0
  %v243 = vpop.f32.mrf.mxu0
  %v244 = vpop.f32.mrf.mxu0
  %245 = vdwg.mxu0
  %v246 = vmul.f32 %v241, 0.5
  %v247 = vadd.f32 %v28, %v246
  %v248 = vpack.c.bf16 %v247, %v247
  %vm249 = vcmask 257024
  %250 = vst.msk [vmem:[%s7] sm:$0xf] %vm249, %v248
  // Predicated region
  $region30: #{conformer_encoder_apply.10} parent=0 // pred_check
    _
  $region31: #{conformer_encoder_apply.10} parent=0 // pred_check_branch
    %252 = sbr.rel (0) target = $region33
  $region32: #{conformer_encoder_apply.10} parent=0 // pred_region
    _
  $region33: #{conformer_encoder_apply.10} parent=0 // pred_fallthru
    _
  // Predicated region
  $region34: #{conformer_encoder_apply.10} parent=0 // pred_check
    _
  $region35: #{conformer_encoder_apply.10} parent=0 // pred_check_branch
    %254 = sbr.rel (0) target = $region37
  $region36: #{conformer_encoder_apply.10} parent=0 // pred_region
    _
  $region37: #{conformer_encoder_apply.10} parent=0 // pred_fallthru
    _

// kernel: conformer_encoder_apply.13
$region0: #{conformer_encoder_apply.13}
  #allocation0 [shape = 'u32[]', space=smem, size = 0x4, offset = 0x4, fixed_abs, tag = 'smem constant byte address 0x4 - core index']
  #allocation1 [shape = 'u32[144,128]{1,0:T(1,128)}', space=vmem, size = 0x12000, scoped, tag = 'internal scratch']
  %s0 = inlined_call_operand.vmem [shape: bf16[8,32], index: 0, kind: input, shape index: {}, may-alias: {0,9}]
  %s1 = inlined_call_operand.vmem [shape: f32[1,32], index: 1, kind: input, shape index: {}]
  %s2 = inlined_call_operand.vmem [shape: f32[1,32], index: 2, kind: input, shape index: {}]
  %s3 = inlined_call_operand.vmem [shape: bf16[32,128], index: 3, kind: input, shape index: {}]
  %s4 = inlined_call_operand.vmem [shape: f32[1,128], index: 4, kind: input, shape index: {}]
  %s5 = inlined_call_operand.vmem [shape: bf16[128,32], index: 5, kind: input, shape index: {}]
  %s6 = inlined_call_operand.vmem [shape: f32[1,32], index: 6, kind: input, shape index: {}]
  %s7 = inlined_call_operand.vmem [shape: f32[1,32], index: 7, kind: input, shape index: {}]
  %s8 = inlined_call_operand.vmem [shape: f32[1,32], index: 8, kind: input, shape index: {}]
  %s9 = inlined_call_operand.vmem [shape: bf16[8,32], index: 9, kind: output, shape index: {}, may-alias: {0,9}]
  %s10 = sld [smem:[#allocation0]]
  $region46: #{conformer_encoder_apply.13} parent=0
    _
  %s12 = ssub.s32 1, %s10
  %s13 = scalar_select 0, %s12, %s10
  // Predicated region
  $region2: #{conformer_encoder_apply.13} parent=0 // pred_check
    _
  $region3: #{conformer_encoder_apply.13} parent=0 // pred_check_branch
    %15 = sbr.rel (0) target = $region5
  $region4: #{conformer_encoder_apply.13} parent=0 // pred_region
    _
  $region5: #{conformer_encoder_apply.13} parent=0 // pred_fallthru
    _
  // Predicated region
  $region6: #{conformer_encoder_apply.13} parent=0 // pred_check
    _
  $region7: #{conformer_encoder_apply.13} parent=0 // pred_check_branch
    %17 = sbr.rel (0) target = $region9
  $region8: #{conformer_encoder_apply.13} parent=0 // pred_region
    _
  $region9: #{conformer_encoder_apply.13} parent=0 // pred_fallthru
    _
  // Predicated region
  $region10: #{conformer_encoder_apply.13} parent=0 // pred_check
    _
  $region11: #{conformer_encoder_apply.13} parent=0 // pred_check_branch
    %19 = sbr.rel (0) target = $region13
  $region12: #{conformer_encoder_apply.13} parent=0 // pred_region
    _
  $region13: #{conformer_encoder_apply.13} parent=0 // pred_fallthru
    _
  // Predicated region
  $region14: #{conformer_encoder_apply.13} parent=0 // pred_check
    _
  $region15: #{conformer_encoder_apply.13} parent=0 // pred_check_branch
    %21 = sbr.rel (0) target = $region17
  $region16: #{conformer_encoder_apply.13} parent=0 // pred_region
    _
  $region17: #{conformer_encoder_apply.13} parent=0 // pred_fallthru
    _
  // Predicated region
  $region18: #{conformer_encoder_apply.13} parent=0 // pred_check
    _
  $region19: #{conformer_encoder_apply.13} parent=0 // pred_check_branch
    %23 = sbr.rel (0) target = $region21
  $region20: #{conformer_encoder_apply.13} parent=0 // pred_region
    _
  $region21: #{conformer_encoder_apply.13} parent=0 // pred_fallthru
    _
  // Predicated region
  $region22: #{conformer_encoder_apply.13} parent=0 // pred_check
    _
  $region23: #{conformer_encoder_apply.13} parent=0 // pred_check_branch
    %25 = sbr.rel (0) target = $region25
  $region24: #{conformer_encoder_apply.13} parent=0 // pred_region
    _
  $region25: #{conformer_encoder_apply.13} parent=0 // pred_fallthru
    _
  // Predicated region
  $region26: #{conformer_encoder_apply.13} parent=0 // pred_check
    _
  $region27: #{conformer_encoder_apply.13} parent=0 // pred_check_branch
    %27 = sbr.rel (0) target = $region29
  $region28: #{conformer_encoder_apply.13} parent=0 // pred_region
    _
  $region29: #{conformer_encoder_apply.13} parent=0 // pred_fallthru
    _
  // Predicated region
  $region30: #{conformer_encoder_apply.13} parent=0 // pred_check
    _
  $region31: #{conformer_encoder_apply.13} parent=0 // pred_check_branch
    %29 = sbr.rel (0) target = $region33
  $region32: #{conformer_encoder_apply.13} parent=0 // pred_region
    _
  $region33: #{conformer_encoder_apply.13} parent=0 // pred_fallthru
    _
  // Predicated region
  $region34: #{conformer_encoder_apply.13} parent=0 // pred_check
    _
  $region35: #{conformer_encoder_apply.13} parent=0 // pred_check_branch
    %31 = sbr.rel (0) target = $region37
  $region36: #{conformer_encoder_apply.13} parent=0 // pred_region
    _
  $region37: #{conformer_encoder_apply.13} parent=0 // pred_fallthru
    _
  %v33 = vld [vmem:[%s0] sm:$0xf]
  %v34 = vunpack.c.l.bf16 %v33
  %vm35 = vcmask 261120
  %v36 = vsel %vm35, %v34, 0.0
  %37 = vadd.xlane.f32.xlu0 %v36
  %v38 = vpop.xlane.xlu0 %37
  %v39 = vrcp.pop 32.0
  %v40 = vmul.f32 %v38, %v39
  %v41 = vsub.f32 %v34, %v40
  %v42 = vmul.f32 %v41, %v41
  %v43 = vsel %vm35, %v42, 0.0
  %44 = vadd.xlane.f32.xlu0 %v43
  %v45 = vpop.xlane.xlu0 %44
  %v46 = vmul.f32 %v45, %v39
  %v47 = vadd.f32 %v46, 1e-05
  %v48 = vrsqrt.pop %v47
  %v49 = vmul.f32 %v41, %v48
  %v50 = vld [vmem:[%s1] sm:$0x1]
  %v52 = vlaneseq
  %v53 = vshrl.u32 %v52, 7
  %v54 = vsub.s32 0, %v53
  %v55 = vrot.slane %v50, %v54
  %v57 = vmul.f32 %v49, %v55
  %v58 = vld [vmem:[%s2] sm:$0x1]
  %v60 = vlaneseq
  %v61 = vshrl.u32 %v60, 7
  %v62 = vsub.s32 0, %v61
  %v63 = vrot.slane %v58, %v62
  %v65 = vadd.f32 %v57, %v63
  %v66 = vpack.c.bf16 %v65, %v65
  %v67 = vld [vmem:[%s3] sm:$0xf]
  %v68 = vld [vmem:[%s3 + $0x4] sm:$0xf]
  %v69 = vld [vmem:[%s3 + $0x8] sm:$0xf]
  %v70 = vld [vmem:[%s3 + $0xc] sm:$0xf]
  %v71 = vld [vmem:[%s4] sm:$0x1]
  %v73 = vlaneseq
  %v74 = vshrl.u32 %v73, 7
  %v75 = vsub.s32 0, %v74
  %v76 = vrot.slane %v71, %v75
  %v82 = vunpack.c.l.b16 %v67
  %v83 = vunpack.c.l.b16 %v68
  %v84 = vunpack.c.l.b16 %v69
  %v85 = vunpack.c.l.b16 %v70
  %v86 = vpack.c.b16 %v83, %v82
  %v87 = vpack.c.b16 %v85, %v84
  %v91 = vsel %vm35, %v66, 0
  %93 = vmatprep.subr.bf16.mxu0 0
  %94 = vmatpush1.bf16.msra.mxu0 0
  %95 = vmatprep.subr.bf16.mxu0 0
  %96 = vmatpush1.bf16.msra.mxu0 0
  %97 = vmatprep.subr.bf16.mxu0 0
  %98 = vmatpush1.bf16.msra.mxu0 0
  %99 = vmatprep.subr.bf16.mxu0 0
  %100 = vmatpush1.bf16.msra.mxu0 0
  %101 = vmatprep.subr.bf16.mxu0 0
  %102 = vmatpush1.bf16.msra.mxu0 0
  %103 = vmatprep.subr.bf16.mxu0 0
  %104 = vmatpush1.bf16.msra.mxu0 0
  %105 = vmatprep.subr.bf16.mxu0 0
  %106 = vmatpush1.bf16.msra.mxu0 %v87
  %107 = vmatprep.subr.bf16.mxu0 0
  %108 = vmatpush1.bf16.msra.mxu0 %v86
  %109 = vmatprep.subr.bf16.mxu0 0
  %110 = vmatpush2.bf16.msra.mxu0 0
  %111 = vmatprep.subr.bf16.mxu0 0
  %112 = vmatpush2.bf16.msra.mxu0 0
  %113 = vmatprep.subr.bf16.mxu0 0
  %114 = vmatpush2.bf16.msra.mxu0 0
  %115 = vmatprep.subr.bf16.mxu0 0
  %116 = vmatpush2.bf16.msra.mxu0 0
  %117 = vmatprep.subr.bf16.mxu0 0
  %118 = vmatpush2.bf16.msra.mxu0 0
  %119 = vmatprep.subr.bf16.mxu0 0
  %120 = vmatpush2.bf16.msra.mxu0 0
  %121 = vmatprep.subr.bf16.mxu0 0
  %122 = vmatpush2.bf16.msra.mxu0 0
  %123 = vmatprep.subr.bf16.mxu0 0
  %124 = vmatpush2.bf16.msra.mxu0 0
  %125 = vmatprep.mubr.bf16.mxu0 0
  %126 = vmatmul.mubr.bf16.gmra.mxu0 %v91
  %v127 = vpop.f32.mrf.mxu0
  %v128 = vadd.f32 %v76, %v127
  %v129 = vpop.f32.mrf.mxu0
  %v130 = vpop.f32.mrf.mxu0
  %v131 = vpop.f32.mrf.mxu0
  %132 = vdwg.mxu0
  %v133 = vxor.u32 %v128, 2147483648
  %v134 = vmul.f32 %v133, 1.442695
  %v135 = vpow.pop %v134
  %v136 = vadd.f32 %v135, 1.0
  %v137 = vrcp.pop %v136
  %v138 = vmul.f32 1.0, %v137
  %v139 = vmul.f32 %v128, %v138
  %v140 = vpack.c.bf16 %v139, %v139
  %v141 = vld [vmem:[%s5] sm:$0xf]
  %v142 = vld [vmem:[%s5 + $0x4] sm:$0xf]
  %v143 = vld [vmem:[%s5 + $0x8] sm:$0xf]
  %v144 = vld [vmem:[%s5 + $0xc] sm:$0xf]
  %v145 = vld [vmem:[%s5 + $0x10] sm:$0xf]
  %v146 = vld [vmem:[%s5 + $0x14] sm:$0xf]
  %v147 = vld [vmem:[%s5 + $0x18] sm:$0xf]
  %v148 = vld [vmem:[%s5 + $0x1c] sm:$0xf]
  %v149 = vld [vmem:[%s5 + $0x20] sm:$0xf]
  %v150 = vld [vmem:[%s5 + $0x24] sm:$0xf]
  %v151 = vld [vmem:[%s5 + $0x28] sm:$0xf]
  %v152 = vld [vmem:[%s5 + $0x2c] sm:$0xf]
  %v153 = vld [vmem:[%s5 + $0x30] sm:$0xf]
  %v154 = vld [vmem:[%s5 + $0x34] sm:$0xf]
  %v155 = vld [vmem:[%s5 + $0x38] sm:$0xf]
  %v156 = vld [vmem:[%s5 + $0x3c] sm:$0xf]
  %v157 = vld [vmem:[%s6] sm:$0x1]
  %v159 = vlaneseq
  %v160 = vshrl.u32 %v159, 7
  %v161 = vsub.s32 0, %v160
  %v162 = vrot.slane %v157, %v161
  %v180 = vunpack.c.l.b16 %v141
  %v181 = vunpack.c.l.b16 %v142
  %v182 = vunpack.c.l.b16 %v143
  %v183 = vunpack.c.l.b16 %v144
  %v184 = vunpack.c.l.b16 %v145
  %v185 = vunpack.c.l.b16 %v146
  %v186 = vunpack.c.l.b16 %v147
  %v187 = vunpack.c.l.b16 %v148
  %v188 = vunpack.c.l.b16 %v149
  %v189 = vunpack.c.l.b16 %v150
  %v190 = vunpack.c.l.b16 %v151
  %v191 = vunpack.c.l.b16 %v152
  %v192 = vunpack.c.l.b16 %v153
  %v193 = vunpack.c.l.b16 %v154
  %v194 = vunpack.c.l.b16 %v155
  %v195 = vunpack.c.l.b16 %v156
  %v196 = vpack.c.b16 %v181, %v180
  %v197 = vpack.c.b16 %v183, %v182
  %v198 = vpack.c.b16 %v185, %v184
  %v199 = vpack.c.b16 %v187, %v186
  %v200 = vpack.c.b16 %v189, %v188
  %v201 = vpack.c.b16 %v191, %v190
  %v202 = vpack.c.b16 %v193, %v192
  %v203 = vpack.c.b16 %v195, %v194
  %212 = vmatprep.subr.bf16.mxu0 0
  %213 = vmatpush1.bf16.msra.mxu0 %v203
  %214 = vmatprep.subr.bf16.mxu0 0
  %215 = vmatpush1.bf16.msra.mxu0 %v202
  %216 = vmatprep.subr.bf16.mxu0 0
  %217 = vmatpush1.bf16.msra.mxu0 %v201
  %218 = vmatprep.subr.bf16.mxu0 0
  %219 = vmatpush1.bf16.msra.mxu0 %v200
  %220 = vmatprep.subr.bf16.mxu0 0
  %221 = vmatpush1.bf16.msra.mxu0 %v199
  %222 = vmatprep.subr.bf16.mxu0 0
  %223 = vmatpush1.bf16.msra.mxu0 %v198
  %224 = vmatprep.subr.bf16.mxu0 0
  %225 = vmatpush1.bf16.msra.mxu0 %v197
  %226 = vmatprep.subr.bf16.mxu0 0
  %227 = vmatpush1.bf16.msra.mxu0 %v196
  %228 = vmatprep.subr.bf16.mxu0 0
  %229 = vmatpush2.bf16.msra.mxu0 0
  %230 = vmatprep.subr.bf16.mxu0 0
  %231 = vmatpush2.bf16.msra.mxu0 0
  %232 = vmatprep.subr.bf16.mxu0 0
  %233 = vmatpush2.bf16.msra.mxu0 0
  %234 = vmatprep.subr.bf16.mxu0 0
  %235 = vmatpush2.bf16.msra.mxu0 0
  %236 = vmatprep.subr.bf16.mxu0 0
  %237 = vmatpush2.bf16.msra.mxu0 0
  %238 = vmatprep.subr.bf16.mxu0 0
  %239 = vmatpush2.bf16.msra.mxu0 0
  %240 = vmatprep.subr.bf16.mxu0 0
  %241 = vmatpush2.bf16.msra.mxu0 0
  %242 = vmatprep.subr.bf16.mxu0 0
  %243 = vmatpush2.bf16.msra.mxu0 0
  %244 = vmatprep.mubr.bf16.mxu0 0
  %245 = vmatmul.mubr.bf16.gmra.mxu0 %v140
  %v246 = vpop.f32.mrf.mxu0
  %v247 = vadd.f32 %v162, %v246
  %v248 = vpop.f32.mrf.mxu0
  %v249 = vpop.f32.mrf.mxu0
  %v250 = vpop.f32.mrf.mxu0
  %251 = vdwg.mxu0
  %v252 = vmul.f32 %v247, 0.5
  %v253 = vadd.f32 %v34, %v252
  %v254 = vsel %vm35, %v253, 0.0
  %255 = vadd.xlane.f32.xlu0 %v254
  %v256 = vpop.xlane.xlu0 %255
  %v257 = vmul.f32 %v256, %v39
  %v258 = vsub.f32 %v253, %v257
  %v259 = vmul.f32 %v258, %v258
  %v260 = vsel %vm35, %v259, 0.0
  %261 = vadd.xlane.f32.xlu0 %v260
  %v262 = vpop.xlane.xlu0 %261
  %v263 = vmul.f32 %v262, %v39
  %v264 = vadd.f32 %v263, 1e-05
  %v265 = vrsqrt.pop %v264
  %v266 = vmul.f32 %v258, %v265
  %v267 = vld [vmem:[%s7] sm:$0x1]
  %v269 = vlaneseq
  %v270 = vshrl.u32 %v269, 7
  %v271 = vsub.s32 0, %v270
  %v272 = vrot.slane %v267, %v271
  %v274 = vmul.f32 %v266, %v272
  %v275 = vld [vmem:[%s8] sm:$0x1]
  %v277 = vlaneseq
  %v278 = vshrl.u32 %v277, 7
  %v279 = vsub.s32 0, %v278
  %v280 = vrot.slane %v275, %v279
  %v282 = vadd.f32 %v274, %v280
  %v283 = vpack.c.bf16 %v282, %v282
  %vm284 = vcmask 257024
  %285 = vst.msk [vmem:[%s9] sm:$0xf] %vm284, %v283
  // Predicated region
  $region38: #{conformer_encoder_apply.13} parent=0 // pred_check
    _
  $region39: #{conformer_encoder_apply.13} parent=0 // pred_check_branch
    %287 = sbr.rel (0) target = $region41
  $region40: #{conformer_encoder_apply.13} parent=0 // pred_region
    _
  $region41: #{conformer_encoder_apply.13} parent=0 // pred_fallthru
    _
  // Predicated region
  $region42: #{conformer_encoder_apply.13} parent=0 // pred_check
    _
  $region43: #{conformer_encoder_apply.13} parent=0 // pred_check_branch
    %289 = sbr.rel (0) target = $region45
  $region44: #{conformer_encoder_apply.13} parent=0 // pred_region
    _
  $region45: #{conformer_encoder_apply.13} parent=0 // pred_fallthru
    _

// kernel: conformer_encoder_apply.11
$region0: #{conformer_encoder_apply.11}
  #allocation0 [shape = 'u32[]', space=smem, size = 0x4, offset = 0x4, fixed_abs, tag = 'smem constant byte address 0x4 - core index']
  #allocation1 [shape = 'u32[144,128]{1,0:T(1,128)}', space=vmem, size = 0x12000, scoped, tag = 'internal scratch']
  #allocation2 [shape = 'bf16[4,96]{1,0:T(4,128)(2,1)}', space=vmem, size = 0x400, scoped, tag = 'scratch operand']
  #allocation3 [shape = 'bf16[4,32]{1,0:T(4,128)(2,1)}', space=vmem, size = 0x400, scoped, tag = 'scratch operand']
  %s0 = inlined_call_operand.vmem [shape: bf16[2,4,32], index: 0, kind: input, shape index: {}, may-alias: {0,7}]
  %s1 = inlined_call_operand.vmem [shape: f32[1,32], index: 1, kind: input, shape index: {}]
  %s2 = inlined_call_operand.vmem [shape: f32[1,32], index: 2, kind: input, shape index: {}]
  %s3 = inlined_call_operand.vmem [shape: bf16[32,96], index: 3, kind: input, shape index: {}]
  %s4 = inlined_call_operand.vmem [shape: f32[1,96], index: 4, kind: input, shape index: {}]
  %s5 = inlined_call_operand.vmem [shape: bf16[32,32], index: 5, kind: input, shape index: {}]
  %s6 = inlined_call_operand.vmem [shape: f32[1,32], index: 6, kind: input, shape index: {}]
  %s7 = inlined_call_operand.vmem [shape: bf16[2,4,32], index: 7, kind: output, shape index: {}, may-alias: {0,7}]
  %s8 = sld [smem:[#allocation0]]
  $region61: #{conformer_encoder_apply.11} parent=0
    _
  %s10 = ssub.s32 1, %s8
  %s11 = scalar_select 0, %s10, %s8
  loop: start=0, step=1, limit=4
  $region2: #{conformer_encoder_apply.11} parent=0 // loop_pre_header
    _
  $region3: #{conformer_encoder_apply.11} parent=0 // loop_header
    %s13 = sphi 0, %s17
    %p14 = scmp.ge.s32.totalorder %s13, 4
    %s23 = sphi 0, %s25
    %s26 = sphi 0, %s23
    %s27 = sphi 0, %s26
    %s43 = sphi 0, %s27
    %s47 = sphi 0, %s47
    %s49 = sphi 0, %s47
    %s50 = sphi 0, %s49
    %s64 = sphi 0, %s50
    %s68 = sphi 0, %s68
    %s70 = sphi 0, %s68
    %s71 = sphi 0, %s70
    %s85 = sphi 0, %s71
    %s89 = sphi 0, %s89
    %s91 = sphi 0, %s89
    %s92 = sphi 0, %s91
    %s106 = sphi 0, %s92
    %s110 = sphi 0, %s110
    %s112 = sphi 0, %s110
    %s113 = sphi 0, %s112
    %s127 = sphi 0, %s113
    %s131 = sphi 0, %s131
    %s133 = sphi 0, %s131
    %s134 = sphi 0, %s133
    %s148 = sphi 0, %s134
    %s152 = sphi 0, %s152
    %s154 = sphi 0, %s152
    %s155 = sphi 0, %s154
    %s169 = sphi 0, %s155
    %s175 = sphi 0, %s177
    %s178 = sphi 0, %s175
    %s179 = sphi 0, %s178
    %s195 = sphi 0, %s179
  $region4: #{conformer_encoder_apply.11} parent=0 // loop_header_branch
    %16 = sbr.rel (%p14) target = $region8
  $region5: #{conformer_encoder_apply.11} parent=0 // loop_body
    %s18 = ssub.s32 %s13, 1
    %s19 = ssub.s32 %s13, 2
    %s20 = sadd.s32 %s13, 1
    %s21 = ssub.s32 %s13, %s20
    %p22 = scmp.eq.s32.totalorder %s21, 0
    %s24 = sadd.s32 %s23, 1
    %s25 = scalar_select %p22, %s23, %s24
    %p28 = pneg %p22
    %p29 = scmp.eq.s32.totalorder %s13, 1
    %p30 = por %p28, %p29
    %p31 = scmp.ne.s32.totalorder %s23, %s26
    %p32 = scmp.eq.s32.totalorder %s13, 0
    %p33 = por %p31, %p32
    %p34 = scmp.ne.s32.totalorder %s23, %s26
    %p35 = scmp.eq.s32.totalorder %s18, 1
    %p36 = por %p34, %p35
    %p37 = scmp.ne.s32.totalorder %s26, %s27
    %p38 = scmp.eq.s32.totalorder %s18, 0
    %p39 = por %p37, %p38
    %p40 = scmp.ne.s32.totalorder %s26, %s27
    %p41 = scmp.eq.s32.totalorder %s19, 1
    %p42 = por %p40, %p41
    %p44 = scmp.ne.s32.totalorder %s27, %s43
    %p45 = scmp.eq.s32.totalorder %s19, 0
    %p46 = por %p44, %p45
    %s48 = sadd.s32 %s47, 1
    %p51 = scmp.eq.s32.totalorder %s13, 1
    %p52 = scmp.ne.s32.totalorder %s47, %s49
    %p53 = scmp.eq.s32.totalorder %s13, 0
    %p54 = por %p52, %p53
    %p55 = scmp.ne.s32.totalorder %s47, %s49
    %p56 = scmp.eq.s32.totalorder %s18, 1
    %p57 = por %p55, %p56
    %p58 = scmp.ne.s32.totalorder %s49, %s50
    %p59 = scmp.eq.s32.totalorder %s18, 0
    %p60 = por %p58, %p59
    %p61 = scmp.ne.s32.totalorder %s49, %s50
    %p62 = scmp.eq.s32.totalorder %s19, 1
    %p63 = por %p61, %p62
    %p65 = scmp.ne.s32.totalorder %s50, %s64
    %p66 = scmp.eq.s32.totalorder %s19, 0
    %p67 = por %p65, %p66
    %s69 = sadd.s32 %s68, 1
    %p72 = scmp.eq.s32.totalorder %s13, 1
    %p73 = scmp.ne.s32.totalorder %s68, %s70
    %p74 = scmp.eq.s32.totalorder %s13, 0
    %p75 = por %p73, %p74
    %p76 = scmp.ne.s32.totalorder %s68, %s70
    %p77 = scmp.eq.s32.totalorder %s18, 1
    %p78 = por %p76, %p77
    %p79 = scmp.ne.s32.totalorder %s70, %s71
    %p80 = scmp.eq.s32.totalorder %s18, 0
    %p81 = por %p79, %p80
    %p82 = scmp.ne.s32.totalorder %s70, %s71
    %p83 = scmp.eq.s32.totalorder %s19, 1
    %p84 = por %p82, %p83
    %p86 = scmp.ne.s32.totalorder %s71, %s85
    %p87 = scmp.eq.s32.totalorder %s19, 0
    %p88 = por %p86, %p87
    %s90 = sadd.s32 %s89, 1
    %p93 = scmp.eq.s32.totalorder %s13, 1
    %p94 = scmp.ne.s32.totalorder %s89, %s91
    %p95 = scmp.eq.s32.totalorder %s13, 0
    %p96 = por %p94, %p95
    %p97 = scmp.ne.s32.totalorder %s89, %s91
    %p98 = scmp.eq.s32.totalorder %s18, 1
    %p99 = por %p97, %p98
    %p100 = scmp.ne.s32.totalorder %s91, %s92
    %p101 = scmp.eq.s32.totalorder %s18, 0
    %p102 = por %p100, %p101
    %p103 = scmp.ne.s32.totalorder %s91, %s92
    %p104 = scmp.eq.s32.totalorder %s19, 1
    %p105 = por %p103, %p104
    %p107 = scmp.ne.s32.totalorder %s92, %s106
    %p108 = scmp.eq.s32.totalorder %s19, 0
    %p109 = por %p107, %p108
    %s111 = sadd.s32 %s110, 1
    %p114 = scmp.eq.s32.totalorder %s13, 1
    %p115 = scmp.ne.s32.totalorder %s110, %s112
    %p116 = scmp.eq.s32.totalorder %s13, 0
    %p117 = por %p115, %p116
    %p118 = scmp.ne.s32.totalorder %s110, %s112
    %p119 = scmp.eq.s32.totalorder %s18, 1
    %p120 = por %p118, %p119
    %p121 = scmp.ne.s32.totalorder %s112, %s113
    %p122 = scmp.eq.s32.totalorder %s18, 0
    %p123 = por %p121, %p122
    %p124 = scmp.ne.s32.totalorder %s112, %s113
    %p125 = scmp.eq.s32.totalorder %s19, 1
    %p126 = por %p124, %p125
    %p128 = scmp.ne.s32.totalorder %s113, %s127
    %p129 = scmp.eq.s32.totalorder %s19, 0
    %p130 = por %p128, %p129
    %s132 = sadd.s32 %s131, 1
    %p135 = scmp.eq.s32.totalorder %s13, 1
    %p136 = scmp.ne.s32.totalorder %s131, %s133
    %p137 = scmp.eq.s32.totalorder %s13, 0
    %p138 = por %p136, %p137
    %p139 = scmp.ne.s32.totalorder %s131, %s133
    %p140 = scmp.eq.s32.totalorder %s18, 1
    %p141 = por %p139, %p140
    %p142 = scmp.ne.s32.totalorder %s133, %s134
    %p143 = scmp.eq.s32.totalorder %s18, 0
    %p144 = por %p142, %p143
    %p145 = scmp.ne.s32.totalorder %s133, %s134
    %p146 = scmp.eq.s32.totalorder %s19, 1
    %p147 = por %p145, %p146
    %p149 = scmp.ne.s32.totalorder %s134, %s148
    %p150 = scmp.eq.s32.totalorder %s19, 0
    %p151 = por %p149, %p150
    %s153 = sadd.s32 %s152, 1
    %p156 = scmp.eq.s32.totalorder %s13, 1
    %p157 = scmp.ne.s32.totalorder %s152, %s154
    %p158 = scmp.eq.s32.totalorder %s13, 0
    %p159 = por %p157, %p158
    %p160 = scmp.ne.s32.totalorder %s152, %s154
    %p161 = scmp.eq.s32.totalorder %s18, 1
    %p162 = por %p160, %p161
    %p163 = scmp.ne.s32.totalorder %s154, %s155
    %p164 = scmp.eq.s32.totalorder %s18, 0
    %p165 = por %p163, %p164
    %p166 = scmp.ne.s32.totalorder %s154, %s155
    %p167 = scmp.eq.s32.totalorder %s19, 1
    %p168 = por %p166, %p167
    %p170 = scmp.ne.s32.totalorder %s155, %s169
    %p171 = scmp.eq.s32.totalorder %s19, 0
    %p172 = por %p170, %p171
    %s173 = ssub.s32 %s13, %s20
    %p174 = scmp.eq.s32.totalorder %s173, 0
    %s176 = sadd.s32 %s175, 1
    %s177 = scalar_select %p174, %s175, %s176
    %p180 = pneg %p174
    %p181 = scmp.eq.s32.totalorder %s13, 1
    %p182 = por %p180, %p181
    %p183 = scmp.ne.s32.totalorder %s175, %s178
    %p184 = scmp.eq.s32.totalorder %s13, 0
    %p185 = por %p183, %p184
    %p186 = scmp.ne.s32.totalorder %s175, %s178
    %p187 = scmp.eq.s32.totalorder %s18, 1
    %p188 = por %p186, %p187
    %p189 = scmp.ne.s32.totalorder %s178, %s179
    %p190 = scmp.eq.s32.totalorder %s18, 0
    %p191 = por %p189, %p190
    %p192 = scmp.ne.s32.totalorder %s178, %s179
    %p193 = scmp.eq.s32.totalorder %s19, 1
    %p194 = por %p192, %p193
    %p196 = scmp.ne.s32.totalorder %s179, %s195
    %p197 = scmp.eq.s32.totalorder %s19, 0
    %p198 = por %p196, %p197
    %p199 = scmp.le.s32.totalorder 1, %s13
    %p200 = scmp.lt.s32.totalorder %s13, 3
    %p201 = pnand %p199, %p200
    %p202 = pneg %p201
    // Predicated region
    $region9: #{conformer_encoder_apply.11} parent=5 // pred_check
      _
    $region10: #{conformer_encoder_apply.11} parent=5 // pred_check_branch
      %204 = sbr.rel (%p201) target = $region12
    $region11: #{conformer_encoder_apply.11} parent=5 // pred_region
      %s205 = ssub.s32 %s13, 1
      // Predicated region
      $region13: #{conformer_encoder_apply.11} parent=11 // pred_check
        %p206 = pneg %p60
      $region14: #{conformer_encoder_apply.11} parent=11 // pred_check_branch
        %208 = sbr.rel (%p206) target = $region16
      $region15: #{conformer_encoder_apply.11} parent=11 // pred_region
        _
      $region16: #{conformer_encoder_apply.11} parent=11 // pred_fallthru
        _
      // Predicated region
      $region17: #{conformer_encoder_apply.11} parent=11 // pred_check
        %p209 = pneg %p81
      $region18: #{conformer_encoder_apply.11} parent=11 // pred_check_branch
        %211 = sbr.rel (%p209) target = $region20
      $region19: #{conformer_encoder_apply.11} parent=11 // pred_region
        _
      $region20: #{conformer_encoder_apply.11} parent=11 // pred_fallthru
        _
      // Predicated region
      $region21: #{conformer_encoder_apply.11} parent=11 // pred_check
        %p212 = pneg %p102
      $region22: #{conformer_encoder_apply.11} parent=11 // pred_check_branch
        %214 = sbr.rel (%p212) target = $region24
      $region23: #{conformer_encoder_apply.11} parent=11 // pred_region
        _
      $region24: #{conformer_encoder_apply.11} parent=11 // pred_fallthru
        _
      // Predicated region
      $region25: #{conformer_encoder_apply.11} parent=11 // pred_check
        %p215 = pneg %p123
      $region26: #{conformer_encoder_apply.11} parent=11 // pred_check_branch
        %217 = sbr.rel (%p215) target = $region28
      $region27: #{conformer_encoder_apply.11} parent=11 // pred_region
        _
      $region28: #{conformer_encoder_apply.11} parent=11 // pred_fallthru
        _
      // Predicated region
      $region29: #{conformer_encoder_apply.11} parent=11 // pred_check
        %p218 = pneg %p144
      $region30: #{conformer_encoder_apply.11} parent=11 // pred_check_branch
        %220 = sbr.rel (%p218) target = $region32
      $region31: #{conformer_encoder_apply.11} parent=11 // pred_region
        _
      $region32: #{conformer_encoder_apply.11} parent=11 // pred_fallthru
        _
      // Predicated region
      $region33: #{conformer_encoder_apply.11} parent=11 // pred_check
        %p221 = pneg %p165
      $region34: #{conformer_encoder_apply.11} parent=11 // pred_check_branch
        %223 = sbr.rel (%p221) target = $region36
      $region35: #{conformer_encoder_apply.11} parent=11 // pred_region
        _
      $region36: #{conformer_encoder_apply.11} parent=11 // pred_fallthru
        _
    $region12: #{conformer_encoder_apply.11} parent=5 // pred_fallthru
      _
    %p224 = scmp.lt.s32.totalorder %s13, 2
    // Predicated region
    $region37: #{conformer_encoder_apply.11} parent=5 // pred_check
      %p225 = pneg %p224
    $region38: #{conformer_encoder_apply.11} parent=5 // pred_check_branch
      %227 = sbr.rel (%p225) target = $region40
    $region39: #{conformer_encoder_apply.11} parent=5 // pred_region
      // Predicated region
      $region41: #{conformer_encoder_apply.11} parent=39 // pred_check
        %p228 = pneg %p33
      $region42: #{conformer_encoder_apply.11} parent=39 // pred_check_branch
        %230 = sbr.rel (%p228) target = $region44
      $region43: #{conformer_encoder_apply.11} parent=39 // pred_region
        %p231 = scmp.lt.s32.totalorder %s13, 1
        %s232 = scalar_select %p231, %s13, 1
        %s233 = smul.addr %s232, 2
        %s234 = scalar_lea.vmem %s0, %s233
      $region44: #{conformer_encoder_apply.11} parent=39 // pred_fallthru
        _
    $region40: #{conformer_encoder_apply.11} parent=5 // pred_fallthru
      _
    %p235 = scmp.le.s32.totalorder 1, %s13
    %p236 = scmp.lt.s32.totalorder %s13, 3
    %p237 = pnand %p235, %p236
    %p238 = pneg %p237
    // Predicated region
    $region45: #{conformer_encoder_apply.11} parent=5 // pred_check
      _
    $region46: #{conformer_encoder_apply.11} parent=5 // pred_check_branch
      %240 = sbr.rel (%p237) target = $region48
    $region47: #{conformer_encoder_apply.11} parent=5 // pred_region
      %s241 = ssub.s32 %s13, 1
      %p242 = scmp.lt.s32.totalorder %s18, 1
      %s243 = scalar_select %p242, %s18, 1
      %s244 = smul.addr %s243, 2
      %s245 = scalar_lea.vmem %s0, %s244
      %p246 = pneg %p39
      %p247 = pneg %p36
      %p248 = pneg %p60
      %p249 = pneg %p57
      %p250 = pneg %p81
      %p251 = pneg %p78
      %p252 = pneg %p102
      %p253 = pneg %p99
      %p254 = pneg %p123
      %p255 = pneg %p120
      %p256 = pneg %p144
      %p257 = pneg %p141
      %p258 = pneg %p165
      %p259 = pneg %p162
      %p260 = pneg %p191
      %p261 = pneg %p188
      %p262 = scmp.lt.s32.totalorder %s18, 1
      %s263 = scalar_select %p262, %s18, 1
      %s264 = smul.addr %s263, 2
      %s265 = scalar_lea.vmem %s7, %s264
      %p266 = scmp.lt.s32.totalorder %s18, 1
      %s267 = scalar_select %p266, %s18, 1
      %s268 = smul.addr %s267, 2
      %s269 = scalar_lea.vmem %s0, %s268
      %p270 = scmp.lt.s32.totalorder %s18, 1
      %s271 = scalar_select %p270, %s18, 1
      %s272 = smul.addr %s271, 2
      %s273 = scalar_lea.vmem %s7, %s272
      %v275 = vld [vmem:[%s269] sm:$0x3]
      %v276 = vunpack.c.l.bf16 %v275
      %vm277 = vcmask 257024
      %v278 = vsel %vm277, %v276, 0.0
      %279 = vadd.xlane.f32.xlu0 %v278
      %v280 = vpop.xlane.xlu0 %279
      %v281 = vrcp.pop 32.0
      %v282 = vmul.f32 %v280, %v281
      %v283 = vsub.f32 %v276, %v282
      %v284 = vmul.f32 %v283, %v283
      %v285 = vsel %vm277, %v284, 0.0
      %286 = vadd.xlane.f32.xlu0 %v285
      %v287 = vpop.xlane.xlu0 %286
      %v288 = vmul.f32 %v287, %v281
      %v289 = vadd.f32 %v288, 1e-05
      %v290 = vrsqrt.pop %v289
      %v291 = vmul.f32 %v283, %v290
      %v292 = vld [vmem:[%s1] sm:$0x1]
      %v294 = vlaneseq
      %v295 = vshrl.u32 %v294, 7
      %v296 = vsub.s32 0, %v295
      %v297 = vrot.slane %v292, %v296
      %v299 = vmul.f32 %v291, %v297
      %v300 = vld [vmem:[%s2] sm:$0x1]
      %v302 = vlaneseq
      %v303 = vshrl.u32 %v302, 7
      %v304 = vsub.s32 0, %v303
      %v305 = vrot.slane %v300, %v304
      %v307 = vadd.f32 %v299, %v305
      %v308 = vpack.c.bf16 %v307, %v307
      %v309 = vld [vmem:[%s3] sm:$0xf]
      %v310 = vld [vmem:[%s3 + $0x4] sm:$0xf]
      %v311 = vld [vmem:[%s3 + $0x8] sm:$0xf]
      %v312 = vld [vmem:[%s3 + $0xc] sm:$0xf]
      %v313 = vld [vmem:[%s4] sm:$0x1]
      %v315 = vlaneseq
      %v316 = vshrl.u32 %v315, 7
      %v317 = vsub.s32 0, %v316
      %v318 = vrot.slane %v313, %v317
      %v324 = vunpack.c.l.b16 %v309
      %v325 = vunpack.c.l.b16 %v310
      %v326 = vunpack.c.l.b16 %v311
      %v327 = vunpack.c.l.b16 %v312
      %v328 = vpack.c.b16 %v325, %v324
      %v329 = vpack.c.b16 %v327, %v326
      %vm332 = vcmask 261120
      %v334 = vsel %vm332, %v308, 0
      %336 = vmatprep.subr.bf16.mxu0 0
      %337 = vmatpush1.bf16.msra.mxu0 0
      %338 = vmatprep.subr.bf16.mxu0 0
      %339 = vmatpush1.bf16.msra.mxu0 0
      %340 = vmatprep.subr.bf16.mxu0 0
      %341 = vmatpush1.bf16.msra.mxu0 0
      %342 = vmatprep.subr.bf16.mxu0 0
      %343 = vmatpush1.bf16.msra.mxu0 0
      %344 = vmatprep.subr.bf16.mxu0 0
      %345 = vmatpush1.bf16.msra.mxu0 0
      %346 = vmatprep.subr.bf16.mxu0 0
      %347 = vmatpush1.bf16.msra.mxu0 0
      %348 = vmatprep.subr.bf16.mxu0 0
      %349 = vmatpush1.bf16.msra.mxu0 %v329
      %350 = vmatprep.subr.bf16.mxu0 0
      %351 = vmatpush1.bf16.msra.mxu0 %v328
      %352 = vmatprep.subr.bf16.mxu0 0
      %353 = vmatpush2.bf16.msra.mxu0 0
      %354 = vmatprep.subr.bf16.mxu0 0
      %355 = vmatpush2.bf16.msra.mxu0 0
      %356 = vmatprep.subr.bf16.mxu0 0
      %357 = vmatpush2.bf16.msra.mxu0 0
      %358 = vmatprep.subr.bf16.mxu0 0
      %359 = vmatpush2.bf16.msra.mxu0 0
      %360 = vmatprep.subr.bf16.mxu0 0
      %361 = vmatpush2.bf16.msra.mxu0 0
      %362 = vmatprep.subr.bf16.mxu0 0
      %363 = vmatpush2.bf16.msra.mxu0 0
      %364 = vmatprep.subr.bf16.mxu0 0
      %365 = vmatpush2.bf16.msra.mxu0 0
      %366 = vmatprep.subr.bf16.mxu0 0
      %367 = vmatpush2.bf16.msra.mxu0 0
      %368 = vmatprep.mubr.bf16.mxu0 0
      %369 = vmatmul.mubr.bf16.gmra.mxu0 %v334
      %v370 = vpop.f32.mrf.mxu0
      %v371 = vadd.f32 %v318, %v370
      %v372 = vpop.f32.mrf.mxu0
      %v373 = vpop.f32.mrf.mxu0
      %v374 = vpop.f32.mrf.mxu0
      %375 = vdwg.mxu0
      %v376 = vpack.c.bf16 %v371, %v371
      %vm377 = vcmask 779264
      %378 = vst.msk [vmem:[#allocation2] sm:$0x3] %vm377, %v376
      %v379 = vld [vmem:[#allocation2] sm:$0x3]
      %v382 = vunpack.c.l.s4 1983009808
      %v383 = vunpack.c.0.s8 %v382
      %v384 = vlaneseq
      %v385 = vshrl.u32 %v384, 7
      %v386 = vsub.s32 %v383, %v385
      %v387 = vrot.slane %v379, %v386
      %388 = vrot.lane.b32.xlu0 %v387, 96
      %v389 = vpop.permute.xlu0 %388
      %vm390 = vcmask 64512
      %v392 = vsel %vm390, %v379, 0
      %v395 = vsel %vm390, %v389, 0
      %397 = vmatprep.subr.bf16.mxu0 0
      %398 = vmatpush1.bf16.xpose.msra.mxu0 0
      %399 = vmatprep.subr.bf16.mxu0 0
      %400 = vmatpush1.bf16.xpose.msra.mxu0 0
      %401 = vmatprep.subr.bf16.mxu0 0
      %402 = vmatpush1.bf16.xpose.msra.mxu0 0
      %403 = vmatprep.subr.bf16.mxu0 0
      %404 = vmatpush1.bf16.xpose.msra.mxu0 0
      %405 = vmatprep.subr.bf16.mxu0 0
      %406 = vmatpush1.bf16.xpose.msra.mxu0 0
      %407 = vmatprep.subr.bf16.mxu0 0
      %408 = vmatpush1.bf16.xpose.msra.mxu0 0
      %409 = vmatprep.subr.bf16.mxu0 0
      %410 = vmatpush1.bf16.xpose.msra.mxu0 0
      %411 = vmatprep.subr.bf16.mxu0 0
      %412 = vmatpush1.bf16.xpose.msra.mxu0 %v395
      %413 = vmatprep.subr.bf16.mxu0 0
      %414 = vmatpush2.bf16.xpose.msra.mxu0 0
      %415 = vmatprep.subr.bf16.mxu0 0
      %416 = vmatpush2.bf16.xpose.msra.mxu0 0
      %417 = vmatprep.subr.bf16.mxu0 0
      %418 = vmatpush2.bf16.xpose.msra.mxu0 0
      %419 = vmatprep.subr.bf16.mxu0 0
      %420 = vmatpush2.bf16.xpose.msra.mxu0 0
      %421 = vmatprep.subr.bf16.mxu0 0
      %422 = vmatpush2.bf16.xpose.msra.mxu0 0
      %423 = vmatprep.subr.bf16.mxu0 0
      %424 = vmatpush2.bf16.xpose.msra.mxu0 0
      %425 = vmatprep.subr.bf16.mxu0 0
      %426 = vmatpush2.bf16.xpose.msra.mxu0 0
      %427 = vmatprep.subr.bf16.mxu0 0
      %428 = vmatpush2.bf16.xpose.msra.mxu0 0
      %429 = vmatprep.mubr.bf16.mxu0 0
      %430 = vmatmul.mubr.bf16.gmra.mxu0 %v392
      %v431 = vpop.f32.mrf.mxu0
      %v432 = vadd.f32 0.0, %v431
      %v433 = vpop.f32.mrf.mxu0
      %v434 = vpop.f32.mrf.mxu0
      %v435 = vpop.f32.mrf.mxu0
      %436 = vdwg.mxu0
      %v437 = vmul.f32 %v432, 0.35355338
      %vm438 = vcmask 27648
      %v439 = vsel %vm438, %v437, -inf
      %440 = vmax.xlane.f32.xlu0 %v439
      %v441 = vpop.xlane.xlu0 %440
      %v442 = vsub.f32 %v437, %v441
      %v443 = vmul.f32 %v442, 1.442695
      %v444 = vpow.pop %v443
      %v445 = vsel %vm438, %v444, 0.0
      %446 = vadd.xlane.f32.xlu0 %v445
      %v447 = vpop.xlane.xlu0 %446
      %v448 = vrcp.pop %v447
      %v449 = vmul.f32 %v444, %v448
      %v450 = vpack.c.bf16 %v449, %v449
      %451 = vrot.lane.b32.xlu0 %v387, 64
      %v452 = vpop.permute.xlu0 %451
      %vm453 = vcmask 31744
      %v455 = vsel %vm453, %v450, 0
      %vm457 = vcmask 1041408
      %v459 = vsel %vm457, %v452, 0
      %461 = vmatprep.subr.bf16.mxu0 0
      %462 = vmatpush1.bf16.msra.mxu0 0
      %463 = vmatprep.subr.bf16.mxu0 0
      %464 = vmatpush1.bf16.msra.mxu0 0
      %465 = vmatprep.subr.bf16.mxu0 0
      %466 = vmatpush1.bf16.msra.mxu0 0
      %467 = vmatprep.subr.bf16.mxu0 0
      %468 = vmatpush1.bf16.msra.mxu0 0
      %469 = vmatprep.subr.bf16.mxu0 0
      %470 = vmatpush1.bf16.msra.mxu0 0
      %471 = vmatprep.subr.bf16.mxu0 0
      %472 = vmatpush1.bf16.msra.mxu0 0
      %473 = vmatprep.subr.bf16.mxu0 0
      %474 = vmatpush1.bf16.msra.mxu0 0
      %475 = vmatprep.subr.bf16.mxu0 0
      %476 = vmatpush1.bf16.msra.mxu0 %v459
      %477 = vmatprep.subr.bf16.mxu0 0
      %478 = vmatpush2.bf16.msra.mxu0 0
      %479 = vmatprep.subr.bf16.mxu0 0
      %480 = vmatpush2.bf16.msra.mxu0 0
      %481 = vmatprep.subr.bf16.mxu0 0
      %482 = vmatpush2.bf16.msra.mxu0 0
      %483 = vmatprep.subr.bf16.mxu0 0
      %484 = vmatpush2.bf16.msra.mxu0 0
      %485 = vmatprep.subr.bf16.mxu0 0
      %486 = vmatpush2.bf16.msra.mxu0 0
      %487 = vmatprep.subr.bf16.mxu0 0
      %488 = vmatpush2.bf16.msra.mxu0 0
      %489 = vmatprep.subr.bf16.mxu0 0
      %490 = vmatpush2.bf16.msra.mxu0 0
      %491 = vmatprep.subr.bf16.mxu0 0
      %492 = vmatpush2.bf16.msra.mxu0 0
      %493 = vmatprep.mubr.bf16.mxu0 0
      %494 = vmatmul.mubr.bf16.gmra.mxu0 %v455
      %v495 = vpop.f32.mrf.mxu0
      %v496 = vadd.f32 0.0, %v495
      %v497 = vpop.f32.mrf.mxu0
      %v498 = vpop.f32.mrf.mxu0
      %v499 = vpop.f32.mrf.mxu0
      %500 = vdwg.mxu0
      %v501 = vpack.c.bf16 %v496, %v496
      %vm502 = vcmask 58368
      %503 = vst.msk [vmem:[#allocation3] sm:$0x3] %vm502, %v501
      %v504 = vld [vmem:[#allocation2] sm:$0x3]
      %v507 = vunpack.c.l.s4 1983009808
      %v508 = vunpack.c.0.s8 %v507
      %v509 = vlaneseq
      %v510 = vshrl.u32 %v509, 7
      %v511 = vsub.s32 %v508, %v510
      %v512 = vrot.slane %v504, %v511
      %513 = vrot.lane.b32.xlu0 %v512, 120
      %v514 = vpop.permute.xlu0 %513
      %515 = vrot.lane.b32.xlu0 %v512, 88
      %v516 = vpop.permute.xlu0 %515
      %v518 = vsel %vm390, %v514, 0
      %v521 = vsel %vm390, %v516, 0
      %523 = vmatprep.subr.bf16.mxu0 0
      %524 = vmatpush1.bf16.xpose.msra.mxu0 0
      %525 = vmatprep.subr.bf16.mxu0 0
      %526 = vmatpush1.bf16.xpose.msra.mxu0 0
      %527 = vmatprep.subr.bf16.mxu0 0
      %528 = vmatpush1.bf16.xpose.msra.mxu0 0
      %529 = vmatprep.subr.bf16.mxu0 0
      %530 = vmatpush1.bf16.xpose.msra.mxu0 0
      %531 = vmatprep.subr.bf16.mxu0 0
      %532 = vmatpush1.bf16.xpose.msra.mxu0 0
      %533 = vmatprep.subr.bf16.mxu0 0
      %534 = vmatpush1.bf16.xpose.msra.mxu0 0
      %535 = vmatprep.subr.bf16.mxu0 0
      %536 = vmatpush1.bf16.xpose.msra.mxu0 0
      %537 = vmatprep.subr.bf16.mxu0 0
      %538 = vmatpush1.bf16.xpose.msra.mxu0 %v521
      %539 = vmatprep.subr.bf16.mxu0 0
      %540 = vmatpush2.bf16.xpose.msra.mxu0 0
      %541 = vmatprep.subr.bf16.mxu0 0
      %542 = vmatpush2.bf16.xpose.msra.mxu0 0
      %543 = vmatprep.subr.bf16.mxu0 0
      %544 = vmatpush2.bf16.xpose.msra.mxu0 0
      %545 = vmatprep.subr.bf16.mxu0 0
      %546 = vmatpush2.bf16.xpose.msra.mxu0 0
      %547 = vmatprep.subr.bf16.mxu0 0
      %548 = vmatpush2.bf16.xpose.msra.mxu0 0
      %549 = vmatprep.subr.bf16.mxu0 0
      %550 = vmatpush2.bf16.xpose.msra.mxu0 0
      %551 = vmatprep.subr.bf16.mxu0 0
      %552 = vmatpush2.bf16.xpose.msra.mxu0 0
      %553 = vmatprep.subr.bf16.mxu0 0
      %554 = vmatpush2.bf16.xpose.msra.mxu0 0
      %555 = vmatprep.mubr.bf16.mxu0 0
      %556 = vmatmul.mubr.bf16.gmra.mxu0 %v518
      %v557 = vpop.f32.mrf.mxu0
      %v558 = vadd.f32 0.0, %v557
      %v559 = vpop.f32.mrf.mxu0
      %v560 = vpop.f32.mrf.mxu0
      %v561 = vpop.f32.mrf.mxu0
      %562 = vdwg.mxu0
      %v563 = vmul.f32 %v558, 0.35355338
      %v564 = vsel %vm438, %v563, -inf
      %565 = vmax.xlane.f32.xlu0 %v564
      %v566 = vpop.xlane.xlu0 %565
      %v567 = vsub.f32 %v563, %v566
      %v568 = vmul.f32 %v567, 1.442695
      %v569 = vpow.pop %v568
      %v570 = vsel %vm438, %v569, 0.0
      %571 = vadd.xlane.f32.xlu0 %v570
      %v572 = vpop.xlane.xlu0 %571
      %v573 = vrcp.pop %v572
      %v574 = vmul.f32 %v569, %v573
      %v575 = vpack.c.bf16 %v574, %v574
      %576 = vrot.lane.b32.xlu0 %v512, 56
      %v577 = vpop.permute.xlu0 %576
      %v579 = vsel %vm453, %v575, 0
      %v582 = vsel %vm457, %v577, 0
      %584 = vmatprep.subr.bf16.mxu0 0
      %585 = vmatpush1.bf16.msra.mxu0 0
      %586 = vmatprep.subr.bf16.mxu0 0
      %587 = vmatpush1.bf16.msra.mxu0 0
      %588 = vmatprep.subr.bf16.mxu0 0
      %589 = vmatpush1.bf16.msra.mxu0 0
      %590 = vmatprep.subr.bf16.mxu0 0
      %591 = vmatpush1.bf16.msra.mxu0 0
      %592 = vmatprep.subr.bf16.mxu0 0
      %593 = vmatpush1.bf16.msra.mxu0 0
      %594 = vmatprep.subr.bf16.mxu0 0
      %595 = vmatpush1.bf16.msra.mxu0 0
      %596 = vmatprep.subr.bf16.mxu0 0
      %597 = vmatpush1.bf16.msra.mxu0 0
      %598 = vmatprep.subr.bf16.mxu0 0
      %599 = vmatpush1.bf16.msra.mxu0 %v582
      %600 = vmatprep.subr.bf16.mxu0 0
      %601 = vmatpush2.bf16.msra.mxu0 0
      %602 = vmatprep.subr.bf16.mxu0 0
      %603 = vmatpush2.bf16.msra.mxu0 0
      %604 = vmatprep.subr.bf16.mxu0 0
      %605 = vmatpush2.bf16.msra.mxu0 0
      %606 = vmatprep.subr.bf16.mxu0 0
      %607 = vmatpush2.bf16.msra.mxu0 0
      %608 = vmatprep.subr.bf16.mxu0 0
      %609 = vmatpush2.bf16.msra.mxu0 0
      %610 = vmatprep.subr.bf16.mxu0 0
      %611 = vmatpush2.bf16.msra.mxu0 0
      %612 = vmatprep.subr.bf16.mxu0 0
      %613 = vmatpush2.bf16.msra.mxu0 0
      %614 = vmatprep.subr.bf16.mxu0 0
      %615 = vmatpush2.bf16.msra.mxu0 0
      %616 = vmatprep.mubr.bf16.mxu0 0
      %617 = vmatmul.mubr.bf16.gmra.mxu0 %v579
      %v618 = vpop.f32.mrf.mxu0
      %v619 = vadd.f32 0.0, %v618
      %v620 = vpop.f32.mrf.mxu0
      %v621 = vpop.f32.mrf.mxu0
      %v622 = vpop.f32.mrf.mxu0
      %623 = vdwg.mxu0
      %v624 = vpack.c.bf16 %v619, %v619
      %v627 = vunpack.c.l.s4 1983009808
      %v628 = vunpack.c.0.s8 %v627
      %v629 = vlaneseq
      %v630 = vshrl.u32 %v629, 7
      %v631 = vsub.s32 %v628, %v630
      %v632 = vrot.slane %v624, %v631
      %633 = vrot.lane.b32.xlu0 %v632, 8
      %v634 = vpop.permute.xlu0 %633
      %vm636 = vcmask 123968
      %637 = vst.msk [vmem:[#allocation3] sm:$0x3] %vm636, %v634
      %v638 = vld [vmem:[#allocation2] sm:$0x3]
      %v641 = vunpack.c.l.s4 1983009808
      %v642 = vunpack.c.0.s8 %v641
      %v643 = vlaneseq
      %v644 = vshrl.u32 %v643, 7
      %v645 = vsub.s32 %v642, %v644
      %v646 = vrot.slane %v638, %v645
      %647 = vrot.lane.b32.xlu0 %v646, 112
      %v648 = vpop.permute.xlu0 %647
      %649 = vrot.lane.b32.xlu0 %v646, 80
      %v650 = vpop.permute.xlu0 %649
      %v652 = vsel %vm390, %v648, 0
      %v655 = vsel %vm390, %v650, 0
      %657 = vmatprep.subr.bf16.mxu0 0
      %658 = vmatpush1.bf16.xpose.msra.mxu0 0
      %659 = vmatprep.subr.bf16.mxu0 0
      %660 = vmatpush1.bf16.xpose.msra.mxu0 0
      %661 = vmatprep.subr.bf16.mxu0 0
      %662 = vmatpush1.bf16.xpose.msra.mxu0 0
      %663 = vmatprep.subr.bf16.mxu0 0
      %664 = vmatpush1.bf16.xpose.msra.mxu0 0
      %665 = vmatprep.subr.bf16.mxu0 0
      %666 = vmatpush1.bf16.xpose.msra.mxu0 0
      %667 = vmatprep.subr.bf16.mxu0 0
      %668 = vmatpush1.bf16.xpose.msra.mxu0 0
      %669 = vmatprep.subr.bf16.mxu0 0
      %670 = vmatpush1.bf16.xpose.msra.mxu0 0
      %671 = vmatprep.subr.bf16.mxu0 0
      %672 = vmatpush1.bf16.xpose.msra.mxu0 %v655
      %673 = vmatprep.subr.bf16.mxu0 0
      %674 = vmatpush2.bf16.xpose.msra.mxu0 0
      %675 = vmatprep.subr.bf16.mxu0 0
      %676 = vmatpush2.bf16.xpose.msra.mxu0 0
      %677 = vmatprep.subr.bf16.mxu0 0
      %678 = vmatpush2.bf16.xpose.msra.mxu0 0
      %679 = vmatprep.subr.bf16.mxu0 0
      %680 = vmatpush2.bf16.xpose.msra.mxu0 0
      %681 = vmatprep.subr.bf16.mxu0 0
      %682 = vmatpush2.bf16.xpose.msra.mxu0 0
      %683 = vmatprep.subr.bf16.mxu0 0
      %684 = vmatpush2.bf16.xpose.msra.mxu0 0
      %685 = vmatprep.subr.bf16.mxu0 0
      %686 = vmatpush2.bf16.xpose.msra.mxu0 0
      %687 = vmatprep.subr.bf16.mxu0 0
      %688 = vmatpush2.bf16.xpose.msra.mxu0 0
      %689 = vmatprep.mubr.bf16.mxu0 0
      %690 = vmatmul.mubr.bf16.gmra.mxu0 %v652
      %v691 = vpop.f32.mrf.mxu0
      %v692 = vadd.f32 0.0, %v691
      %v693 = vpop.f32.mrf.mxu0
      %v694 = vpop.f32.mrf.mxu0
      %v695 = vpop.f32.mrf.mxu0
      %696 = vdwg.mxu0
      %v697 = vmul.f32 %v692, 0.35355338
      %v698 = vsel %vm438, %v697, -inf
      %699 = vmax.xlane.f32.xlu0 %v698
      %v700 = vpop.xlane.xlu0 %699
      %v701 = vsub.f32 %v697, %v700
      %v702 = vmul.f32 %v701, 1.442695
      %v703 = vpow.pop %v702
      %v704 = vsel %vm438, %v703, 0.0
      %705 = vadd.xlane.f32.xlu0 %v704
      %v706 = vpop.xlane.xlu0 %705
      %v707 = vrcp.pop %v706
      %v708 = vmul.f32 %v703, %v707
      %v709 = vpack.c.bf16 %v708, %v708
      %710 = vrot.lane.b32.xlu0 %v646, 48
      %v711 = vpop.permute.xlu0 %710
      %v713 = vsel %vm453, %v709, 0
      %v716 = vsel %vm457, %v711, 0
      %718 = vmatprep.subr.bf16.mxu0 0
      %719 = vmatpush1.bf16.msra.mxu0 0
      %720 = vmatprep.subr.bf16.mxu0 0
      %721 = vmatpush1.bf16.msra.mxu0 0
      %722 = vmatprep.subr.bf16.mxu0 0
      %723 = vmatpush1.bf16.msra.mxu0 0
      %724 = vmatprep.subr.bf16.mxu0 0
      %725 = vmatpush1.bf16.msra.mxu0 0
      %726 = vmatprep.subr.bf16.mxu0 0
      %727 = vmatpush1.bf16.msra.mxu0 0
      %728 = vmatprep.subr.bf16.mxu0 0
      %729 = vmatpush1.bf16.msra.mxu0 0
      %730 = vmatprep.subr.bf16.mxu0 0
      %731 = vmatpush1.bf16.msra.mxu0 0
      %732 = vmatprep.subr.bf16.mxu0 0
      %733 = vmatpush1.bf16.msra.mxu0 %v716
      %734 = vmatprep.subr.bf16.mxu0 0
      %735 = vmatpush2.bf16.msra.mxu0 0
      %736 = vmatprep.subr.bf16.mxu0 0
      %737 = vmatpush2.bf16.msra.mxu0 0
      %738 = vmatprep.subr.bf16.mxu0 0
      %739 = vmatpush2.bf16.msra.mxu0 0
      %740 = vmatprep.subr.bf16.mxu0 0
      %741 = vmatpush2.bf16.msra.mxu0 0
      %742 = vmatprep.subr.bf16.mxu0 0
      %743 = vmatpush2.bf16.msra.mxu0 0
      %744 = vmatprep.subr.bf16.mxu0 0
      %745 = vmatpush2.bf16.msra.mxu0 0
      %746 = vmatprep.subr.bf16.mxu0 0
      %747 = vmatpush2.bf16.msra.mxu0 0
      %748 = vmatprep.subr.bf16.mxu0 0
      %749 = vmatpush2.bf16.msra.mxu0 0
      %750 = vmatprep.mubr.bf16.mxu0 0
      %751 = vmatmul.mubr.bf16.gmra.mxu0 %v713
      %v752 = vpop.f32.mrf.mxu0
      %v753 = vadd.f32 0.0, %v752
      %v754 = vpop.f32.mrf.mxu0
      %v755 = vpop.f32.mrf.mxu0
      %v756 = vpop.f32.mrf.mxu0
      %757 = vdwg.mxu0
      %v758 = vpack.c.bf16 %v753, %v753
      %v761 = vunpack.c.l.s4 1983009808
      %v762 = vunpack.c.0.s8 %v761
      %v763 = vlaneseq
      %v764 = vshrl.u32 %v763, 7
      %v765 = vsub.s32 %v762, %v764
      %v766 = vrot.slane %v758, %v765
      %767 = vrot.lane.b32.xlu0 %v766, 16
      %v768 = vpop.permute.xlu0 %767
      %vm770 = vcmask 189568
      %771 = vst.msk [vmem:[#allocation3] sm:$0x3] %vm770, %v768
      %v772 = vld [vmem:[#allocation2] sm:$0x3]
      %v775 = vunpack.c.l.s4 1983009808
      %v776 = vunpack.c.0.s8 %v775
      %v777 = vlaneseq
      %v778 = vshrl.u32 %v777, 7
      %v779 = vsub.s32 %v776, %v778
      %v780 = vrot.slane %v772, %v779
      %781 = vrot.lane.b32.xlu0 %v780, 104
      %v782 = vpop.permute.xlu0 %781
      %783 = vrot.lane.b32.xlu0 %v780, 72
      %v784 = vpop.permute.xlu0 %783
      %v786 = vsel %vm390, %v782, 0
      %v789 = vsel %vm390, %v784, 0
      %791 = vmatprep.subr.bf16.mxu0 0
      %792 = vmatpush1.bf16.xpose.msra.mxu0 0
      %793 = vmatprep.subr.bf16.mxu0 0
      %794 = vmatpush1.bf16.xpose.msra.mxu0 0
      %795 = vmatprep.subr.bf16.mxu0 0
      %796 = vmatpush1.bf16.xpose.msra.mxu0 0
      %797 = vmatprep.subr.bf16.mxu0 0
      %798 = vmatpush1.bf16.xpose.msra.mxu0 0
      %799 = vmatprep.subr.bf16.mxu0 0
      %800 = vmatpush1.bf16.xpose.msra.mxu0 0
      %801 = vmatprep.subr.bf16.mxu0 0
      %802 = vmatpush1.bf16.xpose.msra.mxu0 0
      %803 = vmatprep.subr.bf16.mxu0 0
      %804 = vmatpush1.bf16.xpose.msra.mxu0 0
      %805 = vmatprep.subr.bf16.mxu0 0
      %806 = vmatpush1.bf16.xpose.msra.mxu0 %v789
      %807 = vmatprep.subr.bf16.mxu0 0
      %808 = vmatpush2.bf16.xpose.msra.mxu0 0
      %809 = vmatprep.subr.bf16.mxu0 0
      %810 = vmatpush2.bf16.xpose.msra.mxu0 0
      %811 = vmatprep.subr.bf16.mxu0 0
      %812 = vmatpush2.bf16.xpose.msra.mxu0 0
      %813 = vmatprep.subr.bf16.mxu0 0
      %814 = vmatpush2.bf16.xpose.msra.mxu0 0
      %815 = vmatprep.subr.bf16.mxu0 0
      %816 = vmatpush2.bf16.xpose.msra.mxu0 0
      %817 = vmatprep.subr.bf16.mxu0 0
      %818 = vmatpush2.bf16.xpose.msra.mxu0 0
      %819 = vmatprep.subr.bf16.mxu0 0
      %820 = vmatpush2.bf16.xpose.msra.mxu0 0
      %821 = vmatprep.subr.bf16.mxu0 0
      %822 = vmatpush2.bf16.xpose.msra.mxu0 0
      %823 = vmatprep.mubr.bf16.mxu0 0
      %824 = vmatmul.mubr.bf16.gmra.mxu0 %v786
      %v825 = vpop.f32.mrf.mxu0
      %v826 = vadd.f32 0.0, %v825
      %v827 = vpop.f32.mrf.mxu0
      %v828 = vpop.f32.mrf.mxu0
      %v829 = vpop.f32.mrf.mxu0
      %830 = vdwg.mxu0
      %v831 = vmul.f32 %v826, 0.35355338
      %v832 = vsel %vm438, %v831, -inf
      %833 = vmax.xlane.f32.xlu0 %v832
      %v834 = vpop.xlane.xlu0 %833
      %v835 = vsub.f32 %v831, %v834
      %v836 = vmul.f32 %v835, 1.442695
      %v837 = vpow.pop %v836
      %v838 = vsel %vm438, %v837, 0.0
      %839 = vadd.xlane.f32.xlu0 %v838
      %v840 = vpop.xlane.xlu0 %839
      %v841 = vrcp.pop %v840
      %v842 = vmul.f32 %v837, %v841
      %v843 = vpack.c.bf16 %v842, %v842
      %844 = vrot.lane.b32.xlu0 %v780, 40
      %v845 = vpop.permute.xlu0 %844
      %v847 = vsel %vm453, %v843, 0
      %v850 = vsel %vm457, %v845, 0
      %852 = vmatprep.subr.bf16.mxu0 0
      %853 = vmatpush1.bf16.msra.mxu0 0
      %854 = vmatprep.subr.bf16.mxu0 0
      %855 = vmatpush1.bf16.msra.mxu0 0
      %856 = vmatprep.subr.bf16.mxu0 0
      %857 = vmatpush1.bf16.msra.mxu0 0
      %858 = vmatprep.subr.bf16.mxu0 0
      %859 = vmatpush1.bf16.msra.mxu0 0
      %860 = vmatprep.subr.bf16.mxu0 0
      %861 = vmatpush1.bf16.msra.mxu0 0
      %862 = vmatprep.subr.bf16.mxu0 0
      %863 = vmatpush1.bf16.msra.mxu0 0
      %864 = vmatprep.subr.bf16.mxu0 0
      %865 = vmatpush1.bf16.msra.mxu0 0
      %866 = vmatprep.subr.bf16.mxu0 0
      %867 = vmatpush1.bf16.msra.mxu0 %v850
      %868 = vmatprep.subr.bf16.mxu0 0
      %869 = vmatpush2.bf16.msra.mxu0 0
      %870 = vmatprep.subr.bf16.mxu0 0
      %871 = vmatpush2.bf16.msra.mxu0 0
      %872 = vmatprep.subr.bf16.mxu0 0
      %873 = vmatpush2.bf16.msra.mxu0 0
      %874 = vmatprep.subr.bf16.mxu0 0
      %875 = vmatpush2.bf16.msra.mxu0 0
      %876 = vmatprep.subr.bf16.mxu0 0
      %877 = vmatpush2.bf16.msra.mxu0 0
      %878 = vmatprep.subr.bf16.mxu0 0
      %879 = vmatpush2.bf16.msra.mxu0 0
      %880 = vmatprep.subr.bf16.mxu0 0
      %881 = vmatpush2.bf16.msra.mxu0 0
      %882 = vmatprep.subr.bf16.mxu0 0
      %883 = vmatpush2.bf16.msra.mxu0 0
      %884 = vmatprep.mubr.bf16.mxu0 0
      %885 = vmatmul.mubr.bf16.gmra.mxu0 %v847
      %v886 = vpop.f32.mrf.mxu0
      %v887 = vadd.f32 0.0, %v886
      %v888 = vpop.f32.mrf.mxu0
      %v889 = vpop.f32.mrf.mxu0
      %v890 = vpop.f32.mrf.mxu0
      %891 = vdwg.mxu0
      %v892 = vpack.c.bf16 %v887, %v887
      %v895 = vunpack.c.l.s4 1983009808
      %v896 = vunpack.c.0.s8 %v895
      %v897 = vlaneseq
      %v898 = vshrl.u32 %v897, 7
      %v899 = vsub.s32 %v896, %v898
      %v900 = vrot.slane %v892, %v899
      %901 = vrot.lane.b32.xlu0 %v900, 24
      %v902 = vpop.permute.xlu0 %901
      %vm904 = vcmask 255168
      %905 = vst.msk [vmem:[#allocation3] sm:$0x3] %vm904, %v902
      %v906 = vld [vmem:[#allocation3] sm:$0x3]
      %v907 = vld [vmem:[%s5] sm:$0xf]
      %v908 = vld [vmem:[%s5 + $0x4] sm:$0xf]
      %v909 = vld [vmem:[%s5 + $0x8] sm:$0xf]
      %v910 = vld [vmem:[%s5 + $0xc] sm:$0xf]
      %v911 = vld [vmem:[%s6] sm:$0x1]
      %v913 = vlaneseq
      %v914 = vshrl.u32 %v913, 7
      %v915 = vsub.s32 0, %v914
      %v916 = vrot.slane %v911, %v915
      %v922 = vunpack.c.l.b16 %v907
      %v923 = vunpack.c.l.b16 %v908
      %v924 = vunpack.c.l.b16 %v909
      %v925 = vunpack.c.l.b16 %v910
      %v926 = vpack.c.b16 %v923, %v922
      %v927 = vpack.c.b16 %v925, %v924
      %v931 = vsel %vm332, %v906, 0
      %933 = vmatprep.subr.bf16.mxu0 0
      %934 = vmatpush1.bf16.msra.mxu0 0
      %935 = vmatprep.subr.bf16.mxu0 0
      %936 = vmatpush1.bf16.msra.mxu0 0
      %937 = vmatprep.subr.bf16.mxu0 0
      %938 = vmatpush1.bf16.msra.mxu0 0
      %939 = vmatprep.subr.bf16.mxu0 0
      %940 = vmatpush1.bf16.msra.mxu0 0
      %941 = vmatprep.subr.bf16.mxu0 0
      %942 = vmatpush1.bf16.msra.mxu0 0
      %943 = vmatprep.subr.bf16.mxu0 0
      %944 = vmatpush1.bf16.msra.mxu0 0
      %945 = vmatprep.subr.bf16.mxu0 0
      %946 = vmatpush1.bf16.msra.mxu0 %v927
      %947 = vmatprep.subr.bf16.mxu0 0
      %948 = vmatpush1.bf16.msra.mxu0 %v926
      %949 = vmatprep.subr.bf16.mxu0 0
      %950 = vmatpush2.bf16.msra.mxu0 0
      %951 = vmatprep.subr.bf16.mxu0 0
      %952 = vmatpush2.bf16.msra.mxu0 0
      %953 = vmatprep.subr.bf16.mxu0 0
      %954 = vmatpush2.bf16.msra.mxu0 0
      %955 = vmatprep.subr.bf16.mxu0 0
      %956 = vmatpush2.bf16.msra.mxu0 0
      %957 = vmatprep.subr.bf16.mxu0 0
      %958 = vmatpush2.bf16.msra.mxu0 0
      %959 = vmatprep.subr.bf16.mxu0 0
      %960 = vmatpush2.bf16.msra.mxu0 0
      %961 = vmatprep.subr.bf16.mxu0 0
      %962 = vmatpush2.bf16.msra.mxu0 0
      %963 = vmatprep.subr.bf16.mxu0 0
      %964 = vmatpush2.bf16.msra.mxu0 0
      %965 = vmatprep.mubr.bf16.mxu0 0
      %966 = vmatmul.mubr.bf16.gmra.mxu0 %v931
      %v967 = vpop.f32.mrf.mxu0
      %v968 = vadd.f32 %v916, %v967
      %v969 = vpop.f32.mrf.mxu0
      %v970 = vpop.f32.mrf.mxu0
      %v971 = vpop.f32.mrf.mxu0
      %972 = vdwg.mxu0
      %v973 = vadd.f32 %v276, %v968
      %v974 = vpack.c.bf16 %v973, %v973
      %vm975 = vcmask 254976
      %976 = vst.msk [vmem:[%s273] sm:$0x3] %vm975, %v974
      %p977 = scmp.lt.s32.totalorder %s18, 1
      %s978 = scalar_select %p977, %s18, 1
      %s979 = smul.addr %s978, 2
      %s980 = scalar_lea.vmem %s7, %s979
      // Predicated region
      $region49: #{conformer_encoder_apply.11} parent=47 // pred_check
        %p981 = pneg %p188
      $region50: #{conformer_encoder_apply.11} parent=47 // pred_check_branch
        %983 = sbr.rel (%p981) target = $region52
      $region51: #{conformer_encoder_apply.11} parent=47 // pred_region
        _
      $region52: #{conformer_encoder_apply.11} parent=47 // pred_fallthru
        _
    $region48: #{conformer_encoder_apply.11} parent=5 // pred_fallthru
      _
    %p984 = scmp.le.s32.totalorder 2, %s13
    // Predicated region
    $region53: #{conformer_encoder_apply.11} parent=5 // pred_check
      %p985 = pneg %p984
    $region54: #{conformer_encoder_apply.11} parent=5 // pred_check_branch
      %987 = sbr.rel (%p985) target = $region56
    $region55: #{conformer_encoder_apply.11} parent=5 // pred_region
      %s988 = ssub.s32 %s13, 2
      // Predicated region
      $region57: #{conformer_encoder_apply.11} parent=55 // pred_check
        %p989 = pneg %p194
      $region58: #{conformer_encoder_apply.11} parent=55 // pred_check_branch
        %991 = sbr.rel (%p989) target = $region60
      $region59: #{conformer_encoder_apply.11} parent=55 // pred_region
        %p992 = scmp.lt.s32.totalorder %s19, 1
        %s993 = scalar_select %p992, %s19, 1
        %s994 = smul.addr %s993, 2
        %s995 = scalar_lea.vmem %s7, %s994
      $region60: #{conformer_encoder_apply.11} parent=55 // pred_fallthru
        _
    $region56: #{conformer_encoder_apply.11} parent=5 // pred_fallthru
      _
  $region6: #{conformer_encoder_apply.11} parent=0 // loop_footer
    %s17 = sadd.s32 1, %s13
  $region7: #{conformer_encoder_apply.11} parent=0 // loop_footer_branch
    %12 = sbr.rel target = $region3
  $region8: #{conformer_encoder_apply.11} parent=0 // loop_exit
    _

// kernel: conformer_encoder_apply.12
$region0: #{conformer_encoder_apply.12}
  #allocation0 [shape = 'u32[]', space=smem, size = 0x4, offset = 0x4, fixed_abs, tag = 'smem constant byte address 0x4 - core index']
  #allocation1 [shape = 'u32[144,128]{1,0:T(1,128)}', space=vmem, size = 0x12000, scoped, tag = 'internal scratch']
  #allocation2 [shape = 'f32[10,32]{1,0:T(8,128)}', space=vmem, size = 0x2000, scoped, tag = 'scratch operand']
  %s0 = inlined_call_operand.vmem [shape: bf16[2,4,32], index: 0, kind: input, shape index: {}, may-alias: {0,11}]
  %s1 = inlined_call_operand.vmem [shape: f32[1,32], index: 1, kind: input, shape index: {}]
  %s2 = inlined_call_operand.vmem [shape: f32[1,32], index: 2, kind: input, shape index: {}]
  %s3 = inlined_call_operand.vmem [shape: bf16[32,64], index: 3, kind: input, shape index: {}]
  %s4 = inlined_call_operand.vmem [shape: f32[1,64], index: 4, kind: input, shape index: {}]
  %s5 = inlined_call_operand.vmem [shape: f32[7,32], index: 5, kind: input, shape index: {}]
  %s6 = inlined_call_operand.vmem [shape: f32[1,32], index: 6, kind: input, shape index: {}]
  %s7 = inlined_call_operand.vmem [shape: f32[1,32], index: 7, kind: input, shape index: {}]
  %s8 = inlined_call_operand.vmem [shape: f32[1,32], index: 8, kind: input, shape index: {}]
  %s9 = inlined_call_operand.vmem [shape: bf16[32,32], index: 9, kind: input, shape index: {}]
  %s10 = inlined_call_operand.vmem [shape: f32[1,32], index: 10, kind: input, shape index: {}]
  %s11 = inlined_call_operand.vmem [shape: bf16[2,4,32], index: 11, kind: output, shape index: {}, may-alias: {0,11}]
  %s12 = sld [smem:[#allocation0]]
  $region77: #{conformer_encoder_apply.12} parent=0
    _
  %s14 = ssub.s32 1, %s12
  %s15 = scalar_select 0, %s14, %s12
  loop: start=0, step=1, limit=4
  $region2: #{conformer_encoder_apply.12} parent=0 // loop_pre_header
    _
  $region3: #{conformer_encoder_apply.12} parent=0 // loop_header
    %s17 = sphi 0, %s21
    %p18 = scmp.ge.s32.totalorder %s17, 4
    %s27 = sphi 0, %s29
    %s30 = sphi 0, %s27
    %s31 = sphi 0, %s30
    %s47 = sphi 0, %s31
    %s51 = sphi 0, %s51
    %s53 = sphi 0, %s51
    %s54 = sphi 0, %s53
    %s68 = sphi 0, %s54
    %s72 = sphi 0, %s72
    %s74 = sphi 0, %s72
    %s75 = sphi 0, %s74
    %s89 = sphi 0, %s75
    %s93 = sphi 0, %s93
    %s95 = sphi 0, %s93
    %s96 = sphi 0, %s95
    %s110 = sphi 0, %s96
    %s114 = sphi 0, %s114
    %s116 = sphi 0, %s114
    %s117 = sphi 0, %s116
    %s131 = sphi 0, %s117
    %s135 = sphi 0, %s135
    %s137 = sphi 0, %s135
    %s138 = sphi 0, %s137
    %s152 = sphi 0, %s138
    %s156 = sphi 0, %s156
    %s158 = sphi 0, %s156
    %s159 = sphi 0, %s158
    %s173 = sphi 0, %s159
    %s177 = sphi 0, %s177
    %s179 = sphi 0, %s177
    %s180 = sphi 0, %s179
    %s194 = sphi 0, %s180
    %s198 = sphi 0, %s198
    %s200 = sphi 0, %s198
    %s201 = sphi 0, %s200
    %s215 = sphi 0, %s201
    %s219 = sphi 0, %s219
    %s221 = sphi 0, %s219
    %s222 = sphi 0, %s221
    %s236 = sphi 0, %s222
    %s240 = sphi 0, %s240
    %s242 = sphi 0, %s240
    %s243 = sphi 0, %s242
    %s257 = sphi 0, %s243
    %s263 = sphi 0, %s265
    %s266 = sphi 0, %s263
    %s267 = sphi 0, %s266
    %s283 = sphi 0, %s267
  $region4: #{conformer_encoder_apply.12} parent=0 // loop_header_branch
    %20 = sbr.rel (%p18) target = $region8
  $region5: #{conformer_encoder_apply.12} parent=0 // loop_body
    %s22 = ssub.s32 %s17, 1
    %s23 = ssub.s32 %s17, 2
    %s24 = sadd.s32 %s17, 1
    %s25 = ssub.s32 %s17, %s24
    %p26 = scmp.eq.s32.totalorder %s25, 0
    %s28 = sadd.s32 %s27, 1
    %s29 = scalar_select %p26, %s27, %s28
    %p32 = pneg %p26
    %p33 = scmp.eq.s32.totalorder %s17, 1
    %p34 = por %p32, %p33
    %p35 = scmp.ne.s32.totalorder %s27, %s30
    %p36 = scmp.eq.s32.totalorder %s17, 0
    %p37 = por %p35, %p36
    %p38 = scmp.ne.s32.totalorder %s27, %s30
    %p39 = scmp.eq.s32.totalorder %s22, 1
    %p40 = por %p38, %p39
    %p41 = scmp.ne.s32.totalorder %s30, %s31
    %p42 = scmp.eq.s32.totalorder %s22, 0
    %p43 = por %p41, %p42
    %p44 = scmp.ne.s32.totalorder %s30, %s31
    %p45 = scmp.eq.s32.totalorder %s23, 1
    %p46 = por %p44, %p45
    %p48 = scmp.ne.s32.totalorder %s31, %s47
    %p49 = scmp.eq.s32.totalorder %s23, 0
    %p50 = por %p48, %p49
    %s52 = sadd.s32 %s51, 1
    %p55 = scmp.eq.s32.totalorder %s17, 1
    %p56 = scmp.ne.s32.totalorder %s51, %s53
    %p57 = scmp.eq.s32.totalorder %s17, 0
    %p58 = por %p56, %p57
    %p59 = scmp.ne.s32.totalorder %s51, %s53
    %p60 = scmp.eq.s32.totalorder %s22, 1
    %p61 = por %p59, %p60
    %p62 = scmp.ne.s32.totalorder %s53, %s54
    %p63 = scmp.eq.s32.totalorder %s22, 0
    %p64 = por %p62, %p63
    %p65 = scmp.ne.s32.totalorder %s53, %s54
    %p66 = scmp.eq.s32.totalorder %s23, 1
    %p67 = por %p65, %p66
    %p69 = scmp.ne.s32.totalorder %s54, %s68
    %p70 = scmp.eq.s32.totalorder %s23, 0
    %p71 = por %p69, %p70
    %s73 = sadd.s32 %s72, 1
    %p76 = scmp.eq.s32.totalorder %s17, 1
    %p77 = scmp.ne.s32.totalorder %s72, %s74
    %p78 = scmp.eq.s32.totalorder %s17, 0
    %p79 = por %p77, %p78
    %p80 = scmp.ne.s32.totalorder %s72, %s74
    %p81 = scmp.eq.s32.totalorder %s22, 1
    %p82 = por %p80, %p81
    %p83 = scmp.ne.s32.totalorder %s74, %s75
    %p84 = scmp.eq.s32.totalorder %s22, 0
    %p85 = por %p83, %p84
    %p86 = scmp.ne.s32.totalorder %s74, %s75
    %p87 = scmp.eq.s32.totalorder %s23, 1
    %p88 = por %p86, %p87
    %p90 = scmp.ne.s32.totalorder %s75, %s89
    %p91 = scmp.eq.s32.totalorder %s23, 0
    %p92 = por %p90, %p91
    %s94 = sadd.s32 %s93, 1
    %p97 = scmp.eq.s32.totalorder %s17, 1
    %p98 = scmp.ne.s32.totalorder %s93, %s95
    %p99 = scmp.eq.s32.totalorder %s17, 0
    %p100 = por %p98, %p99
    %p101 = scmp.ne.s32.totalorder %s93, %s95
    %p102 = scmp.eq.s32.totalorder %s22, 1
    %p103 = por %p101, %p102
    %p104 = scmp.ne.s32.totalorder %s95, %s96
    %p105 = scmp.eq.s32.totalorder %s22, 0
    %p106 = por %p104, %p105
    %p107 = scmp.ne.s32.totalorder %s95, %s96
    %p108 = scmp.eq.s32.totalorder %s23, 1
    %p109 = por %p107, %p108
    %p111 = scmp.ne.s32.totalorder %s96, %s110
    %p112 = scmp.eq.s32.totalorder %s23, 0
    %p113 = por %p111, %p112
    %s115 = sadd.s32 %s114, 1
    %p118 = scmp.eq.s32.totalorder %s17, 1
    %p119 = scmp.ne.s32.totalorder %s114, %s116
    %p120 = scmp.eq.s32.totalorder %s17, 0
    %p121 = por %p119, %p120
    %p122 = scmp.ne.s32.totalorder %s114, %s116
    %p123 = scmp.eq.s32.totalorder %s22, 1
    %p124 = por %p122, %p123
    %p125 = scmp.ne.s32.totalorder %s116, %s117
    %p126 = scmp.eq.s32.totalorder %s22, 0
    %p127 = por %p125, %p126
    %p128 = scmp.ne.s32.totalorder %s116, %s117
    %p129 = scmp.eq.s32.totalorder %s23, 1
    %p130 = por %p128, %p129
    %p132 = scmp.ne.s32.totalorder %s117, %s131
    %p133 = scmp.eq.s32.totalorder %s23, 0
    %p134 = por %p132, %p133
    %s136 = sadd.s32 %s135, 1
    %p139 = scmp.eq.s32.totalorder %s17, 1
    %p140 = scmp.ne.s32.totalorder %s135, %s137
    %p141 = scmp.eq.s32.totalorder %s17, 0
    %p142 = por %p140, %p141
    %p143 = scmp.ne.s32.totalorder %s135, %s137
    %p144 = scmp.eq.s32.totalorder %s22, 1
    %p145 = por %p143, %p144
    %p146 = scmp.ne.s32.totalorder %s137, %s138
    %p147 = scmp.eq.s32.totalorder %s22, 0
    %p148 = por %p146, %p147
    %p149 = scmp.ne.s32.totalorder %s137, %s138
    %p150 = scmp.eq.s32.totalorder %s23, 1
    %p151 = por %p149, %p150
    %p153 = scmp.ne.s32.totalorder %s138, %s152
    %p154 = scmp.eq.s32.totalorder %s23, 0
    %p155 = por %p153, %p154
    %s157 = sadd.s32 %s156, 1
    %p160 = scmp.eq.s32.totalorder %s17, 1
    %p161 = scmp.ne.s32.totalorder %s156, %s158
    %p162 = scmp.eq.s32.totalorder %s17, 0
    %p163 = por %p161, %p162
    %p164 = scmp.ne.s32.totalorder %s156, %s158
    %p165 = scmp.eq.s32.totalorder %s22, 1
    %p166 = por %p164, %p165
    %p167 = scmp.ne.s32.totalorder %s158, %s159
    %p168 = scmp.eq.s32.totalorder %s22, 0
    %p169 = por %p167, %p168
    %p170 = scmp.ne.s32.totalorder %s158, %s159
    %p171 = scmp.eq.s32.totalorder %s23, 1
    %p172 = por %p170, %p171
    %p174 = scmp.ne.s32.totalorder %s159, %s173
    %p175 = scmp.eq.s32.totalorder %s23, 0
    %p176 = por %p174, %p175
    %s178 = sadd.s32 %s177, 1
    %p181 = scmp.eq.s32.totalorder %s17, 1
    %p182 = scmp.ne.s32.totalorder %s177, %s179
    %p183 = scmp.eq.s32.totalorder %s17, 0
    %p184 = por %p182, %p183
    %p185 = scmp.ne.s32.totalorder %s177, %s179
    %p186 = scmp.eq.s32.totalorder %s22, 1
    %p187 = por %p185, %p186
    %p188 = scmp.ne.s32.totalorder %s179, %s180
    %p189 = scmp.eq.s32.totalorder %s22, 0
    %p190 = por %p188, %p189
    %p191 = scmp.ne.s32.totalorder %s179, %s180
    %p192 = scmp.eq.s32.totalorder %s23, 1
    %p193 = por %p191, %p192
    %p195 = scmp.ne.s32.totalorder %s180, %s194
    %p196 = scmp.eq.s32.totalorder %s23, 0
    %p197 = por %p195, %p196
    %s199 = sadd.s32 %s198, 1
    %p202 = scmp.eq.s32.totalorder %s17, 1
    %p203 = scmp.ne.s32.totalorder %s198, %s200
    %p204 = scmp.eq.s32.totalorder %s17, 0
    %p205 = por %p203, %p204
    %p206 = scmp.ne.s32.totalorder %s198, %s200
    %p207 = scmp.eq.s32.totalorder %s22, 1
    %p208 = por %p206, %p207
    %p209 = scmp.ne.s32.totalorder %s200, %s201
    %p210 = scmp.eq.s32.totalorder %s22, 0
    %p211 = por %p209, %p210
    %p212 = scmp.ne.s32.totalorder %s200, %s201
    %p213 = scmp.eq.s32.totalorder %s23, 1
    %p214 = por %p212, %p213
    %p216 = scmp.ne.s32.totalorder %s201, %s215
    %p217 = scmp.eq.s32.totalorder %s23, 0
    %p218 = por %p216, %p217
    %s220 = sadd.s32 %s219, 1
    %p223 = scmp.eq.s32.totalorder %s17, 1
    %p224 = scmp.ne.s32.totalorder %s219, %s221
    %p225 = scmp.eq.s32.totalorder %s17, 0
    %p226 = por %p224, %p225
    %p227 = scmp.ne.s32.totalorder %s219, %s221
    %p228 = scmp.eq.s32.totalorder %s22, 1
    %p229 = por %p227, %p228
    %p230 = scmp.ne.s32.totalorder %s221, %s222
    %p231 = scmp.eq.s32.totalorder %s22, 0
    %p232 = por %p230, %p231
    %p233 = scmp.ne.s32.totalorder %s221, %s222
    %p234 = scmp.eq.s32.totalorder %s23, 1
    %p235 = por %p233, %p234
    %p237 = scmp.ne.s32.totalorder %s222, %s236
    %p238 = scmp.eq.s32.totalorder %s23, 0
    %p239 = por %p237, %p238
    %s241 = sadd.s32 %s240, 1
    %p244 = scmp.eq.s32.totalorder %s17, 1
    %p245 = scmp.ne.s32.totalorder %s240, %s242
    %p246 = scmp.eq.s32.totalorder %s17, 0
    %p247 = por %p245, %p246
    %p248 = scmp.ne.s32.totalorder %s240, %s242
    %p249 = scmp.eq.s32.totalorder %s22, 1
    %p250 = por %p248, %p249
    %p251 = scmp.ne.s32.totalorder %s242, %s243
    %p252 = scmp.eq.s32.totalorder %s22, 0
    %p253 = por %p251, %p252
    %p254 = scmp.ne.s32.totalorder %s242, %s243
    %p255 = scmp.eq.s32.totalorder %s23, 1
    %p256 = por %p254, %p255
    %p258 = scmp.ne.s32.totalorder %s243, %s257
    %p259 = scmp.eq.s32.totalorder %s23, 0
    %p260 = por %p258, %p259
    %s261 = ssub.s32 %s17, %s24
    %p262 = scmp.eq.s32.totalorder %s261, 0
    %s264 = sadd.s32 %s263, 1
    %s265 = scalar_select %p262, %s263, %s264
    %p268 = pneg %p262
    %p269 = scmp.eq.s32.totalorder %s17, 1
    %p270 = por %p268, %p269
    %p271 = scmp.ne.s32.totalorder %s263, %s266
    %p272 = scmp.eq.s32.totalorder %s17, 0
    %p273 = por %p271, %p272
    %p274 = scmp.ne.s32.totalorder %s263, %s266
    %p275 = scmp.eq.s32.totalorder %s22, 1
    %p276 = por %p274, %p275
    %p277 = scmp.ne.s32.totalorder %s266, %s267
    %p278 = scmp.eq.s32.totalorder %s22, 0
    %p279 = por %p277, %p278
    %p280 = scmp.ne.s32.totalorder %s266, %s267
    %p281 = scmp.eq.s32.totalorder %s23, 1
    %p282 = por %p280, %p281
    %p284 = scmp.ne.s32.totalorder %s267, %s283
    %p285 = scmp.eq.s32.totalorder %s23, 0
    %p286 = por %p284, %p285
    %p287 = scmp.le.s32.totalorder 1, %s17
    %p288 = scmp.lt.s32.totalorder %s17, 3
    %p289 = pnand %p287, %p288
    %p290 = pneg %p289
    // Predicated region
    $region9: #{conformer_encoder_apply.12} parent=5 // pred_check
      _
    $region10: #{conformer_encoder_apply.12} parent=5 // pred_check_branch
      %292 = sbr.rel (%p289) target = $region12
    $region11: #{conformer_encoder_apply.12} parent=5 // pred_region
      %s293 = ssub.s32 %s17, 1
      // Predicated region
      $region13: #{conformer_encoder_apply.12} parent=11 // pred_check
        %p294 = pneg %p64
      $region14: #{conformer_encoder_apply.12} parent=11 // pred_check_branch
        %296 = sbr.rel (%p294) target = $region16
      $region15: #{conformer_encoder_apply.12} parent=11 // pred_region
        _
      $region16: #{conformer_encoder_apply.12} parent=11 // pred_fallthru
        _
      // Predicated region
      $region17: #{conformer_encoder_apply.12} parent=11 // pred_check
        %p297 = pneg %p85
      $region18: #{conformer_encoder_apply.12} parent=11 // pred_check_branch
        %299 = sbr.rel (%p297) target = $region20
      $region19: #{conformer_encoder_apply.12} parent=11 // pred_region
        _
      $region20: #{conformer_encoder_apply.12} parent=11 // pred_fallthru
        _
      // Predicated region
      $region21: #{conformer_encoder_apply.12} parent=11 // pred_check
        %p300 = pneg %p106
      $region22: #{conformer_encoder_apply.12} parent=11 // pred_check_branch
        %302 = sbr.rel (%p300) target = $region24
      $region23: #{conformer_encoder_apply.12} parent=11 // pred_region
        _
      $region24: #{conformer_encoder_apply.12} parent=11 // pred_fallthru
        _
      // Predicated region
      $region25: #{conformer_encoder_apply.12} parent=11 // pred_check
        %p303 = pneg %p127
      $region26: #{conformer_encoder_apply.12} parent=11 // pred_check_branch
        %305 = sbr.rel (%p303) target = $region28
      $region27: #{conformer_encoder_apply.12} parent=11 // pred_region
        _
      $region28: #{conformer_encoder_apply.12} parent=11 // pred_fallthru
        _
      // Predicated region
      $region29: #{conformer_encoder_apply.12} parent=11 // pred_check
        %p306 = pneg %p148
      $region30: #{conformer_encoder_apply.12} parent=11 // pred_check_branch
        %308 = sbr.rel (%p306) target = $region32
      $region31: #{conformer_encoder_apply.12} parent=11 // pred_region
        _
      $region32: #{conformer_encoder_apply.12} parent=11 // pred_fallthru
        _
      // Predicated region
      $region33: #{conformer_encoder_apply.12} parent=11 // pred_check
        %p309 = pneg %p169
      $region34: #{conformer_encoder_apply.12} parent=11 // pred_check_branch
        %311 = sbr.rel (%p309) target = $region36
      $region35: #{conformer_encoder_apply.12} parent=11 // pred_region
        _
      $region36: #{conformer_encoder_apply.12} parent=11 // pred_fallthru
        _
      // Predicated region
      $region37: #{conformer_encoder_apply.12} parent=11 // pred_check
        %p312 = pneg %p190
      $region38: #{conformer_encoder_apply.12} parent=11 // pred_check_branch
        %314 = sbr.rel (%p312) target = $region40
      $region39: #{conformer_encoder_apply.12} parent=11 // pred_region
        _
      $region40: #{conformer_encoder_apply.12} parent=11 // pred_fallthru
        _
      // Predicated region
      $region41: #{conformer_encoder_apply.12} parent=11 // pred_check
        %p315 = pneg %p211
      $region42: #{conformer_encoder_apply.12} parent=11 // pred_check_branch
        %317 = sbr.rel (%p315) target = $region44
      $region43: #{conformer_encoder_apply.12} parent=11 // pred_region
        _
      $region44: #{conformer_encoder_apply.12} parent=11 // pred_fallthru
        _
      // Predicated region
      $region45: #{conformer_encoder_apply.12} parent=11 // pred_check
        %p318 = pneg %p232
      $region46: #{conformer_encoder_apply.12} parent=11 // pred_check_branch
        %320 = sbr.rel (%p318) target = $region48
      $region47: #{conformer_encoder_apply.12} parent=11 // pred_region
        _
      $region48: #{conformer_encoder_apply.12} parent=11 // pred_fallthru
        _
      // Predicated region
      $region49: #{conformer_encoder_apply.12} parent=11 // pred_check
        %p321 = pneg %p253
      $region50: #{conformer_encoder_apply.12} parent=11 // pred_check_branch
        %323 = sbr.rel (%p321) target = $region52
      $region51: #{conformer_encoder_apply.12} parent=11 // pred_region
        _
      $region52: #{conformer_encoder_apply.12} parent=11 // pred_fallthru
        _
    $region12: #{conformer_encoder_apply.12} parent=5 // pred_fallthru
      _
    %p324 = scmp.lt.s32.totalorder %s17, 2
    // Predicated region
    $region53: #{conformer_encoder_apply.12} parent=5 // pred_check
      %p325 = pneg %p324
    $region54: #{conformer_encoder_apply.12} parent=5 // pred_check_branch
      %327 = sbr.rel (%p325) target = $region56
    $region55: #{conformer_encoder_apply.12} parent=5 // pred_region
      // Predicated region
      $region57: #{conformer_encoder_apply.12} parent=55 // pred_check
        %p328 = pneg %p37
      $region58: #{conformer_encoder_apply.12} parent=55 // pred_check_branch
        %330 = sbr.rel (%p328) target = $region60
      $region59: #{conformer_encoder_apply.12} parent=55 // pred_region
        %p331 = scmp.lt.s32.totalorder %s17, 1
        %s332 = scalar_select %p331, %s17, 1
        %s333 = smul.addr %s332, 2
        %s334 = scalar_lea.vmem %s0, %s333
      $region60: #{conformer_encoder_apply.12} parent=55 // pred_fallthru
        _
    $region56: #{conformer_encoder_apply.12} parent=5 // pred_fallthru
      _
    %p335 = scmp.le.s32.totalorder 1, %s17
    %p336 = scmp.lt.s32.totalorder %s17, 3
    %p337 = pnand %p335, %p336
    %p338 = pneg %p337
    // Predicated region
    $region61: #{conformer_encoder_apply.12} parent=5 // pred_check
      _
    $region62: #{conformer_encoder_apply.12} parent=5 // pred_check_branch
      %340 = sbr.rel (%p337) target = $region64
    $region63: #{conformer_encoder_apply.12} parent=5 // pred_region
      %s341 = ssub.s32 %s17, 1
      %p342 = scmp.lt.s32.totalorder %s22, 1
      %s343 = scalar_select %p342, %s22, 1
      %s344 = smul.addr %s343, 2
      %s345 = scalar_lea.vmem %s0, %s344
      %p346 = pneg %p43
      %p347 = pneg %p40
      %p348 = pneg %p64
      %p349 = pneg %p61
      %p350 = pneg %p85
      %p351 = pneg %p82
      %p352 = pneg %p106
      %p353 = pneg %p103
      %p354 = pneg %p127
      %p355 = pneg %p124
      %p356 = pneg %p148
      %p357 = pneg %p145
      %p358 = pneg %p169
      %p359 = pneg %p166
      %p360 = pneg %p190
      %p361 = pneg %p187
      %p362 = pneg %p211
      %p363 = pneg %p208
      %p364 = pneg %p232
      %p365 = pneg %p229
      %p366 = pneg %p253
      %p367 = pneg %p250
      %p368 = pneg %p279
      %p369 = pneg %p276
      %p370 = scmp.lt.s32.totalorder %s22, 1
      %s371 = scalar_select %p370, %s22, 1
      %s372 = smul.addr %s371, 2
      %s373 = scalar_lea.vmem %s11, %s372
      %p374 = scmp.lt.s32.totalorder %s22, 1
      %s375 = scalar_select %p374, %s22, 1
      %s376 = smul.addr %s375, 2
      %s377 = scalar_lea.vmem %s0, %s376
      %p378 = scmp.lt.s32.totalorder %s22, 1
      %s379 = scalar_select %p378, %s22, 1
      %s380 = smul.addr %s379, 2
      %s381 = scalar_lea.vmem %s11, %s380
      %v383 = vld [vmem:[%s377] sm:$0x3]
      %v384 = vunpack.c.l.bf16 %v383
      %vm385 = vcmask 257024
      %v386 = vsel %vm385, %v384, 0.0
      %387 = vadd.xlane.f32.xlu0 %v386
      %v388 = vpop.xlane.xlu0 %387
      %v389 = vrcp.pop 32.0
      %v390 = vmul.f32 %v388, %v389
      %v391 = vsub.f32 %v384, %v390
      %v392 = vmul.f32 %v391, %v391
      %v393 = vsel %vm385, %v392, 0.0
      %394 = vadd.xlane.f32.xlu0 %v393
      %v395 = vpop.xlane.xlu0 %394
      %v396 = vmul.f32 %v395, %v389
      %v397 = vadd.f32 %v396, 1e-05
      %v398 = vrsqrt.pop %v397
      %v399 = vmul.f32 %v391, %v398
      %v400 = vld [vmem:[%s1] sm:$0x1]
      %v402 = vlaneseq
      %v403 = vshrl.u32 %v402, 7
      %v404 = vsub.s32 0, %v403
      %v405 = vrot.slane %v400, %v404
      %v407 = vmul.f32 %v399, %v405
      %v408 = vld [vmem:[%s2] sm:$0x1]
      %v410 = vlaneseq
      %v411 = vshrl.u32 %v410, 7
      %v412 = vsub.s32 0, %v411
      %v413 = vrot.slane %v408, %v412
      %v415 = vadd.f32 %v407, %v413
      %v416 = vpack.c.bf16 %v415, %v415
      %v417 = vld [vmem:[%s3] sm:$0xf]
      %v418 = vld [vmem:[%s3 + $0x4] sm:$0xf]
      %v419 = vld [vmem:[%s3 + $0x8] sm:$0xf]
      %v420 = vld [vmem:[%s3 + $0xc] sm:$0xf]
      %v421 = vld [vmem:[%s4] sm:$0x1]
      %v423 = vlaneseq
      %v424 = vshrl.u32 %v423, 7
      %v425 = vsub.s32 0, %v424
      %v426 = vrot.slane %v421, %v425
      %v432 = vunpack.c.l.b16 %v417
      %v433 = vunpack.c.l.b16 %v418
      %v434 = vunpack.c.l.b16 %v419
      %v435 = vunpack.c.l.b16 %v420
      %v436 = vpack.c.b16 %v433, %v432
      %v437 = vpack.c.b16 %v435, %v434
      %vm440 = vcmask 261120
      %v442 = vsel %vm440, %v416, 0
      %444 = vmatprep.subr.bf16.mxu0 0
      %445 = vmatpush1.bf16.msra.mxu0 0
      %446 = vmatprep.subr.bf16.mxu0 0
      %447 = vmatpush1.bf16.msra.mxu0 0
      %448 = vmatprep.subr.bf16.mxu0 0
      %449 = vmatpush1.bf16.msra.mxu0 0
      %450 = vmatprep.subr.bf16.mxu0 0
      %451 = vmatpush1.bf16.msra.mxu0 0
      %452 = vmatprep.subr.bf16.mxu0 0
      %453 = vmatpush1.bf16.msra.mxu0 0
      %454 = vmatprep.subr.bf16.mxu0 0
      %455 = vmatpush1.bf16.msra.mxu0 0
      %456 = vmatprep.subr.bf16.mxu0 0
      %457 = vmatpush1.bf16.msra.mxu0 %v437
      %458 = vmatprep.subr.bf16.mxu0 0
      %459 = vmatpush1.bf16.msra.mxu0 %v436
      %460 = vmatprep.subr.bf16.mxu0 0
      %461 = vmatpush2.bf16.msra.mxu0 0
      %462 = vmatprep.subr.bf16.mxu0 0
      %463 = vmatpush2.bf16.msra.mxu0 0
      %464 = vmatprep.subr.bf16.mxu0 0
      %465 = vmatpush2.bf16.msra.mxu0 0
      %466 = vmatprep.subr.bf16.mxu0 0
      %467 = vmatpush2.bf16.msra.mxu0 0
      %468 = vmatprep.subr.bf16.mxu0 0
      %469 = vmatpush2.bf16.msra.mxu0 0
      %470 = vmatprep.subr.bf16.mxu0 0
      %471 = vmatpush2.bf16.msra.mxu0 0
      %472 = vmatprep.subr.bf16.mxu0 0
      %473 = vmatpush2.bf16.msra.mxu0 0
      %474 = vmatprep.subr.bf16.mxu0 0
      %475 = vmatpush2.bf16.msra.mxu0 0
      %476 = vmatprep.mubr.bf16.mxu0 0
      %477 = vmatmul.mubr.bf16.gmra.mxu0 %v442
      %v478 = vpop.f32.mrf.mxu0
      %v479 = vadd.f32 %v426, %v478
      %v480 = vpop.f32.mrf.mxu0
      %v481 = vpop.f32.mrf.mxu0
      %v482 = vpop.f32.mrf.mxu0
      %483 = vdwg.mxu0
      %v484 = vxor.u32 %v479, 2147483648
      %v485 = vmul.f32 %v484, 1.442695
      %v486 = vpow.pop %v485
      %v487 = vadd.f32 %v486, 1.0
      %v488 = vrcp.pop %v487
      %v489 = vmul.f32 1.0, %v488
      %491 = vrot.lane.b32.xlu0 %v489, 96
      %v492 = vpop.permute.xlu0 %491
      %v494 = vmul.f32 %v479, %v492
      %vm495 = vcmask 256000
      %496 = vst.msk [vmem:[#allocation2] sm:$0x7] %vm495, 0.0
      %497 = vst.msk [vmem:[#allocation2 + $0x7] sm:$0x7] %vm495, 0.0
      %498 = vst.msk [vmem:[#allocation2 + $0x3] sm:$0xf] %vm385, %v494
      %v499 = vld [vmem:[#allocation2] sm:$0xff]
      %v500 = vld [vmem:[#allocation2 + $0x8] sm:$0x3]
      %v501 = vld [vmem:[%s5] sm:$0x7f]
      %v502 = vlaneseq
      %v503 = vshrl.u32 %v502, 7
      %v504 = vsub.s32 0, %v503
      %v505 = vrot.slane %v501, %v504
      %v506 = vmul.f32 %v499, %v505
      %v507 = vadd.f32 %v506, 0.0
      %v508 = vlaneseq
      %v509 = vshrl.u32 %v508, 7
      %v510 = vsub.s32 1, %v509
      %v511 = vrot.slane %v501, %v510
      %v512 = vmul.f32 %v499, %v511
      %v514 = vrot.slane %v512, 1
      %v516 = vadd.f32 %v507, %v514
      %v517 = vlaneseq
      %v518 = vshrl.u32 %v517, 7
      %v519 = vsub.s32 2, %v518
      %v520 = vrot.slane %v501, %v519
      %v521 = vmul.f32 %v499, %v520
      %v523 = vrot.slane %v521, 2
      %v525 = vadd.f32 %v516, %v523
      %v526 = vlaneseq
      %v527 = vshrl.u32 %v526, 7
      %v528 = vsub.s32 3, %v527
      %v529 = vrot.slane %v501, %v528
      %v530 = vmul.f32 %v499, %v529
      %v532 = vrot.slane %v530, 3
      %v534 = vadd.f32 %v525, %v532
      %v535 = vlaneseq
      %v536 = vshrl.u32 %v535, 7
      %v537 = vsub.s32 4, %v536
      %v538 = vrot.slane %v501, %v537
      %v539 = vmul.f32 %v499, %v538
      %v541 = vrot.slane %v539, 4
      %v543 = vadd.f32 %v534, %v541
      %v544 = vlaneseq
      %v545 = vshrl.u32 %v544, 7
      %v546 = vsub.s32 5, %v545
      %v547 = vrot.slane %v501, %v546
      %v548 = vmul.f32 %v499, %v547
      %v549 = vmul.f32 %v500, %v547
      %vm552 = vcmask 1042432
      %v553 = vrot.slane %v548, 5
      %v554 = vrot.slane %v549, 5
      %v555 = vsel %vm552, %v553, %v554
      %v557 = vadd.f32 %v543, %v555
      %v558 = vlaneseq
      %v559 = vshrl.u32 %v558, 7
      %v560 = vsub.s32 6, %v559
      %v561 = vrot.slane %v501, %v560
      %v562 = vmul.f32 %v499, %v561
      %v563 = vmul.f32 %v500, %v561
      %vm566 = vcmask 1041408
      %v567 = vrot.slane %v562, 6
      %v568 = vrot.slane %v563, 6
      %v569 = vsel %vm566, %v567, %v568
      %v571 = vadd.f32 %v557, %v569
      %v572 = vld [vmem:[%s6] sm:$0x1]
      %v574 = vlaneseq
      %v575 = vshrl.u32 %v574, 7
      %v576 = vsub.s32 0, %v575
      %v577 = vrot.slane %v572, %v576
      %v579 = vadd.f32 %v571, %v577
      %v580 = vld [vmem:[%s7] sm:$0x1]
      %v582 = vlaneseq
      %v583 = vshrl.u32 %v582, 7
      %v584 = vsub.s32 0, %v583
      %v585 = vrot.slane %v580, %v584
      %v587 = vmul.f32 %v579, %v585
      %v588 = vld [vmem:[%s8] sm:$0x1]
      %v590 = vlaneseq
      %v591 = vshrl.u32 %v590, 7
      %v592 = vsub.s32 0, %v591
      %v593 = vrot.slane %v588, %v592
      %v595 = vadd.f32 %v587, %v593
      %v596 = vxor.u32 %v595, 2147483648
      %v597 = vmul.f32 %v596, 1.442695
      %v598 = vpow.pop %v597
      %v599 = vadd.f32 %v598, 1.0
      %v600 = vrcp.pop %v599
      %v601 = vmul.f32 1.0, %v600
      %v602 = vmul.f32 %v595, %v601
      %v603 = vpack.c.bf16 %v602, %v602
      %v604 = vld [vmem:[%s9] sm:$0xf]
      %v605 = vld [vmem:[%s9 + $0x4] sm:$0xf]
      %v606 = vld [vmem:[%s9 + $0x8] sm:$0xf]
      %v607 = vld [vmem:[%s9 + $0xc] sm:$0xf]
      %v608 = vld [vmem:[%s10] sm:$0x1]
      %v610 = vlaneseq
      %v611 = vshrl.u32 %v610, 7
      %v612 = vsub.s32 0, %v611
      %v613 = vrot.slane %v608, %v612
      %v619 = vunpack.c.l.b16 %v604
      %v620 = vunpack.c.l.b16 %v605
      %v621 = vunpack.c.l.b16 %v606
      %v622 = vunpack.c.l.b16 %v607
      %v623 = vpack.c.b16 %v620, %v619
      %v624 = vpack.c.b16 %v622, %v621
      %v628 = vsel %vm440, %v603, 0
      %630 = vmatprep.subr.bf16.mxu0 0
      %631 = vmatpush1.bf16.msra.mxu0 0
      %632 = vmatprep.subr.bf16.mxu0 0
      %633 = vmatpush1.bf16.msra.mxu0 0
      %634 = vmatprep.subr.bf16.mxu0 0
      %635 = vmatpush1.bf16.msra.mxu0 0
      %636 = vmatprep.subr.bf16.mxu0 0
      %637 = vmatpush1.bf16.msra.mxu0 0
      %638 = vmatprep.subr.bf16.mxu0 0
      %639 = vmatpush1.bf16.msra.mxu0 0
      %640 = vmatprep.subr.bf16.mxu0 0
      %641 = vmatpush1.bf16.msra.mxu0 0
      %642 = vmatprep.subr.bf16.mxu0 0
      %643 = vmatpush1.bf16.msra.mxu0 %v624
      %644 = vmatprep.subr.bf16.mxu0 0
      %645 = vmatpush1.bf16.msra.mxu0 %v623
      %646 = vmatprep.subr.bf16.mxu0 0
      %647 = vmatpush2.bf16.msra.mxu0 0
      %648 = vmatprep.subr.bf16.mxu0 0
      %649 = vmatpush2.bf16.msra.mxu0 0
      %650 = vmatprep.subr.bf16.mxu0 0
      %651 = vmatpush2.bf16.msra.mxu0 0
      %652 = vmatprep.subr.bf16.mxu0 0
      %653 = vmatpush2.bf16.msra.mxu0 0
      %654 = vmatprep.subr.bf16.mxu0 0
      %655 = vmatpush2.bf16.msra.mxu0 0
      %656 = vmatprep.subr.bf16.mxu0 0
      %657 = vmatpush2.bf16.msra.mxu0 0
      %658 = vmatprep.subr.bf16.mxu0 0
      %659 = vmatpush2.bf16.msra.mxu0 0
      %660 = vmatprep.subr.bf16.mxu0 0
      %661 = vmatpush2.bf16.msra.mxu0 0
      %662 = vmatprep.mubr.bf16.mxu0 0
      %663 = vmatmul.mubr.bf16.gmra.mxu0 %v628
      %v664 = vpop.f32.mrf.mxu0
      %v665 = vadd.f32 %v613, %v664
      %v666 = vpop.f32.mrf.mxu0
      %v667 = vpop.f32.mrf.mxu0
      %v668 = vpop.f32.mrf.mxu0
      %669 = vdwg.mxu0
      %v670 = vadd.f32 %v384, %v665
      %v671 = vpack.c.bf16 %v670, %v670
      %vm672 = vcmask 254976
      %673 = vst.msk [vmem:[%s381] sm:$0x3] %vm672, %v671
      %p674 = scmp.lt.s32.totalorder %s22, 1
      %s675 = scalar_select %p674, %s22, 1
      %s676 = smul.addr %s675, 2
      %s677 = scalar_lea.vmem %s11, %s676
      // Predicated region
      $region65: #{conformer_encoder_apply.12} parent=63 // pred_check
        %p678 = pneg %p276
      $region66: #{conformer_encoder_apply.12} parent=63 // pred_check_branch
        %680 = sbr.rel (%p678) target = $region68
      $region67: #{conformer_encoder_apply.12} parent=63 // pred_region
        _
      $region68: #{conformer_encoder_apply.12} parent=63 // pred_fallthru
        _
    $region64: #{conformer_encoder_apply.12} parent=5 // pred_fallthru
      _
    %p681 = scmp.le.s32.totalorder 2, %s17
    // Predicated region
    $region69: #{conformer_encoder_apply.12} parent=5 // pred_check
      %p682 = pneg %p681
    $region70: #{conformer_encoder_apply.12} parent=5 // pred_check_branch
      %684 = sbr.rel (%p682) target = $region72
    $region71: #{conformer_encoder_apply.12} parent=5 // pred_region
      %s685 = ssub.s32 %s17, 2
      // Predicated region
      $region73: #{conformer_encoder_apply.12} parent=71 // pred_check
        %p686 = pneg %p282
      $region74: #{conformer_encoder_apply.12} parent=71 // pred_check_branch
        %688 = sbr.rel (%p686) target = $region76
      $region75: #{conformer_encoder_apply.12} parent=71 // pred_region
        %p689 = scmp.lt.s32.totalorder %s23, 1
        %s690 = scalar_select %p689, %s23, 1
        %s691 = smul.addr %s690, 2
        %s692 = scalar_lea.vmem %s11, %s691
      $region76: #{conformer_encoder_apply.12} parent=71 // pred_fallthru
        _
    $region72: #{conformer_encoder_apply.12} parent=5 // pred_fallthru
      _
  $region6: #{conformer_encoder_apply.12} parent=0 // loop_footer
    %s21 = sadd.s32 1, %s17
  $region7: #{conformer_encoder_apply.12} parent=0 // loop_footer_branch
    %16 = sbr.rel target = $region3
  $region8: #{conformer_encoder_apply.12} parent=0 // loop_exit
    _

</llo_original>
